<compile_context>
chip_gen: v6e
topology: v6e:2x2x1
jax: 0.10.0
libtpu: 0.0.40
codegen_flags: <defaults>
</compile_context>

<pallas_src>
import functools
import math

import jax
import jax.numpy as jnp
from jax.experimental import pallas as pl
from jax.experimental.pallas import tpu as pltpu


def _round_up(x, m):
    return (x + m - 1) // m * m


def _pick_block_batch(batch, n_tok, target_rows=256):
    """Pick Bb so Bb*N fills the MXU rows, keeping >=2 grid steps if possible."""
    bb = batch
    for d in range(1, batch + 1):
        if batch % d == 0 and d * n_tok >= target_rows:
            bb = d
            break
    if batch // bb < 2 and batch >= 2:
        for d in range(batch // 2, 0, -1):
            if batch % d == 0:
                bb = d
                break
    return bb


def _gcn_kernel(x_ref, bias_ref, wt_ref, bt_ref, wp_ref, bp_ref, wg_ref,
                gamma_ref, beta_ref, out_ref, rel_ref, *, num_graph, eps, unroll):
    """One block of Bb batch elements per grid step; NG graphs reduced in-body."""
    x_flat = x_ref[...]             # [Bb*N, NFG] bf16 (all Bb elements stacked)
    bias = bias_ref[...]            # [Bb, N, N]  f32 additive position bias (0 / -1e9)
    bb, n, _ = bias.shape
    nfg = x_flat.shape[-1]
    n_pad = rel_ref.shape[-1]       # lane-dense (multiple of 128) rel width
    x3 = x_flat.reshape(bb, n, nfg)  # batched view for rel @ x

    def body(g, acc):
        wt = wt_ref[g]              # [NFG, NFR] bf16 (pre-transposed, pre-scaled)
        wp = wp_ref[g]              # [NFG, NFR] bf16
        wg = wg_ref[g]              # [NFG, NFG] bf16

        # theta / phi projections on the flat [Bb*N, NFG] slab (fills MXU rows).
        theta = jnp.dot(x_flat, wt, preferred_element_type=jnp.float32) + bt_ref[g]
        phi = jnp.dot(x_flat, wp, preferred_element_type=jnp.float32) + bp_ref[g]

        # similarity logits: bf16 operands (native single-pass MXU), f32 accum.
        theta3 = theta.reshape(bb, n, -1).astype(jnp.bfloat16)
        phi3 = phi.reshape(bb, n, -1).astype(jnp.bfloat16)
        s = jnp.einsum("bnr,bmr->bnm", theta3, phi3,
                       preferred_element_type=jnp.float32)
        s = s + bias                # masked entries -> ~-1e9

        # softmax over last dim (f32); exact divide since rel is an output.
        m = jnp.max(s, axis=-1, keepdims=True)
        p = jnp.exp(s - m)
        denom = jnp.sum(p, axis=-1, keepdims=True)
        rel = p / denom             # [Bb, N, N] f32

        # store last graph's relation graph once, lane-dense padded to n_pad.
        @pl.when(g == num_graph - 1)
        def _():
            if n_pad == n:
                rel_ref[...] = rel
            else:
                pad = jnp.zeros((bb, n, n_pad - n), jnp.float32)
                rel_ref[...] = jnp.concatenate([rel, pad], axis=-1)

        # message passing + fc_gcn (no bias): bf16 operands, f32 accumulation.
        y = jnp.einsum("bnm,bmf->bnf", rel.astype(jnp.bfloat16), x3,
                       preferred_element_type=jnp.float32)
        z = jnp.dot(y.reshape(bb * n, nfg).astype(jnp.bfloat16), wg,
                    preferred_element_type=jnp.float32)

        # LayerNorm over NFG_ONE + ReLU, all f32.
        mu = jnp.mean(z, axis=-1, keepdims=True)
        var = jnp.mean((z - mu) ** 2, axis=-1, keepdims=True)
        zn = (z - mu) * jax.lax.rsqrt(var + eps)
        act = jnp.maximum(zn * gamma_ref[g] + beta_ref[g], 0.0)
        return acc + act

    acc = jax.lax.fori_loop(0, num_graph, body,
                            jnp.zeros((bb * n, nfg), jnp.float32),
                            unroll=unroll)
    out_ref[...] = acc              # sum over NG graphs


def gcn_module_forward(graph_boxes_features, boxes_in_flat, params, cfg):
    x = graph_boxes_features.astype(jnp.float32)
    B, Ntok, NFG = x.shape
    NFR = cfg["num_features_relation"]
    NG = cfg["num_graph"]
    OH, OW = cfg["out_size"]
    pos_threshold = cfg["pos_threshold"]

    # ---- glue: box centers -> pairwise distances -> additive position bias ----
    b = boxes_in_flat.astype(jnp.float32)
    cx = (b[:, 0] + b[:, 2]) / 2.0
    cy = (b[:, 1] + b[:, 3]) / 2.0
    pos = jnp.stack([cx, cy], axis=-1).reshape(B, Ntok, 2)
    diff = pos[:, :, None, :] - pos[:, None, :, :]
    dist = jnp.sqrt(jnp.sum(diff * diff, axis=-1))                       # [B, N, N]
    mask_bias = jnp.where(dist > pos_threshold * OW,
                          jnp.float32(-1e9), jnp.float32(0.0))           # additive

    # ---- stacked per-graph params: pre-transposed [in,out], 1/sqrt(NFR) folded
    #      into W_theta/b_theta, matmul weights in bf16.
    inv_sqrt_nfr = jnp.float32(1.0 / math.sqrt(NFR))
    wt_t = jnp.transpose(params["w_theta"] * inv_sqrt_nfr, (0, 2, 1)).astype(jnp.bfloat16)
    wp_t = jnp.transpose(params["w_phi"], (0, 2, 1)).astype(jnp.bfloat16)
    wg_t = jnp.transpose(params["w_gcn"], (0, 2, 1)).astype(jnp.bfloat16)
    bt = (params["b_theta"] * inv_sqrt_nfr).reshape(NG, 1, NFR).astype(jnp.float32)
    bp = params["b_phi"].reshape(NG, 1, NFR).astype(jnp.float32)
    gamma = params["ln_gamma"].reshape(NG, 1, NFG).astype(jnp.float32)
    beta = params["ln_beta"].reshape(NG, 1, NFG).astype(jnp.float32)

    x_flat = x.reshape(B * Ntok, NFG).astype(jnp.bfloat16)

    BB = _pick_block_batch(B, Ntok)
    n_grid = B // BB
    Npad = _round_up(Ntok, 128)     # lane-dense rel output width

    # ---- VMEM budget: single-buffered resident weights + double-buffered
    #      streamed blocks + headroom, capped under v5e/v6e physical VMEM.
    weight_bytes = ((wt_t.size + wp_t.size + wg_t.size) * 2 +
                    (bt.size + bp.size + gamma.size + beta.size) * 4)
    stream_bytes = 2 * (BB * Ntok * NFG * 2 +      # x (bf16)
                        BB * Ntok * Ntok * 4 +     # position bias
                        BB * Ntok * NFG * 4 +      # out features
                        BB * Ntok * Npad * 4)      # rel graph (padded)
    vmem_limit = int(min(max(weight_bytes + stream_bytes + (8 << 20), 32 << 20),
                         100 << 20))

    kernel = functools.partial(_gcn_kernel, num_graph=NG, eps=1e-5,
                               unroll=min(2, NG))

    def make_call(single_buffer_weights):
        if single_buffer_weights:
            def res_spec(shape):
                # Grid-invariant resident block: single-buffer it.
                return pl.BlockSpec(shape, lambda i: (0,) * len(shape),
                                    pipeline_mode=pl.Buffered(1))
        else:
            def res_spec(shape):
                return pl.BlockSpec(shape, lambda i: (0,) * len(shape))
        return pl.pallas_call(
            kernel,
            out_shape=(
                jax.ShapeDtypeStruct((B * Ntok, NFG), jnp.float32),
                jax.ShapeDtypeStruct((B, Ntok, Npad), jnp.float32),
            ),
            grid_spec=pltpu.PrefetchScalarGridSpec(
                num_scalar_prefetch=0,
                grid=(n_grid,),
                in_specs=[
                    pl.BlockSpec((BB * Ntok, NFG), lambda i: (i, 0)),     # features
                    pl.BlockSpec((BB, Ntok, Ntok), lambda i: (i, 0, 0)),  # position bias
                    res_spec((NG, NFG, NFR)),                             # W_theta^T
                    res_spec((NG, 1, NFR)),                               # b_theta
                    res_spec((NG, NFG, NFR)),                             # W_phi^T
                    res_spec((NG, 1, NFR)),                               # b_phi
                    res_spec((NG, NFG, NFG)),                             # W_gcn^T
                    res_spec((NG, 1, NFG)),                               # LN gamma
                    res_spec((NG, 1, NFG)),                               # LN beta
                ],
                out_specs=[
                    pl.BlockSpec((BB * Ntok, NFG), lambda i: (i, 0)),     # summed feats
                    pl.BlockSpec((BB, Ntok, Npad), lambda i: (i, 0, 0)),  # rel graph
                ],
            ),
            compiler_params=pltpu.CompilerParams(
                dimension_semantics=("parallel",),
                vmem_limit_bytes=vmem_limit,
            ),
        )

    args = (x_flat, mask_bias, wt_t, bt, wp_t, bp, wg_t, gamma, beta)
    try:
        out_flat, rel_pad = make_call(True)(*args)
    except Exception:
        # TODO(synk): pipeline_mode=pl.Buffered(1) unsupported on this jax
        # version; falling back to default (double-buffered) resident weights.
        out_flat, rel_pad = make_call(False)(*args)

    out_feat = out_flat.reshape(B, Ntok, NFG)
    rel_graph = rel_pad[:, :, :Ntok]
    return out_feat, rel_graph


def _reference_forward(x, boxes_in_flat, params, cfg):
    """Pure-JAX f32 reference mirroring the PyTorch forward."""
    B, N, NFG = x.shape
    NFR = cfg["num_features_relation"]
    NG = cfg["num_graph"]
    OH, OW = cfg["out_size"]

    b = boxes_in_flat
    cx = (b[:, 0] + b[:, 2]) / 2.0
    cy = (b[:, 1] + b[:, 3]) / 2.0
    pos = jnp.stack([cx, cy], axis=-1).reshape(B, N, 2)
    dist = jnp.sqrt(jnp.sum((pos[:, :, None, :] - pos[:, None, :, :]) ** 2, -1))
    position_mask = dist > cfg["pos_threshold"] * OW

    feats_list = []
    rel = None
    for i in range(NG):
        theta = x @ params["w_theta"][i].T + params["b_theta"][i]
        phi = x @ params["w_phi"][i].T + params["b_phi"][i]
        s = jnp.einsum("bnr,bmr->bnm", theta, phi) / math.sqrt(NFR)
        s = jnp.where(position_mask, -jnp.inf, s)
        rel = jax.nn.softmax(s, axis=2)
        one = jnp.einsum("bnm,bmf->bnf", rel, x) @ params["w_gcn"][i].T
        mu = jnp.mean(one, -1, keepdims=True)
        var = jnp.mean((one - mu) ** 2, -1, keepdims=True)
        one = (one - mu) / jnp.sqrt(var + 1e-5)
        one = one * params["ln_gamma"][i] + params["ln_beta"][i]
        feats_list.append(jax.nn.relu(one))
    return sum(feats_list), rel


if __name__ == "__main__":
    cfg = dict(
        num_features_relation=32,   # NFR
        num_graph=2,                # NG
        num_boxes=4,                # N (per frame)
        num_frames=2,               # T
        num_features_gcn=32,        # NFG
        out_size=(16, 16),          # (OH, OW)
        pos_threshold=0.2,
        dataset_name="collective",  # non-volleyball branch: LayerNorm([NFG])
    )
    B = 2
    N_tokens = cfg["num_frames"] * cfg["num_boxes"]   # T*N = 8
    NFG = cfg["num_features_gcn"]
    NFR = cfg["num_features_relation"]
    NG = cfg["num_graph"]

    key = jax.random.PRNGKey(0)
    k = iter(jax.random.split(key, 10))

    x = jax.random.normal(next(k), (B, N_tokens, NFG), dtype=jnp.float32)
    boxes_in_flat = jax.random.uniform(
        next(k), (B * N_tokens, 4), dtype=jnp.float32, minval=0.0, maxval=16.0)

    scale = 1.0 / math.sqrt(NFG)
    params = dict(
        w_theta=jax.random.normal(next(k), (NG, NFR, NFG), jnp.float32) * scale,
        b_theta=jax.random.normal(next(k), (NG, NFR), jnp.float32) * 0.01,
        w_phi=jax.random.normal(next(k), (NG, NFR, NFG), jnp.float32) * scale,
        b_phi=jax.random.normal(next(k), (NG, NFR), jnp.float32) * 0.01,
        w_gcn=jax.random.normal(next(k), (NG, NFG, NFG), jnp.float32) * scale,
        ln_gamma=jnp.ones((NG, NFG), jnp.float32),
        ln_beta=jnp.zeros((NG, NFG), jnp.float32),
    )

    out_feat, rel_graph = gcn_module_forward(x, boxes_in_flat, params, cfg)
    out_feat = jax.block_until_ready(out_feat)
    rel_graph = jax.block_until_ready(rel_graph)

    ref_feat, ref_rel = _reference_forward(x, boxes_in_flat, params, cfg)
    # Tolerances account for bf16 matmul operands (f32 accumulation).
    assert jnp.allclose(out_feat, ref_feat, atol=5e-2, rtol=5e-2), \
        float(jnp.max(jnp.abs(out_feat - ref_feat)))
    assert jnp.allclose(rel_graph, ref_rel, atol=2e-2, rtol=2e-2), \
        float(jnp.max(jnp.abs(rel_graph - ref_rel)))

    print("KERNEL_OK")
</pallas_src>

<mosaic_0001>
module attributes {stable_mosaic.version = 11 : i64} {
  func.func @_gcn_kernel(%arg0: i32, %arg1: memref<8x32xbf16, #tpu.memory_space<vmem>>, %arg2: memref<1x8x8xf32, #tpu.memory_space<vmem>>, %arg3: memref<2x32x32xbf16, #tpu.memory_space<vmem>>, %arg4: memref<2x1x32xf32, #tpu.memory_space<vmem>>, %arg5: memref<2x32x32xbf16, #tpu.memory_space<vmem>>, %arg6: memref<2x1x32xf32, #tpu.memory_space<vmem>>, %arg7: memref<2x32x32xbf16, #tpu.memory_space<vmem>>, %arg8: memref<2x1x32xf32, #tpu.memory_space<vmem>>, %arg9: memref<2x1x32xf32, #tpu.memory_space<vmem>>, %arg10: memref<8x32xf32, #tpu.memory_space<vmem>>, %arg11: memref<1x8x128xf32, #tpu.memory_space<vmem>>) attributes {dimension_semantics = [#tpu.dimension_semantics<parallel>], iteration_bounds = array<i64: 2>, scalar_prefetch = 0 : i64, scratch_operands = 0 : i64, tpu.core_type = #tpu.core_type<tc>, window_params = [{transform_indices = @transform_0, window_bounds = array<i64: 8, 32>}, {transform_indices = @transform_1, window_bounds = array<i64: 1, 8, 8>}, {pipeline_mode = #tpu.pipeline_mode<synchronous>, transform_indices = @transform_2, window_bounds = array<i64: 2, 32, 32>}, {pipeline_mode = #tpu.pipeline_mode<synchronous>, transform_indices = @transform_3, window_bounds = array<i64: 2, 1, 32>}, {pipeline_mode = #tpu.pipeline_mode<synchronous>, transform_indices = @transform_4, window_bounds = array<i64: 2, 32, 32>}, {pipeline_mode = #tpu.pipeline_mode<synchronous>, transform_indices = @transform_5, window_bounds = array<i64: 2, 1, 32>}, {pipeline_mode = #tpu.pipeline_mode<synchronous>, transform_indices = @transform_6, window_bounds = array<i64: 2, 32, 32>}, {pipeline_mode = #tpu.pipeline_mode<synchronous>, transform_indices = @transform_7, window_bounds = array<i64: 2, 1, 32>}, {pipeline_mode = #tpu.pipeline_mode<synchronous>, transform_indices = @transform_8, window_bounds = array<i64: 2, 1, 32>}, {transform_indices = @transform_9, window_bounds = array<i64: 8, 32>}, {transform_indices = @transform_10, window_bounds = array<i64: 1, 8, 128>}]} {
    %c0 = arith.constant 0 : index
    %c0_0 = arith.constant 0 : index
    %0 = vector.load %arg1[%c0, %c0_0] : memref<8x32xbf16, #tpu.memory_space<vmem>>, vector<8x32xbf16>
    %c0_1 = arith.constant 0 : index
    %c0_2 = arith.constant 0 : index
    %c0_3 = arith.constant 0 : index
    %1 = vector.load %arg2[%c0_1, %c0_2, %c0_3] : memref<1x8x8xf32, #tpu.memory_space<vmem>>, vector<1x8x8xf32>
    %2 = vector.shape_cast %0 : vector<8x32xbf16> to vector<1x8x32xbf16>
    %cst = arith.constant 0.000000e+00 : f32
    %3 = vector.broadcast %cst : f32 to vector<8x32xf32>
    %c0_i32 = arith.constant 0 : i32
    %4 = arith.index_cast %c0_i32 : i32 to index
    %c0_4 = arith.constant 0 : index
    %c0_5 = arith.constant 0 : index
    %5 = vector.load %arg3[%4, %c0_4, %c0_5] : memref<2x32x32xbf16, #tpu.memory_space<vmem>>, vector<1x32x32xbf16>
    %6 = vector.shape_cast %5 : vector<1x32x32xbf16> to vector<32x32xbf16>
    %7 = arith.index_cast %c0_i32 : i32 to index
    %c0_6 = arith.constant 0 : index
    %c0_7 = arith.constant 0 : index
    %8 = vector.load %arg5[%7, %c0_6, %c0_7] : memref<2x32x32xbf16, #tpu.memory_space<vmem>>, vector<1x32x32xbf16>
    %9 = vector.shape_cast %8 : vector<1x32x32xbf16> to vector<32x32xbf16>
    %10 = arith.index_cast %c0_i32 : i32 to index
    %c0_8 = arith.constant 0 : index
    %c0_9 = arith.constant 0 : index
    %11 = vector.load %arg7[%10, %c0_8, %c0_9] : memref<2x32x32xbf16, #tpu.memory_space<vmem>>, vector<1x32x32xbf16>
    %12 = vector.shape_cast %11 : vector<1x32x32xbf16> to vector<32x32xbf16>
    %cst_10 = arith.constant dense<0.000000e+00> : vector<8x32xf32>
    %13 = tpu.matmul %0, %6, %cst_10 {dimension_numbers = #tpu.dot_dimension_numbers<[1], [0], [0], [1], [0, 0, 1, 1], [], []>} : vector<8x32xbf16>, vector<32x32xbf16>, vector<8x32xf32> -> vector<8x32xf32>
    %14 = arith.index_cast %c0_i32 : i32 to index
    %c0_11 = arith.constant 0 : index
    %c0_12 = arith.constant 0 : index
    %15 = vector.load %arg4[%14, %c0_11, %c0_12] : memref<2x1x32xf32, #tpu.memory_space<vmem>>, vector<1x1x32xf32>
    %16 = vector.shape_cast %15 : vector<1x1x32xf32> to vector<1x32xf32>
    %17 = vector.broadcast %16 : vector<1x32xf32> to vector<8x32xf32>
    %18 = arith.addf %13, %17 : vector<8x32xf32>
    %cst_13 = arith.constant dense<0.000000e+00> : vector<8x32xf32>
    %19 = tpu.matmul %0, %9, %cst_13 {dimension_numbers = #tpu.dot_dimension_numbers<[1], [0], [0], [1], [0, 0, 1, 1], [], []>} : vector<8x32xbf16>, vector<32x32xbf16>, vector<8x32xf32> -> vector<8x32xf32>
    %20 = arith.index_cast %c0_i32 : i32 to index
    %c0_14 = arith.constant 0 : index
    %c0_15 = arith.constant 0 : index
    %21 = vector.load %arg6[%20, %c0_14, %c0_15] : memref<2x1x32xf32, #tpu.memory_space<vmem>>, vector<1x1x32xf32>
    %22 = vector.shape_cast %21 : vector<1x1x32xf32> to vector<1x32xf32>
    %23 = vector.broadcast %22 : vector<1x32xf32> to vector<8x32xf32>
    %24 = arith.addf %19, %23 : vector<8x32xf32>
    %25 = vector.shape_cast %18 : vector<8x32xf32> to vector<1x8x32xf32>
    %26 = arith.truncf %25 : vector<1x8x32xf32> to vector<1x8x32xbf16>
    %27 = vector.shape_cast %24 : vector<8x32xf32> to vector<1x8x32xf32>
    %28 = arith.truncf %27 : vector<1x8x32xf32> to vector<1x8x32xbf16>
    "tpu.trace_start"() <{level = 10 : i32, message = "bnr,bmr->bnm"}> : () -> ()
    %cst_16 = arith.constant dense<0.000000e+00> : vector<1x8x8xf32>
    %29 = tpu.matmul %26, %28, %cst_16 {dimension_numbers = #tpu.dot_dimension_numbers<[2], [2], [1], [1], [0, 0, 0, 1, 1, 1], [0], [0]>} : vector<1x8x32xbf16>, vector<1x8x32xbf16>, vector<1x8x8xf32> -> vector<1x8x8xf32>
    "tpu.trace_stop"() : () -> ()
    %30 = arith.addf %29, %1 : vector<1x8x8xf32>
    %cst_17 = arith.constant dense<0xFF800000> : vector<1x8xf32>
    %31 = vector.multi_reduction <maximumf>, %30, %cst_17 [2] : vector<1x8x8xf32> to vector<1x8xf32>
    %32 = vector.shape_cast %31 : vector<1x8xf32> to vector<1x8x1xf32>
    %33 = vector.broadcast %32 : vector<1x8x1xf32> to vector<1x8x8xf32>
    %34 = arith.subf %30, %33 : vector<1x8x8xf32>
    %35 = math.exp %34 : vector<1x8x8xf32>
    %cst_18 = arith.constant dense<0.000000e+00> : vector<1x8xf32>
    %36 = vector.multi_reduction <add>, %35, %cst_18 [2] : vector<1x8x8xf32> to vector<1x8xf32>
    %37 = vector.shape_cast %36 : vector<1x8xf32> to vector<1x8x1xf32>
    %38 = vector.broadcast %37 : vector<1x8x1xf32> to vector<1x8x8xf32>
    %39 = arith.divf %35, %38 : vector<1x8x8xf32>
    %c1_i32 = arith.constant 1 : i32
    %40 = arith.cmpi eq, %c0_i32, %c1_i32 : i32
    %41 = arith.extui %40 : i1 to i32
    %c0_i32_19 = arith.constant 0 : i32
    %42 = arith.cmpi ne, %41, %c0_i32_19 : i32
    scf.if %42 {
      %cst_64 = arith.constant 0.000000e+00 : f32
      %155 = vector.broadcast %cst_64 : f32 to vector<1x8x120xf32>
      %156 = tpu.concatenate %39, %155 in 2 : vector<1x8x8xf32>, vector<1x8x120xf32> -> vector<1x8x128xf32>
      %c0_65 = arith.constant 0 : index
      %c0_66 = arith.constant 0 : index
      %c0_67 = arith.constant 0 : index
      %157 = vector.load %arg11[%c0_65, %c0_66, %c0_67] : memref<1x8x128xf32, #tpu.memory_space<vmem>>, vector<1x8x128xf32>
      tpu.vector_store %arg11[%c0_65, %c0_66, %c0_67], %156 {strides = array<i32>} : memref<1x8x128xf32, #tpu.memory_space<vmem>>, vector<1x8x128xf32>,
    } else {
    }
    %43 = arith.truncf %39 : vector<1x8x8xf32> to vector<1x8x8xbf16>
    "tpu.trace_start"() <{level = 10 : i32, message = "bnm,bmf->bnf"}> : () -> ()
    %cst_20 = arith.constant dense<0.000000e+00> : vector<1x8x32xf32>
    %44 = tpu.matmul %43, %2, %cst_20 {dimension_numbers = #tpu.dot_dimension_numbers<[2], [1], [1], [2], [0, 0, 0, 1, 1, 2], [0], [0]>} : vector<1x8x8xbf16>, vector<1x8x32xbf16>, vector<1x8x32xf32> -> vector<1x8x32xf32>
    "tpu.trace_stop"() : () -> ()
    %45 = vector.shape_cast %44 : vector<1x8x32xf32> to vector<8x32xf32>
    %46 = arith.truncf %45 : vector<8x32xf32> to vector<8x32xbf16>
    %cst_21 = arith.constant dense<0.000000e+00> : vector<8x32xf32>
    %47 = tpu.matmul %46, %12, %cst_21 {dimension_numbers = #tpu.dot_dimension_numbers<[1], [0], [0], [1], [0, 0, 1, 1], [], []>} : vector<8x32xbf16>, vector<32x32xbf16>, vector<8x32xf32> -> vector<8x32xf32>
    %cst_22 = arith.constant dense<0.000000e+00> : vector<8xf32>
    %48 = vector.multi_reduction <add>, %47, %cst_22 [1] : vector<8x32xf32> to vector<8xf32>
    %49 = vector.shape_cast %48 : vector<8xf32> to vector<8x1xf32>
    %cst_23 = arith.constant 3.200000e+01 : f32
    %50 = vector.broadcast %cst_23 : f32 to vector<8x1xf32>
    %51 = arith.divf %49, %50 : vector<8x1xf32>
    %52 = vector.broadcast %51 : vector<8x1xf32> to vector<8x32xf32>
    %53 = arith.subf %47, %52 : vector<8x32xf32>
    %54 = arith.mulf %53, %53 : vector<8x32xf32>
    %cst_24 = arith.constant dense<0.000000e+00> : vector<8xf32>
    %55 = vector.multi_reduction <add>, %54, %cst_24 [1] : vector<8x32xf32> to vector<8xf32>
    %56 = vector.shape_cast %55 : vector<8xf32> to vector<8x1xf32>
    %cst_25 = arith.constant 3.200000e+01 : f32
    %57 = vector.broadcast %cst_25 : f32 to vector<8x1xf32>
    %58 = arith.divf %56, %57 : vector<8x1xf32>
    %59 = vector.broadcast %51 : vector<8x1xf32> to vector<8x32xf32>
    %60 = arith.subf %47, %59 : vector<8x32xf32>
    %cst_26 = arith.constant 9.99999974E-6 : f32
    %61 = vector.broadcast %cst_26 : f32 to vector<8x1xf32>
    %62 = arith.addf %58, %61 : vector<8x1xf32>
    %63 = math.rsqrt %62 : vector<8x1xf32>
    %64 = vector.broadcast %63 : vector<8x1xf32> to vector<8x32xf32>
    %65 = arith.mulf %60, %64 : vector<8x32xf32>
    %66 = arith.index_cast %c0_i32 : i32 to index
    %c0_27 = arith.constant 0 : index
    %c0_28 = arith.constant 0 : index
    %67 = vector.load %arg8[%66, %c0_27, %c0_28] : memref<2x1x32xf32, #tpu.memory_space<vmem>>, vector<1x1x32xf32>
    %68 = vector.shape_cast %67 : vector<1x1x32xf32> to vector<1x32xf32>
    %69 = vector.broadcast %68 : vector<1x32xf32> to vector<8x32xf32>
    %70 = arith.mulf %65, %69 : vector<8x32xf32>
    %71 = arith.index_cast %c0_i32 : i32 to index
    %c0_29 = arith.constant 0 : index
    %c0_30 = arith.constant 0 : index
    %72 = vector.load %arg9[%71, %c0_29, %c0_30] : memref<2x1x32xf32, #tpu.memory_space<vmem>>, vector<1x1x32xf32>
    %73 = vector.shape_cast %72 : vector<1x1x32xf32> to vector<1x32xf32>
    %74 = vector.broadcast %73 : vector<1x32xf32> to vector<8x32xf32>
    %75 = arith.addf %70, %74 : vector<8x32xf32>
    %cst_31 = arith.constant 0.000000e+00 : f32
    %76 = vector.broadcast %cst_31 : f32 to vector<8x32xf32>
    %77 = arith.maximumf %75, %76 : vector<8x32xf32>
    %78 = arith.addf %3, %77 : vector<8x32xf32>
    %c1_i32_32 = arith.constant 1 : i32
    %79 = arith.index_cast %c1_i32_32 : i32 to index
    %c0_33 = arith.constant 0 : index
    %c0_34 = arith.constant 0 : index
    %80 = vector.load %arg3[%79, %c0_33, %c0_34] : memref<2x32x32xbf16, #tpu.memory_space<vmem>>, vector<1x32x32xbf16>
    %81 = vector.shape_cast %80 : vector<1x32x32xbf16> to vector<32x32xbf16>
    %82 = arith.index_cast %c1_i32_32 : i32 to index
    %c0_35 = arith.constant 0 : index
    %c0_36 = arith.constant 0 : index
    %83 = vector.load %arg5[%82, %c0_35, %c0_36] : memref<2x32x32xbf16, #tpu.memory_space<vmem>>, vector<1x32x32xbf16>
    %84 = vector.shape_cast %83 : vector<1x32x32xbf16> to vector<32x32xbf16>
    %85 = arith.index_cast %c1_i32_32 : i32 to index
    %c0_37 = arith.constant 0 : index
    %c0_38 = arith.constant 0 : index
    %86 = vector.load %arg7[%85, %c0_37, %c0_38] : memref<2x32x32xbf16, #tpu.memory_space<vmem>>, vector<1x32x32xbf16>
    %87 = vector.shape_cast %86 : vector<1x32x32xbf16> to vector<32x32xbf16>
    %cst_39 = arith.constant dense<0.000000e+00> : vector<8x32xf32>
    %88 = tpu.matmul %0, %81, %cst_39 {dimension_numbers = #tpu.dot_dimension_numbers<[1], [0], [0], [1], [0, 0, 1, 1], [], []>} : vector<8x32xbf16>, vector<32x32xbf16>, vector<8x32xf32> -> vector<8x32xf32>
    %89 = arith.index_cast %c1_i32_32 : i32 to index
    %c0_40 = arith.constant 0 : index
    %c0_41 = arith.constant 0 : index
    %90 = vector.load %arg4[%89, %c0_40, %c0_41] : memref<2x1x32xf32, #tpu.memory_space<vmem>>, vector<1x1x32xf32>
    %91 = vector.shape_cast %90 : vector<1x1x32xf32> to vector<1x32xf32>
    %92 = vector.broadcast %91 : vector<1x32xf32> to vector<8x32xf32>
    %93 = arith.addf %88, %92 : vector<8x32xf32>
    %cst_42 = arith.constant dense<0.000000e+00> : vector<8x32xf32>
    %94 = tpu.matmul %0, %84, %cst_42 {dimension_numbers = #tpu.dot_dimension_numbers<[1], [0], [0], [1], [0, 0, 1, 1], [], []>} : vector<8x32xbf16>, vector<32x32xbf16>, vector<8x32xf32> -> vector<8x32xf32>
    %95 = arith.index_cast %c1_i32_32 : i32 to index
    %c0_43 = arith.constant 0 : index
    %c0_44 = arith.constant 0 : index
    %96 = vector.load %arg6[%95, %c0_43, %c0_44] : memref<2x1x32xf32, #tpu.memory_space<vmem>>, vector<1x1x32xf32>
    %97 = vector.shape_cast %96 : vector<1x1x32xf32> to vector<1x32xf32>
    %98 = vector.broadcast %97 : vector<1x32xf32> to vector<8x32xf32>
    %99 = arith.addf %94, %98 : vector<8x32xf32>
    %100 = vector.shape_cast %93 : vector<8x32xf32> to vector<1x8x32xf32>
    %101 = arith.truncf %100 : vector<1x8x32xf32> to vector<1x8x32xbf16>
    %102 = vector.shape_cast %99 : vector<8x32xf32> to vector<1x8x32xf32>
    %103 = arith.truncf %102 : vector<1x8x32xf32> to vector<1x8x32xbf16>
    "tpu.trace_start"() <{level = 10 : i32, message = "bnr,bmr->bnm"}> : () -> ()
    %cst_45 = arith.constant dense<0.000000e+00> : vector<1x8x8xf32>
    %104 = tpu.matmul %101, %103, %cst_45 {dimension_numbers = #tpu.dot_dimension_numbers<[2], [2], [1], [1], [0, 0, 0, 1, 1, 1], [0], [0]>} : vector<1x8x32xbf16>, vector<1x8x32xbf16>, vector<1x8x8xf32> -> vector<1x8x8xf32>
    "tpu.trace_stop"() : () -> ()
    %105 = arith.addf %104, %1 : vector<1x8x8xf32>
    %cst_46 = arith.constant dense<0xFF800000> : vector<1x8xf32>
    %106 = vector.multi_reduction <maximumf>, %105, %cst_46 [2] : vector<1x8x8xf32> to vector<1x8xf32>
    %107 = vector.shape_cast %106 : vector<1x8xf32> to vector<1x8x1xf32>
    %108 = vector.broadcast %107 : vector<1x8x1xf32> to vector<1x8x8xf32>
    %109 = arith.subf %105, %108 : vector<1x8x8xf32>
    %110 = math.exp %109 : vector<1x8x8xf32>
    %cst_47 = arith.constant dense<0.000000e+00> : vector<1x8xf32>
    %111 = vector.multi_reduction <add>, %110, %cst_47 [2] : vector<1x8x8xf32> to vector<1x8xf32>
    %112 = vector.shape_cast %111 : vector<1x8xf32> to vector<1x8x1xf32>
    %113 = vector.broadcast %112 : vector<1x8x1xf32> to vector<1x8x8xf32>
    %114 = arith.divf %110, %113 : vector<1x8x8xf32>
    %c1_i32_48 = arith.constant 1 : i32
    %115 = arith.cmpi eq, %c1_i32_32, %c1_i32_48 : i32
    %116 = arith.extui %115 : i1 to i32
    %c0_i32_49 = arith.constant 0 : i32
    %117 = arith.cmpi ne, %116, %c0_i32_49 : i32
    scf.if %117 {
      %cst_64 = arith.constant 0.000000e+00 : f32
      %155 = vector.broadcast %cst_64 : f32 to vector<1x8x120xf32>
      %156 = tpu.concatenate %114, %155 in 2 : vector<1x8x8xf32>, vector<1x8x120xf32> -> vector<1x8x128xf32>
      %c0_65 = arith.constant 0 : index
      %c0_66 = arith.constant 0 : index
      %c0_67 = arith.constant 0 : index
      %157 = vector.load %arg11[%c0_65, %c0_66, %c0_67] : memref<1x8x128xf32, #tpu.memory_space<vmem>>, vector<1x8x128xf32>
      tpu.vector_store %arg11[%c0_65, %c0_66, %c0_67], %156 {strides = array<i32>} : memref<1x8x128xf32, #tpu.memory_space<vmem>>, vector<1x8x128xf32>,
    } else {
    }
    %118 = arith.truncf %114 : vector<1x8x8xf32> to vector<1x8x8xbf16>
    "tpu.trace_start"() <{level = 10 : i32, message = "bnm,bmf->bnf"}> : () -> ()
    %cst_50 = arith.constant dense<0.000000e+00> : vector<1x8x32xf32>
    %119 = tpu.matmul %118, %2, %cst_50 {dimension_numbers = #tpu.dot_dimension_numbers<[2], [1], [1], [2], [0, 0, 0, 1, 1, 2], [0], [0]>} : vector<1x8x8xbf16>, vector<1x8x32xbf16>, vector<1x8x32xf32> -> vector<1x8x32xf32>
    "tpu.trace_stop"() : () -> ()
    %120 = vector.shape_cast %119 : vector<1x8x32xf32> to vector<8x32xf32>
    %121 = arith.truncf %120 : vector<8x32xf32> to vector<8x32xbf16>
    %cst_51 = arith.constant dense<0.000000e+00> : vector<8x32xf32>
    %122 = tpu.matmul %121, %87, %cst_51 {dimension_numbers = #tpu.dot_dimension_numbers<[1], [0], [0], [1], [0, 0, 1, 1], [], []>} : vector<8x32xbf16>, vector<32x32xbf16>, vector<8x32xf32> -> vector<8x32xf32>
    %cst_52 = arith.constant dense<0.000000e+00> : vector<8xf32>
    %123 = vector.multi_reduction <add>, %122, %cst_52 [1] : vector<8x32xf32> to vector<8xf32>
    %124 = vector.shape_cast %123 : vector<8xf32> to vector<8x1xf32>
    %cst_53 = arith.constant 3.200000e+01 : f32
    %125 = vector.broadcast %cst_53 : f32 to vector<8x1xf32>
    %126 = arith.divf %124, %125 : vector<8x1xf32>
    %127 = vector.broadcast %126 : vector<8x1xf32> to vector<8x32xf32>
    %128 = arith.subf %122, %127 : vector<8x32xf32>
    %129 = arith.mulf %128, %128 : vector<8x32xf32>
    %cst_54 = arith.constant dense<0.000000e+00> : vector<8xf32>
    %130 = vector.multi_reduction <add>, %129, %cst_54 [1] : vector<8x32xf32> to vector<8xf32>
    %131 = vector.shape_cast %130 : vector<8xf32> to vector<8x1xf32>
    %cst_55 = arith.constant 3.200000e+01 : f32
    %132 = vector.broadcast %cst_55 : f32 to vector<8x1xf32>
    %133 = arith.divf %131, %132 : vector<8x1xf32>
    %134 = vector.broadcast %126 : vector<8x1xf32> to vector<8x32xf32>
    %135 = arith.subf %122, %134 : vector<8x32xf32>
    %cst_56 = arith.constant 9.99999974E-6 : f32
    %136 = vector.broadcast %cst_56 : f32 to vector<8x1xf32>
    %137 = arith.addf %133, %136 : vector<8x1xf32>
    %138 = math.rsqrt %137 : vector<8x1xf32>
    %139 = vector.broadcast %138 : vector<8x1xf32> to vector<8x32xf32>
    %140 = arith.mulf %135, %139 : vector<8x32xf32>
    %141 = arith.index_cast %c1_i32_32 : i32 to index
    %c0_57 = arith.constant 0 : index
    %c0_58 = arith.constant 0 : index
    %142 = vector.load %arg8[%141, %c0_57, %c0_58] : memref<2x1x32xf32, #tpu.memory_space<vmem>>, vector<1x1x32xf32>
    %143 = vector.shape_cast %142 : vector<1x1x32xf32> to vector<1x32xf32>
    %144 = vector.broadcast %143 : vector<1x32xf32> to vector<8x32xf32>
    %145 = arith.mulf %140, %144 : vector<8x32xf32>
    %146 = arith.index_cast %c1_i32_32 : i32 to index
    %c0_59 = arith.constant 0 : index
    %c0_60 = arith.constant 0 : index
    %147 = vector.load %arg9[%146, %c0_59, %c0_60] : memref<2x1x32xf32, #tpu.memory_space<vmem>>, vector<1x1x32xf32>
    %148 = vector.shape_cast %147 : vector<1x1x32xf32> to vector<1x32xf32>
    %149 = vector.broadcast %148 : vector<1x32xf32> to vector<8x32xf32>
    %150 = arith.addf %145, %149 : vector<8x32xf32>
    %cst_61 = arith.constant 0.000000e+00 : f32
    %151 = vector.broadcast %cst_61 : f32 to vector<8x32xf32>
    %152 = arith.maximumf %150, %151 : vector<8x32xf32>
    %153 = arith.addf %78, %152 : vector<8x32xf32>
    %c2_i32 = arith.constant 2 : i32
    %c0_62 = arith.constant 0 : index
    %c0_63 = arith.constant 0 : index
    %154 = vector.load %arg10[%c0_62, %c0_63] : memref<8x32xf32, #tpu.memory_space<vmem>>, vector<8x32xf32>
    tpu.vector_store %arg10[%c0_62, %c0_63], %153 {strides = array<i32>} : memref<8x32xf32, #tpu.memory_space<vmem>>, vector<8x32xf32>,
    return
  }
  func.func @transform_0(%arg0: i32) -> (i32, i32) {
    %c0_i32 = arith.constant 0 : i32
    %c0_i32_0 = arith.constant 0 : i32
    return %arg0, %c0_i32 : i32, i32
  }
  func.func @transform_1(%arg0: i32) -> (i32, i32, i32) {
    %c0_i32 = arith.constant 0 : i32
    %c0_i32_0 = arith.constant 0 : i32
    %c0_i32_1 = arith.constant 0 : i32
    return %arg0, %c0_i32, %c0_i32_0 : i32, i32, i32
  }
  func.func @transform_2(%arg0: i32) -> (i32, i32, i32) {
    %c0_i32 = arith.constant 0 : i32
    %c0_i32_0 = arith.constant 0 : i32
    %c0_i32_1 = arith.constant 0 : i32
    %c0_i32_2 = arith.constant 0 : i32
    return %c0_i32, %c0_i32_0, %c0_i32_1 : i32, i32, i32
  }
  func.func @transform_3(%arg0: i32) -> (i32, i32, i32) {
    %c0_i32 = arith.constant 0 : i32
    %c0_i32_0 = arith.constant 0 : i32
    %c0_i32_1 = arith.constant 0 : i32
    %c0_i32_2 = arith.constant 0 : i32
    return %c0_i32, %c0_i32_0, %c0_i32_1 : i32, i32, i32
  }
  func.func @transform_4(%arg0: i32) -> (i32, i32, i32) {
    %c0_i32 = arith.constant 0 : i32
    %c0_i32_0 = arith.constant 0 : i32
    %c0_i32_1 = arith.constant 0 : i32
    %c0_i32_2 = arith.constant 0 : i32
    return %c0_i32, %c0_i32_0, %c0_i32_1 : i32, i32, i32
  }
  func.func @transform_5(%arg0: i32) -> (i32, i32, i32) {
    %c0_i32 = arith.constant 0 : i32
    %c0_i32_0 = arith.constant 0 : i32
    %c0_i32_1 = arith.constant 0 : i32
    %c0_i32_2 = arith.constant 0 : i32
    return %c0_i32, %c0_i32_0, %c0_i32_1 : i32, i32, i32
  }
  func.func @transform_6(%arg0: i32) -> (i32, i32, i32) {
    %c0_i32 = arith.constant 0 : i32
    %c0_i32_0 = arith.constant 0 : i32
    %c0_i32_1 = arith.constant 0 : i32
    %c0_i32_2 = arith.constant 0 : i32
    return %c0_i32, %c0_i32_0, %c0_i32_1 : i32, i32, i32
  }
  func.func @transform_7(%arg0: i32) -> (i32, i32, i32) {
    %c0_i32 = arith.constant 0 : i32
    %c0_i32_0 = arith.constant 0 : i32
    %c0_i32_1 = arith.constant 0 : i32
    %c0_i32_2 = arith.constant 0 : i32
    return %c0_i32, %c0_i32_0, %c0_i32_1 : i32, i32, i32
  }
  func.func @transform_8(%arg0: i32) -> (i32, i32, i32) {
    %c0_i32 = arith.constant 0 : i32
    %c0_i32_0 = arith.constant 0 : i32
    %c0_i32_1 = arith.constant 0 : i32
    %c0_i32_2 = arith.constant 0 : i32
    return %c0_i32, %c0_i32_0, %c0_i32_1 : i32, i32, i32
  }
  func.func @transform_9(%arg0: i32) -> (i32, i32) {
    %c0_i32 = arith.constant 0 : i32
    %c0_i32_0 = arith.constant 0 : i32
    return %arg0, %c0_i32 : i32, i32
  }
  func.func @transform_10(%arg0: i32) -> (i32, i32, i32) {
    %c0_i32 = arith.constant 0 : i32
    %c0_i32_0 = arith.constant 0 : i32
    %c0_i32_1 = arith.constant 0 : i32
    return %arg0, %c0_i32, %c0_i32_0 : i32, i32, i32
  }
}

module attributes {stable_mosaic.version = 11 : i64} {
  func.func @_gcn_kernel(%arg0: i32, %arg1: memref<8x32xbf16, #tpu.memory_space<vmem>>, %arg2: memref<1x8x8xf32, #tpu.memory_space<vmem>>, %arg3: memref<2x32x32xbf16, #tpu.memory_space<vmem>>, %arg4: memref<2x1x32xf32, #tpu.memory_space<vmem>>, %arg5: memref<2x32x32xbf16, #tpu.memory_space<vmem>>, %arg6: memref<2x1x32xf32, #tpu.memory_space<vmem>>, %arg7: memref<2x32x32xbf16, #tpu.memory_space<vmem>>, %arg8: memref<2x1x32xf32, #tpu.memory_space<vmem>>, %arg9: memref<2x1x32xf32, #tpu.memory_space<vmem>>, %arg10: memref<8x32xf32, #tpu.memory_space<vmem>>, %arg11: memref<1x8x128xf32, #tpu.memory_space<vmem>>) attributes {dimension_semantics = [#tpu.dimension_semantics<parallel>], iteration_bounds = array<i64: 2>, scalar_prefetch = 0 : i64, scratch_operands = 0 : i64, tpu.core_type = #tpu.core_type<tc>, window_params = [{transform_indices = @transform_0, window_bounds = array<i64: 8, 32>}, {transform_indices = @transform_1, window_bounds = array<i64: 1, 8, 8>}, {pipeline_mode = #tpu.pipeline_mode<synchronous>, transform_indices = @transform_2, window_bounds = array<i64: 2, 32, 32>}, {pipeline_mode = #tpu.pipeline_mode<synchronous>, transform_indices = @transform_3, window_bounds = array<i64: 2, 1, 32>}, {pipeline_mode = #tpu.pipeline_mode<synchronous>, transform_indices = @transform_4, window_bounds = array<i64: 2, 32, 32>}, {pipeline_mode = #tpu.pipeline_mode<synchronous>, transform_indices = @transform_5, window_bounds = array<i64: 2, 1, 32>}, {pipeline_mode = #tpu.pipeline_mode<synchronous>, transform_indices = @transform_6, window_bounds = array<i64: 2, 32, 32>}, {pipeline_mode = #tpu.pipeline_mode<synchronous>, transform_indices = @transform_7, window_bounds = array<i64: 2, 1, 32>}, {pipeline_mode = #tpu.pipeline_mode<synchronous>, transform_indices = @transform_8, window_bounds = array<i64: 2, 1, 32>}, {transform_indices = @transform_9, window_bounds = array<i64: 8, 32>}, {transform_indices = @transform_10, window_bounds = array<i64: 1, 8, 128>}]} {
    %c0 = arith.constant 0 : index
    %c0_0 = arith.constant 0 : index
    %0 = vector.load %arg1[%c0, %c0_0] : memref<8x32xbf16, #tpu.memory_space<vmem>>, vector<8x32xbf16>
    %c0_1 = arith.constant 0 : index
    %c0_2 = arith.constant 0 : index
    %c0_3 = arith.constant 0 : index
    %1 = vector.load %arg2[%c0_1, %c0_2, %c0_3] : memref<1x8x8xf32, #tpu.memory_space<vmem>>, vector<1x8x8xf32>
    %2 = vector.shape_cast %0 : vector<8x32xbf16> to vector<1x8x32xbf16>
    %cst = arith.constant 0.000000e+00 : f32
    %3 = vector.broadcast %cst : f32 to vector<8x32xf32>
    %c0_i32 = arith.constant 0 : i32
    %4 = arith.index_cast %c0_i32 : i32 to index
    %c0_4 = arith.constant 0 : index
    %c0_5 = arith.constant 0 : index
    %5 = vector.load %arg3[%4, %c0_4, %c0_5] : memref<2x32x32xbf16, #tpu.memory_space<vmem>>, vector<1x32x32xbf16>
    %6 = vector.shape_cast %5 : vector<1x32x32xbf16> to vector<32x32xbf16>
    %7 = arith.index_cast %c0_i32 : i32 to index
    %c0_6 = arith.constant 0 : index
    %c0_7 = arith.constant 0 : index
    %8 = vector.load %arg5[%7, %c0_6, %c0_7] : memref<2x32x32xbf16, #tpu.memory_space<vmem>>, vector<1x32x32xbf16>
    %9 = vector.shape_cast %8 : vector<1x32x32xbf16> to vector<32x32xbf16>
    %10 = arith.index_cast %c0_i32 : i32 to index
    %c0_8 = arith.constant 0 : index
    %c0_9 = arith.constant 0 : index
    %11 = vector.load %arg7[%10, %c0_8, %c0_9] : memref<2x32x32xbf16, #tpu.memory_space<vmem>>, vector<1x32x32xbf16>
    %12 = vector.shape_cast %11 : vector<1x32x32xbf16> to vector<32x32xbf16>
    %cst_10 = arith.constant dense<0.000000e+00> : vector<8x32xf32>
    %13 = tpu.matmul %0, %6, %cst_10 {dimension_numbers = #tpu.dot_dimension_numbers<[1], [0], [0], [1], [0, 0, 1, 1], [], []>} : vector<8x32xbf16>, vector<32x32xbf16>, vector<8x32xf32> -> vector<8x32xf32>
    %14 = arith.index_cast %c0_i32 : i32 to index
    %c0_11 = arith.constant 0 : index
    %c0_12 = arith.constant 0 : index
    %15 = vector.load %arg4[%14, %c0_11, %c0_12] : memref<2x1x32xf32, #tpu.memory_space<vmem>>, vector<1x1x32xf32>
    %16 = vector.shape_cast %15 : vector<1x1x32xf32> to vector<1x32xf32>
    %17 = vector.broadcast %16 : vector<1x32xf32> to vector<8x32xf32>
    %18 = arith.addf %13, %17 : vector<8x32xf32>
    %cst_13 = arith.constant dense<0.000000e+00> : vector<8x32xf32>
    %19 = tpu.matmul %0, %9, %cst_13 {dimension_numbers = #tpu.dot_dimension_numbers<[1], [0], [0], [1], [0, 0, 1, 1], [], []>} : vector<8x32xbf16>, vector<32x32xbf16>, vector<8x32xf32> -> vector<8x32xf32>
    %20 = arith.index_cast %c0_i32 : i32 to index
    %c0_14 = arith.constant 0 : index
    %c0_15 = arith.constant 0 : index
    %21 = vector.load %arg6[%20, %c0_14, %c0_15] : memref<2x1x32xf32, #tpu.memory_space<vmem>>, vector<1x1x32xf32>
    %22 = vector.shape_cast %21 : vector<1x1x32xf32> to vector<1x32xf32>
    %23 = vector.broadcast %22 : vector<1x32xf32> to vector<8x32xf32>
    %24 = arith.addf %19, %23 : vector<8x32xf32>
    %25 = vector.shape_cast %18 : vector<8x32xf32> to vector<1x8x32xf32>
    %26 = arith.truncf %25 : vector<1x8x32xf32> to vector<1x8x32xbf16>
    %27 = vector.shape_cast %24 : vector<8x32xf32> to vector<1x8x32xf32>
    %28 = arith.truncf %27 : vector<1x8x32xf32> to vector<1x8x32xbf16>
    "tpu.trace_start"() <{level = 10 : i32, message = "bnr,bmr->bnm"}> : () -> ()
    %cst_16 = arith.constant dense<0.000000e+00> : vector<1x8x8xf32>
    %29 = tpu.matmul %26, %28, %cst_16 {dimension_numbers = #tpu.dot_dimension_numbers<[2], [2], [1], [1], [0, 0, 0, 1, 1, 1], [0], [0]>} : vector<1x8x32xbf16>, vector<1x8x32xbf16>, vector<1x8x8xf32> -> vector<1x8x8xf32>
    "tpu.trace_stop"() : () -> ()
    %30 = arith.addf %29, %1 : vector<1x8x8xf32>
    %cst_17 = arith.constant dense<0xFF800000> : vector<1x8xf32>
    %31 = vector.multi_reduction <maximumf>, %30, %cst_17 [2] : vector<1x8x8xf32> to vector<1x8xf32>
    %32 = vector.shape_cast %31 : vector<1x8xf32> to vector<1x8x1xf32>
    %33 = vector.broadcast %32 : vector<1x8x1xf32> to vector<1x8x8xf32>
    %34 = arith.subf %30, %33 : vector<1x8x8xf32>
    %35 = math.exp %34 : vector<1x8x8xf32>
    %cst_18 = arith.constant dense<0.000000e+00> : vector<1x8xf32>
    %36 = vector.multi_reduction <add>, %35, %cst_18 [2] : vector<1x8x8xf32> to vector<1x8xf32>
    %37 = vector.shape_cast %36 : vector<1x8xf32> to vector<1x8x1xf32>
    %38 = vector.broadcast %37 : vector<1x8x1xf32> to vector<1x8x8xf32>
    %39 = arith.divf %35, %38 : vector<1x8x8xf32>
    %c1_i32 = arith.constant 1 : i32
    %40 = arith.cmpi eq, %c0_i32, %c1_i32 : i32
    %41 = arith.extui %40 : i1 to i32
    %c0_i32_19 = arith.constant 0 : i32
    %42 = arith.cmpi ne, %41, %c0_i32_19 : i32
    scf.if %42 {
      %cst_64 = arith.constant 0.000000e+00 : f32
      %155 = vector.broadcast %cst_64 : f32 to vector<1x8x120xf32>
      %156 = tpu.concatenate %39, %155 in 2 : vector<1x8x8xf32>, vector<1x8x120xf32> -> vector<1x8x128xf32>
      %c0_65 = arith.constant 0 : index
      %c0_66 = arith.constant 0 : index
      %c0_67 = arith.constant 0 : index
      %157 = vector.load %arg11[%c0_65, %c0_66, %c0_67] : memref<1x8x128xf32, #tpu.memory_space<vmem>>, vector<1x8x128xf32>
      tpu.vector_store %arg11[%c0_65, %c0_66, %c0_67], %156 {strides = array<i32>} : memref<1x8x128xf32, #tpu.memory_space<vmem>>, vector<1x8x128xf32>,
    } else {
    }
    %43 = arith.truncf %39 : vector<1x8x8xf32> to vector<1x8x8xbf16>
    "tpu.trace_start"() <{level = 10 : i32, message = "bnm,bmf->bnf"}> : () -> ()
    %cst_20 = arith.constant dense<0.000000e+00> : vector<1x8x32xf32>
    %44 = tpu.matmul %43, %2, %cst_20 {dimension_numbers = #tpu.dot_dimension_numbers<[2], [1], [1], [2], [0, 0, 0, 1, 1, 2], [0], [0]>} : vector<1x8x8xbf16>, vector<1x8x32xbf16>, vector<1x8x32xf32> -> vector<1x8x32xf32>
    "tpu.trace_stop"() : () -> ()
    %45 = vector.shape_cast %44 : vector<1x8x32xf32> to vector<8x32xf32>
    %46 = arith.truncf %45 : vector<8x32xf32> to vector<8x32xbf16>
    %cst_21 = arith.constant dense<0.000000e+00> : vector<8x32xf32>
    %47 = tpu.matmul %46, %12, %cst_21 {dimension_numbers = #tpu.dot_dimension_numbers<[1], [0], [0], [1], [0, 0, 1, 1], [], []>} : vector<8x32xbf16>, vector<32x32xbf16>, vector<8x32xf32> -> vector<8x32xf32>
    %cst_22 = arith.constant dense<0.000000e+00> : vector<8xf32>
    %48 = vector.multi_reduction <add>, %47, %cst_22 [1] : vector<8x32xf32> to vector<8xf32>
    %49 = vector.shape_cast %48 : vector<8xf32> to vector<8x1xf32>
    %cst_23 = arith.constant 3.200000e+01 : f32
    %50 = vector.broadcast %cst_23 : f32 to vector<8x1xf32>
    %51 = arith.divf %49, %50 : vector<8x1xf32>
    %52 = vector.broadcast %51 : vector<8x1xf32> to vector<8x32xf32>
    %53 = arith.subf %47, %52 : vector<8x32xf32>
    %54 = arith.mulf %53, %53 : vector<8x32xf32>
    %cst_24 = arith.constant dense<0.000000e+00> : vector<8xf32>
    %55 = vector.multi_reduction <add>, %54, %cst_24 [1] : vector<8x32xf32> to vector<8xf32>
    %56 = vector.shape_cast %55 : vector<8xf32> to vector<8x1xf32>
    %cst_25 = arith.constant 3.200000e+01 : f32
    %57 = vector.broadcast %cst_25 : f32 to vector<8x1xf32>
    %58 = arith.divf %56, %57 : vector<8x1xf32>
    %59 = vector.broadcast %51 : vector<8x1xf32> to vector<8x32xf32>
    %60 = arith.subf %47, %59 : vector<8x32xf32>
    %cst_26 = arith.constant 9.99999974E-6 : f32
    %61 = vector.broadcast %cst_26 : f32 to vector<8x1xf32>
    %62 = arith.addf %58, %61 : vector<8x1xf32>
    %63 = math.rsqrt %62 : vector<8x1xf32>
    %64 = vector.broadcast %63 : vector<8x1xf32> to vector<8x32xf32>
    %65 = arith.mulf %60, %64 : vector<8x32xf32>
    %66 = arith.index_cast %c0_i32 : i32 to index
    %c0_27 = arith.constant 0 : index
    %c0_28 = arith.constant 0 : index
    %67 = vector.load %arg8[%66, %c0_27, %c0_28] : memref<2x1x32xf32, #tpu.memory_space<vmem>>, vector<1x1x32xf32>
    %68 = vector.shape_cast %67 : vector<1x1x32xf32> to vector<1x32xf32>
    %69 = vector.broadcast %68 : vector<1x32xf32> to vector<8x32xf32>
    %70 = arith.mulf %65, %69 : vector<8x32xf32>
    %71 = arith.index_cast %c0_i32 : i32 to index
    %c0_29 = arith.constant 0 : index
    %c0_30 = arith.constant 0 : index
    %72 = vector.load %arg9[%71, %c0_29, %c0_30] : memref<2x1x32xf32, #tpu.memory_space<vmem>>, vector<1x1x32xf32>
    %73 = vector.shape_cast %72 : vector<1x1x32xf32> to vector<1x32xf32>
    %74 = vector.broadcast %73 : vector<1x32xf32> to vector<8x32xf32>
    %75 = arith.addf %70, %74 : vector<8x32xf32>
    %cst_31 = arith.constant 0.000000e+00 : f32
    %76 = vector.broadcast %cst_31 : f32 to vector<8x32xf32>
    %77 = arith.maximumf %75, %76 : vector<8x32xf32>
    %78 = arith.addf %3, %77 : vector<8x32xf32>
    %c1_i32_32 = arith.constant 1 : i32
    %79 = arith.index_cast %c1_i32_32 : i32 to index
    %c0_33 = arith.constant 0 : index
    %c0_34 = arith.constant 0 : index
    %80 = vector.load %arg3[%79, %c0_33, %c0_34] : memref<2x32x32xbf16, #tpu.memory_space<vmem>>, vector<1x32x32xbf16>
    %81 = vector.shape_cast %80 : vector<1x32x32xbf16> to vector<32x32xbf16>
    %82 = arith.index_cast %c1_i32_32 : i32 to index
    %c0_35 = arith.constant 0 : index
    %c0_36 = arith.constant 0 : index
    %83 = vector.load %arg5[%82, %c0_35, %c0_36] : memref<2x32x32xbf16, #tpu.memory_space<vmem>>, vector<1x32x32xbf16>
    %84 = vector.shape_cast %83 : vector<1x32x32xbf16> to vector<32x32xbf16>
    %85 = arith.index_cast %c1_i32_32 : i32 to index
    %c0_37 = arith.constant 0 : index
    %c0_38 = arith.constant 0 : index
    %86 = vector.load %arg7[%85, %c0_37, %c0_38] : memref<2x32x32xbf16, #tpu.memory_space<vmem>>, vector<1x32x32xbf16>
    %87 = vector.shape_cast %86 : vector<1x32x32xbf16> to vector<32x32xbf16>
    %cst_39 = arith.constant dense<0.000000e+00> : vector<8x32xf32>
    %88 = tpu.matmul %0, %81, %cst_39 {dimension_numbers = #tpu.dot_dimension_numbers<[1], [0], [0], [1], [0, 0, 1, 1], [], []>} : vector<8x32xbf16>, vector<32x32xbf16>, vector<8x32xf32> -> vector<8x32xf32>
    %89 = arith.index_cast %c1_i32_32 : i32 to index
    %c0_40 = arith.constant 0 : index
    %c0_41 = arith.constant 0 : index
    %90 = vector.load %arg4[%89, %c0_40, %c0_41] : memref<2x1x32xf32, #tpu.memory_space<vmem>>, vector<1x1x32xf32>
    %91 = vector.shape_cast %90 : vector<1x1x32xf32> to vector<1x32xf32>
    %92 = vector.broadcast %91 : vector<1x32xf32> to vector<8x32xf32>
    %93 = arith.addf %88, %92 : vector<8x32xf32>
    %cst_42 = arith.constant dense<0.000000e+00> : vector<8x32xf32>
    %94 = tpu.matmul %0, %84, %cst_42 {dimension_numbers = #tpu.dot_dimension_numbers<[1], [0], [0], [1], [0, 0, 1, 1], [], []>} : vector<8x32xbf16>, vector<32x32xbf16>, vector<8x32xf32> -> vector<8x32xf32>
    %95 = arith.index_cast %c1_i32_32 : i32 to index
    %c0_43 = arith.constant 0 : index
    %c0_44 = arith.constant 0 : index
    %96 = vector.load %arg6[%95, %c0_43, %c0_44] : memref<2x1x32xf32, #tpu.memory_space<vmem>>, vector<1x1x32xf32>
    %97 = vector.shape_cast %96 : vector<1x1x32xf32> to vector<1x32xf32>
    %98 = vector.broadcast %97 : vector<1x32xf32> to vector<8x32xf32>
    %99 = arith.addf %94, %98 : vector<8x32xf32>
    %100 = vector.shape_cast %93 : vector<8x32xf32> to vector<1x8x32xf32>
    %101 = arith.truncf %100 : vector<1x8x32xf32> to vector<1x8x32xbf16>
    %102 = vector.shape_cast %99 : vector<8x32xf32> to vector<1x8x32xf32>
    %103 = arith.truncf %102 : vector<1x8x32xf32> to vector<1x8x32xbf16>
    "tpu.trace_start"() <{level = 10 : i32, message = "bnr,bmr->bnm"}> : () -> ()
    %cst_45 = arith.constant dense<0.000000e+00> : vector<1x8x8xf32>
    %104 = tpu.matmul %101, %103, %cst_45 {dimension_numbers = #tpu.dot_dimension_numbers<[2], [2], [1], [1], [0, 0, 0, 1, 1, 1], [0], [0]>} : vector<1x8x32xbf16>, vector<1x8x32xbf16>, vector<1x8x8xf32> -> vector<1x8x8xf32>
    "tpu.trace_stop"() : () -> ()
    %105 = arith.addf %104, %1 : vector<1x8x8xf32>
    %cst_46 = arith.constant dense<0xFF800000> : vector<1x8xf32>
    %106 = vector.multi_reduction <maximumf>, %105, %cst_46 [2] : vector<1x8x8xf32> to vector<1x8xf32>
    %107 = vector.shape_cast %106 : vector<1x8xf32> to vector<1x8x1xf32>
    %108 = vector.broadcast %107 : vector<1x8x1xf32> to vector<1x8x8xf32>
    %109 = arith.subf %105, %108 : vector<1x8x8xf32>
    %110 = math.exp %109 : vector<1x8x8xf32>
    %cst_47 = arith.constant dense<0.000000e+00> : vector<1x8xf32>
    %111 = vector.multi_reduction <add>, %110, %cst_47 [2] : vector<1x8x8xf32> to vector<1x8xf32>
    %112 = vector.shape_cast %111 : vector<1x8xf32> to vector<1x8x1xf32>
    %113 = vector.broadcast %112 : vector<1x8x1xf32> to vector<1x8x8xf32>
    %114 = arith.divf %110, %113 : vector<1x8x8xf32>
    %c1_i32_48 = arith.constant 1 : i32
    %115 = arith.cmpi eq, %c1_i32_32, %c1_i32_48 : i32
    %116 = arith.extui %115 : i1 to i32
    %c0_i32_49 = arith.constant 0 : i32
    %117 = arith.cmpi ne, %116, %c0_i32_49 : i32
    scf.if %117 {
      %cst_64 = arith.constant 0.000000e+00 : f32
      %155 = vector.broadcast %cst_64 : f32 to vector<1x8x120xf32>
      %156 = tpu.concatenate %114, %155 in 2 : vector<1x8x8xf32>, vector<1x8x120xf32> -> vector<1x8x128xf32>
      %c0_65 = arith.constant 0 : index
      %c0_66 = arith.constant 0 : index
      %c0_67 = arith.constant 0 : index
      %157 = vector.load %arg11[%c0_65, %c0_66, %c0_67] : memref<1x8x128xf32, #tpu.memory_space<vmem>>, vector<1x8x128xf32>
      tpu.vector_store %arg11[%c0_65, %c0_66, %c0_67], %156 {strides = array<i32>} : memref<1x8x128xf32, #tpu.memory_space<vmem>>, vector<1x8x128xf32>,
    } else {
    }
    %118 = arith.truncf %114 : vector<1x8x8xf32> to vector<1x8x8xbf16>
    "tpu.trace_start"() <{level = 10 : i32, message = "bnm,bmf->bnf"}> : () -> ()
    %cst_50 = arith.constant dense<0.000000e+00> : vector<1x8x32xf32>
    %119 = tpu.matmul %118, %2, %cst_50 {dimension_numbers = #tpu.dot_dimension_numbers<[2], [1], [1], [2], [0, 0, 0, 1, 1, 2], [0], [0]>} : vector<1x8x8xbf16>, vector<1x8x32xbf16>, vector<1x8x32xf32> -> vector<1x8x32xf32>
    "tpu.trace_stop"() : () -> ()
    %120 = vector.shape_cast %119 : vector<1x8x32xf32> to vector<8x32xf32>
    %121 = arith.truncf %120 : vector<8x32xf32> to vector<8x32xbf16>
    %cst_51 = arith.constant dense<0.000000e+00> : vector<8x32xf32>
    %122 = tpu.matmul %121, %87, %cst_51 {dimension_numbers = #tpu.dot_dimension_numbers<[1], [0], [0], [1], [0, 0, 1, 1], [], []>} : vector<8x32xbf16>, vector<32x32xbf16>, vector<8x32xf32> -> vector<8x32xf32>
    %cst_52 = arith.constant dense<0.000000e+00> : vector<8xf32>
    %123 = vector.multi_reduction <add>, %122, %cst_52 [1] : vector<8x32xf32> to vector<8xf32>
    %124 = vector.shape_cast %123 : vector<8xf32> to vector<8x1xf32>
    %cst_53 = arith.constant 3.200000e+01 : f32
    %125 = vector.broadcast %cst_53 : f32 to vector<8x1xf32>
    %126 = arith.divf %124, %125 : vector<8x1xf32>
    %127 = vector.broadcast %126 : vector<8x1xf32> to vector<8x32xf32>
    %128 = arith.subf %122, %127 : vector<8x32xf32>
    %129 = arith.mulf %128, %128 : vector<8x32xf32>
    %cst_54 = arith.constant dense<0.000000e+00> : vector<8xf32>
    %130 = vector.multi_reduction <add>, %129, %cst_54 [1] : vector<8x32xf32> to vector<8xf32>
    %131 = vector.shape_cast %130 : vector<8xf32> to vector<8x1xf32>
    %cst_55 = arith.constant 3.200000e+01 : f32
    %132 = vector.broadcast %cst_55 : f32 to vector<8x1xf32>
    %133 = arith.divf %131, %132 : vector<8x1xf32>
    %134 = vector.broadcast %126 : vector<8x1xf32> to vector<8x32xf32>
    %135 = arith.subf %122, %134 : vector<8x32xf32>
    %cst_56 = arith.constant 9.99999974E-6 : f32
    %136 = vector.broadcast %cst_56 : f32 to vector<8x1xf32>
    %137 = arith.addf %133, %136 : vector<8x1xf32>
    %138 = math.rsqrt %137 : vector<8x1xf32>
    %139 = vector.broadcast %138 : vector<8x1xf32> to vector<8x32xf32>
    %140 = arith.mulf %135, %139 : vector<8x32xf32>
    %141 = arith.index_cast %c1_i32_32 : i32 to index
    %c0_57 = arith.constant 0 : index
    %c0_58 = arith.constant 0 : index
    %142 = vector.load %arg8[%141, %c0_57, %c0_58] : memref<2x1x32xf32, #tpu.memory_space<vmem>>, vector<1x1x32xf32>
    %143 = vector.shape_cast %142 : vector<1x1x32xf32> to vector<1x32xf32>
    %144 = vector.broadcast %143 : vector<1x32xf32> to vector<8x32xf32>
    %145 = arith.mulf %140, %144 : vector<8x32xf32>
    %146 = arith.index_cast %c1_i32_32 : i32 to index
    %c0_59 = arith.constant 0 : index
    %c0_60 = arith.constant 0 : index
    %147 = vector.load %arg9[%146, %c0_59, %c0_60] : memref<2x1x32xf32, #tpu.memory_space<vmem>>, vector<1x1x32xf32>
    %148 = vector.shape_cast %147 : vector<1x1x32xf32> to vector<1x32xf32>
    %149 = vector.broadcast %148 : vector<1x32xf32> to vector<8x32xf32>
    %150 = arith.addf %145, %149 : vector<8x32xf32>
    %cst_61 = arith.constant 0.000000e+00 : f32
    %151 = vector.broadcast %cst_61 : f32 to vector<8x32xf32>
    %152 = arith.maximumf %150, %151 : vector<8x32xf32>
    %153 = arith.addf %78, %152 : vector<8x32xf32>
    %c2_i32 = arith.constant 2 : i32
    %c0_62 = arith.constant 0 : index
    %c0_63 = arith.constant 0 : index
    %154 = vector.load %arg10[%c0_62, %c0_63] : memref<8x32xf32, #tpu.memory_space<vmem>>, vector<8x32xf32>
    tpu.vector_store %arg10[%c0_62, %c0_63], %153 {strides = array<i32>} : memref<8x32xf32, #tpu.memory_space<vmem>>, vector<8x32xf32>,
    return
  }
  func.func @transform_0(%arg0: i32) -> (i32, i32) {
    %c0_i32 = arith.constant 0 : i32
    %c0_i32_0 = arith.constant 0 : i32
    return %arg0, %c0_i32 : i32, i32
  }
  func.func @transform_1(%arg0: i32) -> (i32, i32, i32) {
    %c0_i32 = arith.constant 0 : i32
    %c0_i32_0 = arith.constant 0 : i32
    %c0_i32_1 = arith.constant 0 : i32
    return %arg0, %c0_i32, %c0_i32_0 : i32, i32, i32
  }
  func.func @transform_2(%arg0: i32) -> (i32, i32, i32) {
    %c0_i32 = arith.constant 0 : i32
    %c0_i32_0 = arith.constant 0 : i32
    %c0_i32_1 = arith.constant 0 : i32
    %c0_i32_2 = arith.constant 0 : i32
    return %c0_i32, %c0_i32_0, %c0_i32_1 : i32, i32, i32
  }
  func.func @transform_3(%arg0: i32) -> (i32, i32, i32) {
    %c0_i32 = arith.constant 0 : i32
    %c0_i32_0 = arith.constant 0 : i32
    %c0_i32_1 = arith.constant 0 : i32
    %c0_i32_2 = arith.constant 0 : i32
    return %c0_i32, %c0_i32_0, %c0_i32_1 : i32, i32, i32
  }
  func.func @transform_4(%arg0: i32) -> (i32, i32, i32) {
    %c0_i32 = arith.constant 0 : i32
    %c0_i32_0 = arith.constant 0 : i32
    %c0_i32_1 = arith.constant 0 : i32
    %c0_i32_2 = arith.constant 0 : i32
    return %c0_i32, %c0_i32_0, %c0_i32_1 : i32, i32, i32
  }
  func.func @transform_5(%arg0: i32) -> (i32, i32, i32) {
    %c0_i32 = arith.constant 0 : i32
    %c0_i32_0 = arith.constant 0 : i32
    %c0_i32_1 = arith.constant 0 : i32
    %c0_i32_2 = arith.constant 0 : i32
    return %c0_i32, %c0_i32_0, %c0_i32_1 : i32, i32, i32
  }
  func.func @transform_6(%arg0: i32) -> (i32, i32, i32) {
    %c0_i32 = arith.constant 0 : i32
    %c0_i32_0 = arith.constant 0 : i32
    %c0_i32_1 = arith.constant 0 : i32
    %c0_i32_2 = arith.constant 0 : i32
    return %c0_i32, %c0_i32_0, %c0_i32_1 : i32, i32, i32
  }
  func.func @transform_7(%arg0: i32) -> (i32, i32, i32) {
    %c0_i32 = arith.constant 0 : i32
    %c0_i32_0 = arith.constant 0 : i32
    %c0_i32_1 = arith.constant 0 : i32
    %c0_i32_2 = arith.constant 0 : i32
    return %c0_i32, %c0_i32_0, %c0_i32_1 : i32, i32, i32
  }
  func.func @transform_8(%arg0: i32) -> (i32, i32, i32) {
    %c0_i32 = arith.constant 0 : i32
    %c0_i32_0 = arith.constant 0 : i32
    %c0_i32_1 = arith.constant 0 : i32
    %c0_i32_2 = arith.constant 0 : i32
    return %c0_i32, %c0_i32_0, %c0_i32_1 : i32, i32, i32
  }
  func.func @transform_9(%arg0: i32) -> (i32, i32) {
    %c0_i32 = arith.constant 0 : i32
    %c0_i32_0 = arith.constant 0 : i32
    return %arg0, %c0_i32 : i32, i32
  }
  func.func @transform_10(%arg0: i32) -> (i32, i32, i32) {
    %c0_i32 = arith.constant 0 : i32
    %c0_i32_0 = arith.constant 0 : i32
    %c0_i32_1 = arith.constant 0 : i32
    return %arg0, %c0_i32, %c0_i32_0 : i32, i32, i32
  }
}

</mosaic_0001>

<llo_original>
// kernel: tpu_custom_call.1
$region0: #{tpu_custom_call.1}
  #allocation0 [shape = 'u32[]', space=smem, size = 0x4, offset = 0x4, fixed_abs, tag = 'smem constant byte address 0x4 - core index']
  #allocation1 [shape = 'u32[144,128]{1,0:T(1,128)}', space=vmem, size = 0x12000, scoped, tag = 'internal scratch']
  %s0 = inlined_call_operand.hbm [shape: bf16[16,32], index: 0, kind: input, shape index: {}]
  %s1 = inlined_call_operand.hbm [shape: f32[2,8,8], index: 1, kind: input, shape index: {}]
  %s2 = inlined_call_operand.hbm [shape: bf16[2,32,32], index: 2, kind: input, shape index: {}]
  %s3 = inlined_call_operand.vmem [shape: f32[2,1,32], index: 3, kind: input, shape index: {}]
  %s4 = inlined_call_operand.hbm [shape: bf16[2,32,32], index: 4, kind: input, shape index: {}]
  %s5 = inlined_call_operand.vmem [shape: f32[2,1,32], index: 5, kind: input, shape index: {}]
  %s6 = inlined_call_operand.hbm [shape: bf16[2,32,32], index: 6, kind: input, shape index: {}]
  %s7 = inlined_call_operand.vmem [shape: f32[2,1,32], index: 7, kind: input, shape index: {}]
  %s8 = inlined_call_operand.vmem [shape: f32[2,1,32], index: 8, kind: input, shape index: {}]
  %s9 = inlined_call_operand.hbm [shape: f32[16,32], index: 9, kind: output, shape index: {0}]
  %s10 = inlined_call_operand.hbm [shape: f32[2,8,128], index: 10, kind: output, shape index: {1}]
  %11 = xla_tuple %s9, %s10
  %s12 = sld [smem:[#allocation0]]
  $region97: #{tpu_custom_call.1} parent=0
    _
  %s14 = ssub.s32 1, %s12
  %s15 = scalar_select 0, %s14, %s12
  $region1: #{tpu_custom_call.1} parent=0
    #allocation2 [shape = 'u8[4096]{0}', space=vmem, size = 0x1000, scoped, tag = 'input window, operand 0']
    #allocation3 [shape = 's32[2]{0}', space=sflag, size = 0x8, scoped, tag = 'scoped memory for tpu_custom_call.1']
    #allocation4 [shape = 's32[2]{0}', space=sflag, size = 0x8, scoped, tag = 'scoped memory for tpu_custom_call.1']
    #allocation5 [shape = 'u8[8192]{0}', space=vmem, size = 0x2000, scoped, tag = 'input window, operand 1']
    #allocation6 [shape = 's32[2]{0}', space=sflag, size = 0x8, scoped, tag = 'scoped memory for tpu_custom_call.1']
    #allocation7 [shape = 'u8[16384]{0}', space=vmem, size = 0x4000, scoped, tag = 'input window, operand 2, single buffered']
    #allocation8 [shape = 'u8[16384]{0}', space=vmem, size = 0x4000, scoped, tag = 'input window, operand 4, single buffered']
    #allocation9 [shape = 's32[1]{0}', space=sflag, size = 0x4, scoped, tag = 'scoped memory for tpu_custom_call.1']
    #allocation10 [shape = 'u8[16384]{0}', space=vmem, size = 0x4000, scoped, tag = 'input window, operand 6, single buffered']
    #allocation11 [shape = 'u8[8192]{0}', space=vmem, size = 0x2000, scoped, tag = 'output window, operand 0']
    #allocation12 [shape = 'u8[8192]{0}', space=vmem, size = 0x2000, scoped, tag = 'output window, operand 1']
    #allocation13 [shape = 's32[2]{0}', space=sflag, size = 0x8, scoped, tag = 'scoped memory for tpu_custom_call.1']
    %16 = vsyncpa [#allocation3], 0
    %s17 = scalar_lea.sflag [#allocation3], 1
    %18 = vsyncpa %s17, 0
    %19 = vsyncpa [#allocation6], 0
    %s20 = scalar_lea.sflag [#allocation6], 1
    %21 = vsyncpa %s20, 0
    %22 = vsyncpa [#allocation9], 0
    %23 = vsyncpa [#allocation4], 0
    %s24 = scalar_lea.sflag [#allocation4], 1
    %25 = vsyncpa %s24, 0
    %26 = vsyncpa [#allocation13], 0
    %s27 = scalar_lea.sflag [#allocation13], 1
    %28 = vsyncpa %s27, 0
    loop: start=0, step=1, limit=4
    $region2: #{tpu_custom_call.1} parent=1 // loop_pre_header
      _
    $region3: #{tpu_custom_call.1} parent=1 // loop_header
      %s30 = sphi 0, %s34
      %p31 = scmp.ge.s32.totalorder %s30, 4
      %s40 = sphi 0, %s42
      %s43 = sphi 0, %s40
      %s44 = sphi 0, %s43
      %s60 = sphi 0, %s44
      %s66 = sphi 0, %s68
      %s69 = sphi 0, %s66
      %s70 = sphi 0, %s69
      %s86 = sphi 0, %s70
      %s90 = sphi 0, %s90
      %s92 = sphi 0, %s90
      %s93 = sphi 0, %s92
      %s107 = sphi 0, %s93
      %s111 = sphi 0, %s111
      %s113 = sphi 0, %s111
      %s114 = sphi 0, %s113
      %s128 = sphi 0, %s114
      %s132 = sphi 0, %s132
      %s134 = sphi 0, %s132
      %s135 = sphi 0, %s134
      %s149 = sphi 0, %s135
      %s153 = sphi 0, %s153
      %s155 = sphi 0, %s153
      %s156 = sphi 0, %s155
      %s170 = sphi 0, %s156
      %s174 = sphi 0, %s174
      %s176 = sphi 0, %s174
      %s177 = sphi 0, %s176
      %s191 = sphi 0, %s177
      %s195 = sphi 0, %s195
      %s197 = sphi 0, %s195
      %s198 = sphi 0, %s197
      %s212 = sphi 0, %s198
      %s216 = sphi 0, %s216
      %s218 = sphi 0, %s216
      %s219 = sphi 0, %s218
      %s233 = sphi 0, %s219
      %s239 = sphi 0, %s241
      %s242 = sphi 0, %s239
      %s243 = sphi 0, %s242
      %s259 = sphi 0, %s243
      %s265 = sphi 0, %s267
      %s268 = sphi 0, %s265
      %s269 = sphi 0, %s268
      %s285 = sphi 0, %s269
    $region4: #{tpu_custom_call.1} parent=1 // loop_header_branch
      %33 = sbr.rel (%p31) target = $region8
    $region5: #{tpu_custom_call.1} parent=1 // loop_body
      %s35 = ssub.s32 %s30, 1
      %s36 = ssub.s32 %s30, 2
      %s37 = sadd.s32 %s30, 1
      %s38 = ssub.s32 %s30, %s37
      %p39 = scmp.eq.s32.totalorder %s38, 0
      %s41 = sadd.s32 %s40, 1
      %s42 = scalar_select %p39, %s40, %s41
      %p45 = pneg %p39
      %p46 = scmp.eq.s32.totalorder %s30, 1
      %p47 = por %p45, %p46
      %p48 = scmp.ne.s32.totalorder %s40, %s43
      %p49 = scmp.eq.s32.totalorder %s30, 0
      %p50 = por %p48, %p49
      %p51 = scmp.ne.s32.totalorder %s40, %s43
      %p52 = scmp.eq.s32.totalorder %s35, 1
      %p53 = por %p51, %p52
      %p54 = scmp.ne.s32.totalorder %s43, %s44
      %p55 = scmp.eq.s32.totalorder %s35, 0
      %p56 = por %p54, %p55
      %p57 = scmp.ne.s32.totalorder %s43, %s44
      %p58 = scmp.eq.s32.totalorder %s36, 1
      %p59 = por %p57, %p58
      %p61 = scmp.ne.s32.totalorder %s44, %s60
      %p62 = scmp.eq.s32.totalorder %s36, 0
      %p63 = por %p61, %p62
      %s64 = ssub.s32 %s30, %s37
      %p65 = scmp.eq.s32.totalorder %s64, 0
      %s67 = sadd.s32 %s66, 1
      %s68 = scalar_select %p65, %s66, %s67
      %p71 = pneg %p65
      %p72 = scmp.eq.s32.totalorder %s30, 1
      %p73 = por %p71, %p72
      %p74 = scmp.ne.s32.totalorder %s66, %s69
      %p75 = scmp.eq.s32.totalorder %s30, 0
      %p76 = por %p74, %p75
      %p77 = scmp.ne.s32.totalorder %s66, %s69
      %p78 = scmp.eq.s32.totalorder %s35, 1
      %p79 = por %p77, %p78
      %p80 = scmp.ne.s32.totalorder %s69, %s70
      %p81 = scmp.eq.s32.totalorder %s35, 0
      %p82 = por %p80, %p81
      %p83 = scmp.ne.s32.totalorder %s69, %s70
      %p84 = scmp.eq.s32.totalorder %s36, 1
      %p85 = por %p83, %p84
      %p87 = scmp.ne.s32.totalorder %s70, %s86
      %p88 = scmp.eq.s32.totalorder %s36, 0
      %p89 = por %p87, %p88
      %s91 = sadd.s32 %s90, 1
      %p94 = scmp.eq.s32.totalorder %s30, 1
      %p95 = scmp.ne.s32.totalorder %s90, %s92
      %p96 = scmp.eq.s32.totalorder %s30, 0
      %p97 = por %p95, %p96
      %p98 = scmp.ne.s32.totalorder %s90, %s92
      %p99 = scmp.eq.s32.totalorder %s35, 1
      %p100 = por %p98, %p99
      %p101 = scmp.ne.s32.totalorder %s92, %s93
      %p102 = scmp.eq.s32.totalorder %s35, 0
      %p103 = por %p101, %p102
      %p104 = scmp.ne.s32.totalorder %s92, %s93
      %p105 = scmp.eq.s32.totalorder %s36, 1
      %p106 = por %p104, %p105
      %p108 = scmp.ne.s32.totalorder %s93, %s107
      %p109 = scmp.eq.s32.totalorder %s36, 0
      %p110 = por %p108, %p109
      %s112 = sadd.s32 %s111, 1
      %p115 = scmp.eq.s32.totalorder %s30, 1
      %p116 = scmp.ne.s32.totalorder %s111, %s113
      %p117 = scmp.eq.s32.totalorder %s30, 0
      %p118 = por %p116, %p117
      %p119 = scmp.ne.s32.totalorder %s111, %s113
      %p120 = scmp.eq.s32.totalorder %s35, 1
      %p121 = por %p119, %p120
      %p122 = scmp.ne.s32.totalorder %s113, %s114
      %p123 = scmp.eq.s32.totalorder %s35, 0
      %p124 = por %p122, %p123
      %p125 = scmp.ne.s32.totalorder %s113, %s114
      %p126 = scmp.eq.s32.totalorder %s36, 1
      %p127 = por %p125, %p126
      %p129 = scmp.ne.s32.totalorder %s114, %s128
      %p130 = scmp.eq.s32.totalorder %s36, 0
      %p131 = por %p129, %p130
      %s133 = sadd.s32 %s132, 1
      %p136 = scmp.eq.s32.totalorder %s30, 1
      %p137 = scmp.ne.s32.totalorder %s132, %s134
      %p138 = scmp.eq.s32.totalorder %s30, 0
      %p139 = por %p137, %p138
      %p140 = scmp.ne.s32.totalorder %s132, %s134
      %p141 = scmp.eq.s32.totalorder %s35, 1
      %p142 = por %p140, %p141
      %p143 = scmp.ne.s32.totalorder %s134, %s135
      %p144 = scmp.eq.s32.totalorder %s35, 0
      %p145 = por %p143, %p144
      %p146 = scmp.ne.s32.totalorder %s134, %s135
      %p147 = scmp.eq.s32.totalorder %s36, 1
      %p148 = por %p146, %p147
      %p150 = scmp.ne.s32.totalorder %s135, %s149
      %p151 = scmp.eq.s32.totalorder %s36, 0
      %p152 = por %p150, %p151
      %s154 = sadd.s32 %s153, 1
      %p157 = scmp.eq.s32.totalorder %s30, 1
      %p158 = scmp.ne.s32.totalorder %s153, %s155
      %p159 = scmp.eq.s32.totalorder %s30, 0
      %p160 = por %p158, %p159
      %p161 = scmp.ne.s32.totalorder %s153, %s155
      %p162 = scmp.eq.s32.totalorder %s35, 1
      %p163 = por %p161, %p162
      %p164 = scmp.ne.s32.totalorder %s155, %s156
      %p165 = scmp.eq.s32.totalorder %s35, 0
      %p166 = por %p164, %p165
      %p167 = scmp.ne.s32.totalorder %s155, %s156
      %p168 = scmp.eq.s32.totalorder %s36, 1
      %p169 = por %p167, %p168
      %p171 = scmp.ne.s32.totalorder %s156, %s170
      %p172 = scmp.eq.s32.totalorder %s36, 0
      %p173 = por %p171, %p172
      %s175 = sadd.s32 %s174, 1
      %p178 = scmp.eq.s32.totalorder %s30, 1
      %p179 = scmp.ne.s32.totalorder %s174, %s176
      %p180 = scmp.eq.s32.totalorder %s30, 0
      %p181 = por %p179, %p180
      %p182 = scmp.ne.s32.totalorder %s174, %s176
      %p183 = scmp.eq.s32.totalorder %s35, 1
      %p184 = por %p182, %p183
      %p185 = scmp.ne.s32.totalorder %s176, %s177
      %p186 = scmp.eq.s32.totalorder %s35, 0
      %p187 = por %p185, %p186
      %p188 = scmp.ne.s32.totalorder %s176, %s177
      %p189 = scmp.eq.s32.totalorder %s36, 1
      %p190 = por %p188, %p189
      %p192 = scmp.ne.s32.totalorder %s177, %s191
      %p193 = scmp.eq.s32.totalorder %s36, 0
      %p194 = por %p192, %p193
      %s196 = sadd.s32 %s195, 1
      %p199 = scmp.eq.s32.totalorder %s30, 1
      %p200 = scmp.ne.s32.totalorder %s195, %s197
      %p201 = scmp.eq.s32.totalorder %s30, 0
      %p202 = por %p200, %p201
      %p203 = scmp.ne.s32.totalorder %s195, %s197
      %p204 = scmp.eq.s32.totalorder %s35, 1
      %p205 = por %p203, %p204
      %p206 = scmp.ne.s32.totalorder %s197, %s198
      %p207 = scmp.eq.s32.totalorder %s35, 0
      %p208 = por %p206, %p207
      %p209 = scmp.ne.s32.totalorder %s197, %s198
      %p210 = scmp.eq.s32.totalorder %s36, 1
      %p211 = por %p209, %p210
      %p213 = scmp.ne.s32.totalorder %s198, %s212
      %p214 = scmp.eq.s32.totalorder %s36, 0
      %p215 = por %p213, %p214
      %s217 = sadd.s32 %s216, 1
      %p220 = scmp.eq.s32.totalorder %s30, 1
      %p221 = scmp.ne.s32.totalorder %s216, %s218
      %p222 = scmp.eq.s32.totalorder %s30, 0
      %p223 = por %p221, %p222
      %p224 = scmp.ne.s32.totalorder %s216, %s218
      %p225 = scmp.eq.s32.totalorder %s35, 1
      %p226 = por %p224, %p225
      %p227 = scmp.ne.s32.totalorder %s218, %s219
      %p228 = scmp.eq.s32.totalorder %s35, 0
      %p229 = por %p227, %p228
      %p230 = scmp.ne.s32.totalorder %s218, %s219
      %p231 = scmp.eq.s32.totalorder %s36, 1
      %p232 = por %p230, %p231
      %p234 = scmp.ne.s32.totalorder %s219, %s233
      %p235 = scmp.eq.s32.totalorder %s36, 0
      %p236 = por %p234, %p235
      %s237 = ssub.s32 %s30, %s37
      %p238 = scmp.eq.s32.totalorder %s237, 0
      %s240 = sadd.s32 %s239, 1
      %s241 = scalar_select %p238, %s239, %s240
      %p244 = pneg %p238
      %p245 = scmp.eq.s32.totalorder %s30, 1
      %p246 = por %p244, %p245
      %p247 = scmp.ne.s32.totalorder %s239, %s242
      %p248 = scmp.eq.s32.totalorder %s30, 0
      %p249 = por %p247, %p248
      %p250 = scmp.ne.s32.totalorder %s239, %s242
      %p251 = scmp.eq.s32.totalorder %s35, 1
      %p252 = por %p250, %p251
      %p253 = scmp.ne.s32.totalorder %s242, %s243
      %p254 = scmp.eq.s32.totalorder %s35, 0
      %p255 = por %p253, %p254
      %p256 = scmp.ne.s32.totalorder %s242, %s243
      %p257 = scmp.eq.s32.totalorder %s36, 1
      %p258 = por %p256, %p257
      %p260 = scmp.ne.s32.totalorder %s243, %s259
      %p261 = scmp.eq.s32.totalorder %s36, 0
      %p262 = por %p260, %p261
      %s263 = ssub.s32 %s30, %s37
      %p264 = scmp.eq.s32.totalorder %s263, 0
      %s266 = sadd.s32 %s265, 1
      %s267 = scalar_select %p264, %s265, %s266
      %p270 = pneg %p264
      %p271 = scmp.eq.s32.totalorder %s30, 1
      %p272 = por %p270, %p271
      %p273 = scmp.ne.s32.totalorder %s265, %s268
      %p274 = scmp.eq.s32.totalorder %s30, 0
      %p275 = por %p273, %p274
      %p276 = scmp.ne.s32.totalorder %s265, %s268
      %p277 = scmp.eq.s32.totalorder %s35, 1
      %p278 = por %p276, %p277
      %p279 = scmp.ne.s32.totalorder %s268, %s269
      %p280 = scmp.eq.s32.totalorder %s35, 0
      %p281 = por %p279, %p280
      %p282 = scmp.ne.s32.totalorder %s268, %s269
      %p283 = scmp.eq.s32.totalorder %s36, 1
      %p284 = por %p282, %p283
      %p286 = scmp.ne.s32.totalorder %s269, %s285
      %p287 = scmp.eq.s32.totalorder %s36, 0
      %p288 = por %p286, %p287
      %p289 = scmp.le.s32.totalorder 1, %s30
      %p290 = scmp.lt.s32.totalorder %s30, 3
      %p291 = pnand %p289, %p290
      %p292 = pneg %p291
      // Predicated region
      $region9: #{tpu_custom_call.1} parent=5 // pred_check
        _
      $region10: #{tpu_custom_call.1} parent=5 // pred_check_branch
        %294 = sbr.rel (%p291) target = $region12
      $region11: #{tpu_custom_call.1} parent=5 // pred_region
        %s295 = ssub.s32 %s30, 1
        // Predicated region
        $region13: #{tpu_custom_call.1} parent=11 // pred_check
          %p296 = pneg %p103
        $region14: #{tpu_custom_call.1} parent=11 // pred_check_branch
          %298 = sbr.rel (%p296) target = $region16
        $region15: #{tpu_custom_call.1} parent=11 // pred_region
          %s300 = ssub.s32 512, 512
          %301 = vsyncadd [#allocation6], %s300
          %s302 = sshll.u32 [#allocation7], 4
          %s303 = int_to_ptr.vmem [resolvable:$true] %s302
          %308 = dma.hbm_to_vmem [thread:$0]  %s2, 512, %s303, [#allocation6], 64, 64, 4
        $region16: #{tpu_custom_call.1} parent=11 // pred_fallthru
          _
        // Predicated region
        $region17: #{tpu_custom_call.1} parent=11 // pred_check
          %p309 = pneg %p124
        $region18: #{tpu_custom_call.1} parent=11 // pred_check_branch
          %311 = sbr.rel (%p309) target = $region20
        $region19: #{tpu_custom_call.1} parent=11 // pred_region
          _
        $region20: #{tpu_custom_call.1} parent=11 // pred_fallthru
          _
        // Predicated region
        $region21: #{tpu_custom_call.1} parent=11 // pred_check
          %p312 = pneg %p145
        $region22: #{tpu_custom_call.1} parent=11 // pred_check_branch
          %314 = sbr.rel (%p312) target = $region24
        $region23: #{tpu_custom_call.1} parent=11 // pred_region
          %s316 = ssub.s32 512, 512
          %317 = vsyncadd [#allocation9], %s316
          %s318 = sshll.u32 [#allocation8], 4
          %s319 = int_to_ptr.vmem [resolvable:$true] %s318
          %324 = dma.hbm_to_vmem [thread:$0]  %s4, 512, %s319, [#allocation9], 64, 64, 4
        $region24: #{tpu_custom_call.1} parent=11 // pred_fallthru
          _
        // Predicated region
        $region25: #{tpu_custom_call.1} parent=11 // pred_check
          %p325 = pneg %p166
        $region26: #{tpu_custom_call.1} parent=11 // pred_check_branch
          %327 = sbr.rel (%p325) target = $region28
        $region27: #{tpu_custom_call.1} parent=11 // pred_region
          _
        $region28: #{tpu_custom_call.1} parent=11 // pred_fallthru
          _
        // Predicated region
        $region29: #{tpu_custom_call.1} parent=11 // pred_check
          %p328 = pneg %p187
        $region30: #{tpu_custom_call.1} parent=11 // pred_check_branch
          %330 = sbr.rel (%p328) target = $region32
        $region31: #{tpu_custom_call.1} parent=11 // pred_region
          %s332 = ssub.s32 512, 512
          %333 = vsyncadd [#allocation9], %s332
          %s334 = sshll.u32 [#allocation10], 4
          %s335 = int_to_ptr.vmem [resolvable:$true] %s334
          %340 = dma.hbm_to_vmem [thread:$0]  %s6, 512, %s335, [#allocation9], 64, 64, 4
        $region32: #{tpu_custom_call.1} parent=11 // pred_fallthru
          _
        // Predicated region
        $region33: #{tpu_custom_call.1} parent=11 // pred_check
          %p341 = pneg %p208
        $region34: #{tpu_custom_call.1} parent=11 // pred_check_branch
          %343 = sbr.rel (%p341) target = $region36
        $region35: #{tpu_custom_call.1} parent=11 // pred_region
          _
        $region36: #{tpu_custom_call.1} parent=11 // pred_fallthru
          _
        // Predicated region
        $region37: #{tpu_custom_call.1} parent=11 // pred_check
          %p344 = pneg %p229
        $region38: #{tpu_custom_call.1} parent=11 // pred_check_branch
          %346 = sbr.rel (%p344) target = $region40
        $region39: #{tpu_custom_call.1} parent=11 // pred_region
          _
        $region40: #{tpu_custom_call.1} parent=11 // pred_fallthru
          _
      $region12: #{tpu_custom_call.1} parent=5 // pred_fallthru
        _
      %p347 = scmp.lt.s32.totalorder %s30, 2
      // Predicated region
      $region41: #{tpu_custom_call.1} parent=5 // pred_check
        %p348 = pneg %p347
      $region42: #{tpu_custom_call.1} parent=5 // pred_check_branch
        %350 = sbr.rel (%p348) target = $region44
      $region43: #{tpu_custom_call.1} parent=5 // pred_region
        // Predicated region
        $region45: #{tpu_custom_call.1} parent=43 // pred_check
          %p351 = pneg %p50
        $region46: #{tpu_custom_call.1} parent=43 // pred_check_branch
          %353 = sbr.rel (%p351) target = $region48
        $region47: #{tpu_custom_call.1} parent=43 // pred_region
          %s354 = sand.u32 %s40, 1
          %s355 = scalar_lea.sflag [#allocation3], %s354
          %s356 = sand.u32 %s40, 1
          %s357 = smul.addr %s356, 4
          %s358 = scalar_lea.vmem [#allocation2], %s357
          %s360 = ssub.s32 64, 64
          %361 = vsyncadd %s355, %s360
          %s362 = smul.addr %s30, 64
          %s363 = scalar_lea.hbm %s0, %s362
          %s365 = sshll.u32 %s358, 4
          %s366 = int_to_ptr.vmem [resolvable:$true] %s365
          %368 = dma.hbm_to_vmem [thread:$0]  %s363, 64, %s366, %s355
        $region48: #{tpu_custom_call.1} parent=43 // pred_fallthru
          _
        // Predicated region
        $region49: #{tpu_custom_call.1} parent=43 // pred_check
          %p369 = pneg %p76
        $region50: #{tpu_custom_call.1} parent=43 // pred_check_branch
          %371 = sbr.rel (%p369) target = $region52
        $region51: #{tpu_custom_call.1} parent=43 // pred_region
          %s372 = sand.u32 %s30, 1
          %s373 = scalar_lea.sflag [#allocation6], %s372
          %s374 = sand.u32 %s66, 1
          %s375 = smul.addr %s374, 8
          %s376 = scalar_lea.vmem [#allocation5], %s375
          %s378 = ssub.s32 128, 128
          %379 = vsyncadd %s373, %s378
          %s380 = smul.addr %s30, 128
          %s381 = scalar_lea.hbm %s1, %s380
          %s383 = sshll.u32 %s376, 4
          %s384 = int_to_ptr.vmem [resolvable:$true] %s383
          %386 = dma.hbm_to_vmem [thread:$0]  %s381, 128, %s384, %s373
        $region52: #{tpu_custom_call.1} parent=43 // pred_fallthru
          _
      $region44: #{tpu_custom_call.1} parent=5 // pred_fallthru
        _
      %p387 = scmp.le.s32.totalorder 1, %s30
      %p388 = scmp.lt.s32.totalorder %s30, 3
      %p389 = pnand %p387, %p388
      %p390 = pneg %p389
      // Predicated region
      $region53: #{tpu_custom_call.1} parent=5 // pred_check
        _
      $region54: #{tpu_custom_call.1} parent=5 // pred_check_branch
        %392 = sbr.rel (%p389) target = $region56
      $region55: #{tpu_custom_call.1} parent=5 // pred_region
        %s393 = ssub.s32 %s30, 1
        %s394 = sand.u32 %s43, 1
        %s395 = scalar_lea.sflag [#allocation3], %s394
        %s396 = sand.u32 %s43, 1
        %s397 = smul.addr %s396, 4
        %s398 = scalar_lea.vmem [#allocation2], %s397
        // Predicated region
        $region57: #{tpu_custom_call.1} parent=55 // pred_check
          %p399 = pneg %p56
        $region58: #{tpu_custom_call.1} parent=55 // pred_check_branch
          %401 = sbr.rel (%p399) target = $region60
        $region59: #{tpu_custom_call.1} parent=55 // pred_region
          %402 = dma.done %s395, 64
        $region60: #{tpu_custom_call.1} parent=55 // pred_fallthru
          _
        %s403 = sand.u32 %s35, 1
        %s404 = scalar_lea.sflag [#allocation6], %s403
        %s405 = sand.u32 %s69, 1
        %s406 = smul.addr %s405, 8
        %s407 = scalar_lea.vmem [#allocation5], %s406
        // Predicated region
        $region61: #{tpu_custom_call.1} parent=55 // pred_check
          %p408 = pneg %p82
        $region62: #{tpu_custom_call.1} parent=55 // pred_check_branch
          %410 = sbr.rel (%p408) target = $region64
        $region63: #{tpu_custom_call.1} parent=55 // pred_region
          %411 = dma.done %s404, 128
        $region64: #{tpu_custom_call.1} parent=55 // pred_fallthru
          _
        // Predicated region
        $region65: #{tpu_custom_call.1} parent=55 // pred_check
          %p412 = pneg %p103
        $region66: #{tpu_custom_call.1} parent=55 // pred_check_branch
          %414 = sbr.rel (%p412) target = $region68
        $region67: #{tpu_custom_call.1} parent=55 // pred_region
          %415 = dma.done [#allocation6], 512
        $region68: #{tpu_custom_call.1} parent=55 // pred_fallthru
          _
        // Predicated region
        $region69: #{tpu_custom_call.1} parent=55 // pred_check
          %p416 = pneg %p145
        $region70: #{tpu_custom_call.1} parent=55 // pred_check_branch
          %418 = sbr.rel (%p416) target = $region72
        $region71: #{tpu_custom_call.1} parent=55 // pred_region
          %419 = dma.done [#allocation9], 512
        $region72: #{tpu_custom_call.1} parent=55 // pred_fallthru
          _
        // Predicated region
        $region73: #{tpu_custom_call.1} parent=55 // pred_check
          %p420 = pneg %p187
        $region74: #{tpu_custom_call.1} parent=55 // pred_check_branch
          %422 = sbr.rel (%p420) target = $region76
        $region75: #{tpu_custom_call.1} parent=55 // pred_region
          %423 = dma.done [#allocation9], 512
        $region76: #{tpu_custom_call.1} parent=55 // pred_fallthru
          _
        %s424 = sand.u32 %s43, 1
        %s425 = scalar_lea.sflag [#allocation3], %s424
        %s426 = sand.u32 %s43, 1
        %s427 = smul.addr %s426, 4
        %s428 = scalar_lea.vmem [#allocation2], %s427
        %p429 = pneg %p56
        %p430 = pneg %p53
        %s431 = sand.u32 %s35, 1
        %s432 = scalar_lea.sflag [#allocation6], %s431
        %s433 = sand.u32 %s69, 1
        %s434 = smul.addr %s433, 8
        %s435 = scalar_lea.vmem [#allocation5], %s434
        %p436 = pneg %p82
        %p437 = pneg %p79
        %p438 = pneg %p103
        %p439 = pneg %p100
        %p440 = pneg %p124
        %p441 = pneg %p121
        %p442 = pneg %p145
        %p443 = pneg %p142
        %p444 = pneg %p166
        %p445 = pneg %p163
        %p446 = pneg %p187
        %p447 = pneg %p184
        %p448 = pneg %p208
        %p449 = pneg %p205
        %p450 = pneg %p229
        %p451 = pneg %p226
        %p452 = pneg %p255
        %p453 = pneg %p252
        %s454 = sand.u32 %s242, 1
        %s455 = scalar_lea.sflag [#allocation4], %s454
        %s456 = sand.u32 %s242, 1
        %s457 = smul.addr %s456, 8
        %s458 = scalar_lea.vmem [#allocation11], %s457
        %p459 = pneg %p281
        %p460 = pneg %p278
        %s461 = sand.u32 %s268, 1
        %s462 = scalar_lea.sflag [#allocation13], %s461
        %s463 = sand.u32 %s268, 1
        %s464 = smul.addr %s463, 8
        %s465 = scalar_lea.vmem [#allocation12], %s464
        %v467 = vld [vmem:[%s398] sm:$0xf]
        %v468 = vld [vmem:[%s407] sm:$0xff]
        %v469 = vld [vmem:[#allocation7] sm:$0xf]
        %v470 = vld [vmem:[#allocation7 + $0x4] sm:$0xf]
        %v471 = vld [vmem:[#allocation7 + $0x8] sm:$0xf]
        %v472 = vld [vmem:[#allocation7 + $0xc] sm:$0xf]
        %v473 = vld [vmem:[#allocation8] sm:$0xf]
        %v474 = vld [vmem:[#allocation8 + $0x4] sm:$0xf]
        %v475 = vld [vmem:[#allocation8 + $0x8] sm:$0xf]
        %v476 = vld [vmem:[#allocation8 + $0xc] sm:$0xf]
        %v477 = vld [vmem:[#allocation10] sm:$0xf]
        %v478 = vld [vmem:[#allocation10 + $0x4] sm:$0xf]
        %v479 = vld [vmem:[#allocation10 + $0x8] sm:$0xf]
        %v480 = vld [vmem:[#allocation10 + $0xc] sm:$0xf]
        %v481 = vld [vmem:[%s3] sm:$0x1]
        %v483 = vlaneseq
        %v484 = vshrl.u32 %v483, 7
        %v485 = vsub.s32 0, %v484
        %v486 = vrot.slane %v481, %v485
        %v492 = vunpack.c.l.b16 %v469
        %v493 = vunpack.c.l.b16 %v470
        %v494 = vunpack.c.l.b16 %v471
        %v495 = vunpack.c.l.b16 %v472
        %v496 = vpack.c.b16 %v493, %v492
        %v497 = vpack.c.b16 %v495, %v494
        %vm500 = vcmask 261120
        %v502 = vsel %vm500, %v467, 0
        %504 = vmatprep.subr.bf16.mxu0 0
        %505 = vmatpush1.bf16.msra.mxu0 0
        %506 = vmatprep.subr.bf16.mxu0 0
        %507 = vmatpush1.bf16.msra.mxu0 0
        %508 = vmatprep.subr.bf16.mxu0 0
        %509 = vmatpush1.bf16.msra.mxu0 0
        %510 = vmatprep.subr.bf16.mxu0 0
        %511 = vmatpush1.bf16.msra.mxu0 0
        %512 = vmatprep.subr.bf16.mxu0 0
        %513 = vmatpush1.bf16.msra.mxu0 0
        %514 = vmatprep.subr.bf16.mxu0 0
        %515 = vmatpush1.bf16.msra.mxu0 0
        %516 = vmatprep.subr.bf16.mxu0 0
        %517 = vmatpush1.bf16.msra.mxu0 %v497
        %518 = vmatprep.subr.bf16.mxu0 0
        %519 = vmatpush1.bf16.msra.mxu0 %v496
        %520 = vmatprep.subr.bf16.mxu0 0
        %521 = vmatpush2.bf16.msra.mxu0 0
        %522 = vmatprep.subr.bf16.mxu0 0
        %523 = vmatpush2.bf16.msra.mxu0 0
        %524 = vmatprep.subr.bf16.mxu0 0
        %525 = vmatpush2.bf16.msra.mxu0 0
        %526 = vmatprep.subr.bf16.mxu0 0
        %527 = vmatpush2.bf16.msra.mxu0 0
        %528 = vmatprep.subr.bf16.mxu0 0
        %529 = vmatpush2.bf16.msra.mxu0 0
        %530 = vmatprep.subr.bf16.mxu0 0
        %531 = vmatpush2.bf16.msra.mxu0 0
        %532 = vmatprep.subr.bf16.mxu0 0
        %533 = vmatpush2.bf16.msra.mxu0 0
        %534 = vmatprep.subr.bf16.mxu0 0
        %535 = vmatpush2.bf16.msra.mxu0 0
        %536 = vmatprep.mubr.bf16.mxu0 0
        %537 = vmatmul.mubr.bf16.gmra.mxu0 %v502
        %v538 = vpop.f32.mrf.mxu0
        %v539 = vadd.f32 %v486, %v538
        %v540 = vpop.f32.mrf.mxu0
        %v541 = vpop.f32.mrf.mxu0
        %v542 = vpop.f32.mrf.mxu0
        %543 = vdwg.mxu0
        %v544 = vld [vmem:[%s5] sm:$0x1]
        %v546 = vlaneseq
        %v547 = vshrl.u32 %v546, 7
        %v548 = vsub.s32 0, %v547
        %v549 = vrot.slane %v544, %v548
        %v555 = vunpack.c.l.b16 %v473
        %v556 = vunpack.c.l.b16 %v474
        %v557 = vunpack.c.l.b16 %v475
        %v558 = vunpack.c.l.b16 %v476
        %v559 = vpack.c.b16 %v556, %v555
        %v560 = vpack.c.b16 %v558, %v557
        %563 = vmatprep.subr.bf16.mxu0 0
        %564 = vmatpush1.bf16.msra.mxu0 0
        %565 = vmatprep.subr.bf16.mxu0 0
        %566 = vmatpush1.bf16.msra.mxu0 0
        %567 = vmatprep.subr.bf16.mxu0 0
        %568 = vmatpush1.bf16.msra.mxu0 0
        %569 = vmatprep.subr.bf16.mxu0 0
        %570 = vmatpush1.bf16.msra.mxu0 0
        %571 = vmatprep.subr.bf16.mxu0 0
        %572 = vmatpush1.bf16.msra.mxu0 0
        %573 = vmatprep.subr.bf16.mxu0 0
        %574 = vmatpush1.bf16.msra.mxu0 0
        %575 = vmatprep.subr.bf16.mxu0 0
        %576 = vmatpush1.bf16.msra.mxu0 %v560
        %577 = vmatprep.subr.bf16.mxu0 0
        %578 = vmatpush1.bf16.msra.mxu0 %v559
        %579 = vmatprep.subr.bf16.mxu0 0
        %580 = vmatpush2.bf16.msra.mxu0 0
        %581 = vmatprep.subr.bf16.mxu0 0
        %582 = vmatpush2.bf16.msra.mxu0 0
        %583 = vmatprep.subr.bf16.mxu0 0
        %584 = vmatpush2.bf16.msra.mxu0 0
        %585 = vmatprep.subr.bf16.mxu0 0
        %586 = vmatpush2.bf16.msra.mxu0 0
        %587 = vmatprep.subr.bf16.mxu0 0
        %588 = vmatpush2.bf16.msra.mxu0 0
        %589 = vmatprep.subr.bf16.mxu0 0
        %590 = vmatpush2.bf16.msra.mxu0 0
        %591 = vmatprep.subr.bf16.mxu0 0
        %592 = vmatpush2.bf16.msra.mxu0 0
        %593 = vmatprep.subr.bf16.mxu0 0
        %594 = vmatpush2.bf16.msra.mxu0 0
        %595 = vmatprep.mubr.bf16.mxu0 0
        %596 = vmatmul.mubr.bf16.gmra.mxu0 %v502
        %v597 = vpop.f32.mrf.mxu0
        %v598 = vadd.f32 %v549, %v597
        %v599 = vpop.f32.mrf.mxu0
        %v600 = vpop.f32.mrf.mxu0
        %v601 = vpop.f32.mrf.mxu0
        %602 = vdwg.mxu0
        %v603 = vpack.c.bf16 %v539, %v539
        %v604 = vpack.c.bf16 %v598, %v598
        %v606 = vsel %vm500, %v603, 0
        %v609 = vsel %vm500, %v604, 0
        %611 = vmatprep.subr.bf16.mxu0 0
        %612 = vmatpush1.bf16.xpose.msra.mxu0 0
        %613 = vmatprep.subr.bf16.mxu0 0
        %614 = vmatpush1.bf16.xpose.msra.mxu0 0
        %615 = vmatprep.subr.bf16.mxu0 0
        %616 = vmatpush1.bf16.xpose.msra.mxu0 0
        %617 = vmatprep.subr.bf16.mxu0 0
        %618 = vmatpush1.bf16.xpose.msra.mxu0 0
        %619 = vmatprep.subr.bf16.mxu0 0
        %620 = vmatpush1.bf16.xpose.msra.mxu0 0
        %621 = vmatprep.subr.bf16.mxu0 0
        %622 = vmatpush1.bf16.xpose.msra.mxu0 0
        %623 = vmatprep.subr.bf16.mxu0 0
        %624 = vmatpush1.bf16.xpose.msra.mxu0 0
        %625 = vmatprep.subr.bf16.mxu0 0
        %626 = vmatpush1.bf16.xpose.msra.mxu0 %v609
        %627 = vmatprep.subr.bf16.mxu0 0
        %628 = vmatpush2.bf16.xpose.msra.mxu0 0
        %629 = vmatprep.subr.bf16.mxu0 0
        %630 = vmatpush2.bf16.xpose.msra.mxu0 0
        %631 = vmatprep.subr.bf16.mxu0 0
        %632 = vmatpush2.bf16.xpose.msra.mxu0 0
        %633 = vmatprep.subr.bf16.mxu0 0
        %634 = vmatpush2.bf16.xpose.msra.mxu0 0
        %635 = vmatprep.subr.bf16.mxu0 0
        %636 = vmatpush2.bf16.xpose.msra.mxu0 0
        %637 = vmatprep.subr.bf16.mxu0 0
        %638 = vmatpush2.bf16.xpose.msra.mxu0 0
        %639 = vmatprep.subr.bf16.mxu0 0
        %640 = vmatpush2.bf16.xpose.msra.mxu0 0
        %641 = vmatprep.subr.bf16.mxu0 0
        %642 = vmatpush2.bf16.xpose.msra.mxu0 0
        %643 = vmatprep.mubr.bf16.mxu0 0
        %644 = vmatmul.mubr.bf16.gmra.mxu0 %v606
        %v645 = vpop.f32.mrf.mxu0
        %v646 = vadd.f32 %v468, %v645
        %v647 = vpop.f32.mrf.mxu0
        %v648 = vpop.f32.mrf.mxu0
        %v649 = vpop.f32.mrf.mxu0
        %650 = vdwg.mxu0
        %vm651 = vcmask 64512
        %v652 = vsel %vm651, %v646, -inf
        %653 = vmax.xlane.f32.xlu0 %v652
        %v654 = vpop.xlane.xlu0 %653
        %v655 = vsub.f32 %v646, %v654
        %v656 = vmul.f32 %v655, 1.442695
        %v657 = vpow.pop %v656
        %v658 = vsel %vm651, %v657, 0.0
        %659 = vadd.xlane.f32.xlu0 %v658
        %v660 = vpop.xlane.xlu0 %659
        %v661 = vrcp.pop %v660
        %v662 = vmul.f32 %v657, %v661
        %v663 = vpack.c.bf16 %v662, %v662
        %v665 = vsel %vm651, %v663, 0
        %vm667 = vcmask 1043456
        %v668 = vsel %vm667, %v467, 0
        %670 = vmatprep.subr.bf16.mxu0 0
        %671 = vmatpush1.bf16.msra.mxu0 0
        %672 = vmatprep.subr.bf16.mxu0 0
        %673 = vmatpush1.bf16.msra.mxu0 0
        %674 = vmatprep.subr.bf16.mxu0 0
        %675 = vmatpush1.bf16.msra.mxu0 0
        %676 = vmatprep.subr.bf16.mxu0 0
        %677 = vmatpush1.bf16.msra.mxu0 0
        %678 = vmatprep.subr.bf16.mxu0 0
        %679 = vmatpush1.bf16.msra.mxu0 0
        %680 = vmatprep.subr.bf16.mxu0 0
        %681 = vmatpush1.bf16.msra.mxu0 0
        %682 = vmatprep.subr.bf16.mxu0 0
        %683 = vmatpush1.bf16.msra.mxu0 0
        %684 = vmatprep.subr.bf16.mxu0 0
        %685 = vmatpush1.bf16.msra.mxu0 %v668
        %686 = vmatprep.subr.bf16.mxu0 0
        %687 = vmatpush2.bf16.msra.mxu0 0
        %688 = vmatprep.subr.bf16.mxu0 0
        %689 = vmatpush2.bf16.msra.mxu0 0
        %690 = vmatprep.subr.bf16.mxu0 0
        %691 = vmatpush2.bf16.msra.mxu0 0
        %692 = vmatprep.subr.bf16.mxu0 0
        %693 = vmatpush2.bf16.msra.mxu0 0
        %694 = vmatprep.subr.bf16.mxu0 0
        %695 = vmatpush2.bf16.msra.mxu0 0
        %696 = vmatprep.subr.bf16.mxu0 0
        %697 = vmatpush2.bf16.msra.mxu0 0
        %698 = vmatprep.subr.bf16.mxu0 0
        %699 = vmatpush2.bf16.msra.mxu0 0
        %700 = vmatprep.subr.bf16.mxu0 0
        %701 = vmatpush2.bf16.msra.mxu0 0
        %702 = vmatprep.mubr.bf16.mxu0 0
        %703 = vmatmul.mubr.bf16.gmra.mxu0 %v665
        %v704 = vpop.f32.mrf.mxu0
        %v705 = vadd.f32 0.0, %v704
        %v706 = vpop.f32.mrf.mxu0
        %v707 = vpop.f32.mrf.mxu0
        %v708 = vpop.f32.mrf.mxu0
        %709 = vdwg.mxu0
        %v710 = vpack.c.bf16 %v705, %v705
        %v715 = vunpack.c.l.b16 %v477
        %v716 = vunpack.c.l.b16 %v478
        %v717 = vunpack.c.l.b16 %v479
        %v718 = vunpack.c.l.b16 %v480
        %v719 = vpack.c.b16 %v716, %v715
        %v720 = vpack.c.b16 %v718, %v717
        %v724 = vsel %vm500, %v710, 0
        %726 = vmatprep.subr.bf16.mxu0 0
        %727 = vmatpush1.bf16.msra.mxu0 0
        %728 = vmatprep.subr.bf16.mxu0 0
        %729 = vmatpush1.bf16.msra.mxu0 0
        %730 = vmatprep.subr.bf16.mxu0 0
        %731 = vmatpush1.bf16.msra.mxu0 0
        %732 = vmatprep.subr.bf16.mxu0 0
        %733 = vmatpush1.bf16.msra.mxu0 0
        %734 = vmatprep.subr.bf16.mxu0 0
        %735 = vmatpush1.bf16.msra.mxu0 0
        %736 = vmatprep.subr.bf16.mxu0 0
        %737 = vmatpush1.bf16.msra.mxu0 0
        %738 = vmatprep.subr.bf16.mxu0 0
        %739 = vmatpush1.bf16.msra.mxu0 %v720
        %740 = vmatprep.subr.bf16.mxu0 0
        %741 = vmatpush1.bf16.msra.mxu0 %v719
        %742 = vmatprep.subr.bf16.mxu0 0
        %743 = vmatpush2.bf16.msra.mxu0 0
        %744 = vmatprep.subr.bf16.mxu0 0
        %745 = vmatpush2.bf16.msra.mxu0 0
        %746 = vmatprep.subr.bf16.mxu0 0
        %747 = vmatpush2.bf16.msra.mxu0 0
        %748 = vmatprep.subr.bf16.mxu0 0
        %749 = vmatpush2.bf16.msra.mxu0 0
        %750 = vmatprep.subr.bf16.mxu0 0
        %751 = vmatpush2.bf16.msra.mxu0 0
        %752 = vmatprep.subr.bf16.mxu0 0
        %753 = vmatpush2.bf16.msra.mxu0 0
        %754 = vmatprep.subr.bf16.mxu0 0
        %755 = vmatpush2.bf16.msra.mxu0 0
        %756 = vmatprep.subr.bf16.mxu0 0
        %757 = vmatpush2.bf16.msra.mxu0 0
        %758 = vmatprep.mubr.bf16.mxu0 0
        %759 = vmatmul.mubr.bf16.gmra.mxu0 %v724
        %v760 = vpop.f32.mrf.mxu0
        %v761 = vadd.f32 0.0, %v760
        %v762 = vpop.f32.mrf.mxu0
        %v763 = vpop.f32.mrf.mxu0
        %v764 = vpop.f32.mrf.mxu0
        %765 = vdwg.mxu0
        %v766 = vsel %vm500, %v761, 0.0
        %767 = vadd.xlane.f32.xlu0 %v766
        %v768 = vpop.xlane.xlu0 %767
        %v769 = vrcp.pop 32.0
        %v770 = vmul.f32 %v768, %v769
        %v771 = vsub.f32 %v761, %v770
        %v772 = vmul.f32 %v771, %v771
        %v773 = vsel %vm500, %v772, 0.0
        %774 = vadd.xlane.f32.xlu0 %v773
        %v775 = vpop.xlane.xlu0 %774
        %v776 = vmul.f32 %v775, %v769
        %v777 = vadd.f32 %v776, 1e-05
        %v778 = vrsqrt.pop %v777
        %v779 = vmul.f32 %v771, %v778
        %v780 = vld [vmem:[%s7] sm:$0x1]
        %v782 = vlaneseq
        %v783 = vshrl.u32 %v782, 7
        %v784 = vsub.s32 0, %v783
        %v785 = vrot.slane %v780, %v784
        %v787 = vmul.f32 %v779, %v785
        %v788 = vld [vmem:[%s8] sm:$0x1]
        %v790 = vlaneseq
        %v791 = vshrl.u32 %v790, 7
        %v792 = vsub.s32 0, %v791
        %v793 = vrot.slane %v788, %v792
        %v795 = vadd.f32 %v787, %v793
        %v796 = vmax.f32 %v795, 0.0
        %v797 = vadd.f32 %v796, 0.0
        %s798 = scalar_lea.vmem [#allocation7], 16
        %v799 = vld [vmem:[%s798] sm:$0xf]
        %v800 = vld [vmem:[%s798 + $0x4] sm:$0xf]
        %v801 = vld [vmem:[%s798 + $0x8] sm:$0xf]
        %v802 = vld [vmem:[%s798 + $0xc] sm:$0xf]
        %s803 = scalar_lea.vmem [#allocation8], 16
        %v804 = vld [vmem:[%s803] sm:$0xf]
        %v805 = vld [vmem:[%s803 + $0x4] sm:$0xf]
        %v806 = vld [vmem:[%s803 + $0x8] sm:$0xf]
        %v807 = vld [vmem:[%s803 + $0xc] sm:$0xf]
        %s808 = scalar_lea.vmem [#allocation10], 16
        %v809 = vld [vmem:[%s808] sm:$0xf]
        %v810 = vld [vmem:[%s808 + $0x4] sm:$0xf]
        %v811 = vld [vmem:[%s808 + $0x8] sm:$0xf]
        %v812 = vld [vmem:[%s808 + $0xc] sm:$0xf]
        %s813 = scalar_lea.vmem %s3, 1
        %v814 = vld [vmem:[%s813] sm:$0x1]
        %v816 = vlaneseq
        %v817 = vshrl.u32 %v816, 7
        %v818 = vsub.s32 0, %v817
        %v819 = vrot.slane %v814, %v818
        %v825 = vunpack.c.l.b16 %v799
        %v826 = vunpack.c.l.b16 %v800
        %v827 = vunpack.c.l.b16 %v801
        %v828 = vunpack.c.l.b16 %v802
        %v829 = vpack.c.b16 %v826, %v825
        %v830 = vpack.c.b16 %v828, %v827
        %833 = vmatprep.subr.bf16.mxu0 0
        %834 = vmatpush1.bf16.msra.mxu0 0
        %835 = vmatprep.subr.bf16.mxu0 0
        %836 = vmatpush1.bf16.msra.mxu0 0
        %837 = vmatprep.subr.bf16.mxu0 0
        %838 = vmatpush1.bf16.msra.mxu0 0
        %839 = vmatprep.subr.bf16.mxu0 0
        %840 = vmatpush1.bf16.msra.mxu0 0
        %841 = vmatprep.subr.bf16.mxu0 0
        %842 = vmatpush1.bf16.msra.mxu0 0
        %843 = vmatprep.subr.bf16.mxu0 0
        %844 = vmatpush1.bf16.msra.mxu0 0
        %845 = vmatprep.subr.bf16.mxu0 0
        %846 = vmatpush1.bf16.msra.mxu0 %v830
        %847 = vmatprep.subr.bf16.mxu0 0
        %848 = vmatpush1.bf16.msra.mxu0 %v829
        %849 = vmatprep.subr.bf16.mxu0 0
        %850 = vmatpush2.bf16.msra.mxu0 0
        %851 = vmatprep.subr.bf16.mxu0 0
        %852 = vmatpush2.bf16.msra.mxu0 0
        %853 = vmatprep.subr.bf16.mxu0 0
        %854 = vmatpush2.bf16.msra.mxu0 0
        %855 = vmatprep.subr.bf16.mxu0 0
        %856 = vmatpush2.bf16.msra.mxu0 0
        %857 = vmatprep.subr.bf16.mxu0 0
        %858 = vmatpush2.bf16.msra.mxu0 0
        %859 = vmatprep.subr.bf16.mxu0 0
        %860 = vmatpush2.bf16.msra.mxu0 0
        %861 = vmatprep.subr.bf16.mxu0 0
        %862 = vmatpush2.bf16.msra.mxu0 0
        %863 = vmatprep.subr.bf16.mxu0 0
        %864 = vmatpush2.bf16.msra.mxu0 0
        %865 = vmatprep.mubr.bf16.mxu0 0
        %866 = vmatmul.mubr.bf16.gmra.mxu0 %v502
        %v867 = vpop.f32.mrf.mxu0
        %v868 = vadd.f32 %v819, %v867
        %v869 = vpop.f32.mrf.mxu0
        %v870 = vpop.f32.mrf.mxu0
        %v871 = vpop.f32.mrf.mxu0
        %872 = vdwg.mxu0
        %s873 = scalar_lea.vmem %s5, 1
        %v874 = vld [vmem:[%s873] sm:$0x1]
        %v876 = vlaneseq
        %v877 = vshrl.u32 %v876, 7
        %v878 = vsub.s32 0, %v877
        %v879 = vrot.slane %v874, %v878
        %v885 = vunpack.c.l.b16 %v804
        %v886 = vunpack.c.l.b16 %v805
        %v887 = vunpack.c.l.b16 %v806
        %v888 = vunpack.c.l.b16 %v807
        %v889 = vpack.c.b16 %v886, %v885
        %v890 = vpack.c.b16 %v888, %v887
        %893 = vmatprep.subr.bf16.mxu0 0
        %894 = vmatpush1.bf16.msra.mxu0 0
        %895 = vmatprep.subr.bf16.mxu0 0
        %896 = vmatpush1.bf16.msra.mxu0 0
        %897 = vmatprep.subr.bf16.mxu0 0
        %898 = vmatpush1.bf16.msra.mxu0 0
        %899 = vmatprep.subr.bf16.mxu0 0
        %900 = vmatpush1.bf16.msra.mxu0 0
        %901 = vmatprep.subr.bf16.mxu0 0
        %902 = vmatpush1.bf16.msra.mxu0 0
        %903 = vmatprep.subr.bf16.mxu0 0
        %904 = vmatpush1.bf16.msra.mxu0 0
        %905 = vmatprep.subr.bf16.mxu0 0
        %906 = vmatpush1.bf16.msra.mxu0 %v890
        %907 = vmatprep.subr.bf16.mxu0 0
        %908 = vmatpush1.bf16.msra.mxu0 %v889
        %909 = vmatprep.subr.bf16.mxu0 0
        %910 = vmatpush2.bf16.msra.mxu0 0
        %911 = vmatprep.subr.bf16.mxu0 0
        %912 = vmatpush2.bf16.msra.mxu0 0
        %913 = vmatprep.subr.bf16.mxu0 0
        %914 = vmatpush2.bf16.msra.mxu0 0
        %915 = vmatprep.subr.bf16.mxu0 0
        %916 = vmatpush2.bf16.msra.mxu0 0
        %917 = vmatprep.subr.bf16.mxu0 0
        %918 = vmatpush2.bf16.msra.mxu0 0
        %919 = vmatprep.subr.bf16.mxu0 0
        %920 = vmatpush2.bf16.msra.mxu0 0
        %921 = vmatprep.subr.bf16.mxu0 0
        %922 = vmatpush2.bf16.msra.mxu0 0
        %923 = vmatprep.subr.bf16.mxu0 0
        %924 = vmatpush2.bf16.msra.mxu0 0
        %925 = vmatprep.mubr.bf16.mxu0 0
        %926 = vmatmul.mubr.bf16.gmra.mxu0 %v502
        %v927 = vpop.f32.mrf.mxu0
        %v928 = vadd.f32 %v879, %v927
        %v929 = vpop.f32.mrf.mxu0
        %v930 = vpop.f32.mrf.mxu0
        %v931 = vpop.f32.mrf.mxu0
        %932 = vdwg.mxu0
        %v933 = vpack.c.bf16 %v868, %v868
        %v934 = vpack.c.bf16 %v928, %v928
        %v936 = vsel %vm500, %v933, 0
        %v939 = vsel %vm500, %v934, 0
        %941 = vmatprep.subr.bf16.mxu0 0
        %942 = vmatpush1.bf16.xpose.msra.mxu0 0
        %943 = vmatprep.subr.bf16.mxu0 0
        %944 = vmatpush1.bf16.xpose.msra.mxu0 0
        %945 = vmatprep.subr.bf16.mxu0 0
        %946 = vmatpush1.bf16.xpose.msra.mxu0 0
        %947 = vmatprep.subr.bf16.mxu0 0
        %948 = vmatpush1.bf16.xpose.msra.mxu0 0
        %949 = vmatprep.subr.bf16.mxu0 0
        %950 = vmatpush1.bf16.xpose.msra.mxu0 0
        %951 = vmatprep.subr.bf16.mxu0 0
        %952 = vmatpush1.bf16.xpose.msra.mxu0 0
        %953 = vmatprep.subr.bf16.mxu0 0
        %954 = vmatpush1.bf16.xpose.msra.mxu0 0
        %955 = vmatprep.subr.bf16.mxu0 0
        %956 = vmatpush1.bf16.xpose.msra.mxu0 %v939
        %957 = vmatprep.subr.bf16.mxu0 0
        %958 = vmatpush2.bf16.xpose.msra.mxu0 0
        %959 = vmatprep.subr.bf16.mxu0 0
        %960 = vmatpush2.bf16.xpose.msra.mxu0 0
        %961 = vmatprep.subr.bf16.mxu0 0
        %962 = vmatpush2.bf16.xpose.msra.mxu0 0
        %963 = vmatprep.subr.bf16.mxu0 0
        %964 = vmatpush2.bf16.xpose.msra.mxu0 0
        %965 = vmatprep.subr.bf16.mxu0 0
        %966 = vmatpush2.bf16.xpose.msra.mxu0 0
        %967 = vmatprep.subr.bf16.mxu0 0
        %968 = vmatpush2.bf16.xpose.msra.mxu0 0
        %969 = vmatprep.subr.bf16.mxu0 0
        %970 = vmatpush2.bf16.xpose.msra.mxu0 0
        %971 = vmatprep.subr.bf16.mxu0 0
        %972 = vmatpush2.bf16.xpose.msra.mxu0 0
        %973 = vmatprep.mubr.bf16.mxu0 0
        %974 = vmatmul.mubr.bf16.gmra.mxu0 %v936
        %v975 = vpop.f32.mrf.mxu0
        %v976 = vadd.f32 %v468, %v975
        %v977 = vpop.f32.mrf.mxu0
        %v978 = vpop.f32.mrf.mxu0
        %v979 = vpop.f32.mrf.mxu0
        %980 = vdwg.mxu0
        %v981 = vsel %vm651, %v976, -inf
        %982 = vmax.xlane.f32.xlu0 %v981
        %v983 = vpop.xlane.xlu0 %982
        %v984 = vsub.f32 %v976, %v983
        %v985 = vmul.f32 %v984, 1.442695
        %v986 = vpow.pop %v985
        %v987 = vsel %vm651, %v986, 0.0
        %988 = vadd.xlane.f32.xlu0 %v987
        %v989 = vpop.xlane.xlu0 %988
        %v990 = vrcp.pop %v989
        %v991 = vmul.f32 %v986, %v990
        %v992 = vsel %vm651, %v991, 0.0
        %993 = vst [vmem:[%s465] sm:$0xff] %v992
        %v994 = vpack.c.bf16 %v991, %v991
        %v996 = vsel %vm651, %v994, 0
        %998 = vmatprep.subr.bf16.mxu0 0
        %999 = vmatpush1.bf16.msra.mxu0 0
        %1000 = vmatprep.subr.bf16.mxu0 0
        %1001 = vmatpush1.bf16.msra.mxu0 0
        %1002 = vmatprep.subr.bf16.mxu0 0
        %1003 = vmatpush1.bf16.msra.mxu0 0
        %1004 = vmatprep.subr.bf16.mxu0 0
        %1005 = vmatpush1.bf16.msra.mxu0 0
        %1006 = vmatprep.subr.bf16.mxu0 0
        %1007 = vmatpush1.bf16.msra.mxu0 0
        %1008 = vmatprep.subr.bf16.mxu0 0
        %1009 = vmatpush1.bf16.msra.mxu0 0
        %1010 = vmatprep.subr.bf16.mxu0 0
        %1011 = vmatpush1.bf16.msra.mxu0 0
        %1012 = vmatprep.subr.bf16.mxu0 0
        %1013 = vmatpush1.bf16.msra.mxu0 %v668
        %1014 = vmatprep.subr.bf16.mxu0 0
        %1015 = vmatpush2.bf16.msra.mxu0 0
        %1016 = vmatprep.subr.bf16.mxu0 0
        %1017 = vmatpush2.bf16.msra.mxu0 0
        %1018 = vmatprep.subr.bf16.mxu0 0
        %1019 = vmatpush2.bf16.msra.mxu0 0
        %1020 = vmatprep.subr.bf16.mxu0 0
        %1021 = vmatpush2.bf16.msra.mxu0 0
        %1022 = vmatprep.subr.bf16.mxu0 0
        %1023 = vmatpush2.bf16.msra.mxu0 0
        %1024 = vmatprep.subr.bf16.mxu0 0
        %1025 = vmatpush2.bf16.msra.mxu0 0
        %1026 = vmatprep.subr.bf16.mxu0 0
        %1027 = vmatpush2.bf16.msra.mxu0 0
        %1028 = vmatprep.subr.bf16.mxu0 0
        %1029 = vmatpush2.bf16.msra.mxu0 0
        %1030 = vmatprep.mubr.bf16.mxu0 0
        %1031 = vmatmul.mubr.bf16.gmra.mxu0 %v996
        %v1032 = vpop.f32.mrf.mxu0
        %v1033 = vadd.f32 0.0, %v1032
        %v1034 = vpop.f32.mrf.mxu0
        %v1035 = vpop.f32.mrf.mxu0
        %v1036 = vpop.f32.mrf.mxu0
        %1037 = vdwg.mxu0
        %v1038 = vpack.c.bf16 %v1033, %v1033
        %v1043 = vunpack.c.l.b16 %v809
        %v1044 = vunpack.c.l.b16 %v810
        %v1045 = vunpack.c.l.b16 %v811
        %v1046 = vunpack.c.l.b16 %v812
        %v1047 = vpack.c.b16 %v1044, %v1043
        %v1048 = vpack.c.b16 %v1046, %v1045
        %v1052 = vsel %vm500, %v1038, 0
        %1054 = vmatprep.subr.bf16.mxu0 0
        %1055 = vmatpush1.bf16.msra.mxu0 0
        %1056 = vmatprep.subr.bf16.mxu0 0
        %1057 = vmatpush1.bf16.msra.mxu0 0
        %1058 = vmatprep.subr.bf16.mxu0 0
        %1059 = vmatpush1.bf16.msra.mxu0 0
        %1060 = vmatprep.subr.bf16.mxu0 0
        %1061 = vmatpush1.bf16.msra.mxu0 0
        %1062 = vmatprep.subr.bf16.mxu0 0
        %1063 = vmatpush1.bf16.msra.mxu0 0
        %1064 = vmatprep.subr.bf16.mxu0 0
        %1065 = vmatpush1.bf16.msra.mxu0 0
        %1066 = vmatprep.subr.bf16.mxu0 0
        %1067 = vmatpush1.bf16.msra.mxu0 %v1048
        %1068 = vmatprep.subr.bf16.mxu0 0
        %1069 = vmatpush1.bf16.msra.mxu0 %v1047
        %1070 = vmatprep.subr.bf16.mxu0 0
        %1071 = vmatpush2.bf16.msra.mxu0 0
        %1072 = vmatprep.subr.bf16.mxu0 0
        %1073 = vmatpush2.bf16.msra.mxu0 0
        %1074 = vmatprep.subr.bf16.mxu0 0
        %1075 = vmatpush2.bf16.msra.mxu0 0
        %1076 = vmatprep.subr.bf16.mxu0 0
        %1077 = vmatpush2.bf16.msra.mxu0 0
        %1078 = vmatprep.subr.bf16.mxu0 0
        %1079 = vmatpush2.bf16.msra.mxu0 0
        %1080 = vmatprep.subr.bf16.mxu0 0
        %1081 = vmatpush2.bf16.msra.mxu0 0
        %1082 = vmatprep.subr.bf16.mxu0 0
        %1083 = vmatpush2.bf16.msra.mxu0 0
        %1084 = vmatprep.subr.bf16.mxu0 0
        %1085 = vmatpush2.bf16.msra.mxu0 0
        %1086 = vmatprep.mubr.bf16.mxu0 0
        %1087 = vmatmul.mubr.bf16.gmra.mxu0 %v1052
        %v1088 = vpop.f32.mrf.mxu0
        %v1089 = vadd.f32 0.0, %v1088
        %v1090 = vpop.f32.mrf.mxu0
        %v1091 = vpop.f32.mrf.mxu0
        %v1092 = vpop.f32.mrf.mxu0
        %1093 = vdwg.mxu0
        %v1094 = vsel %vm500, %v1089, 0.0
        %1095 = vadd.xlane.f32.xlu0 %v1094
        %v1096 = vpop.xlane.xlu0 %1095
        %v1097 = vmul.f32 %v1096, %v769
        %v1098 = vsub.f32 %v1089, %v1097
        %v1099 = vmul.f32 %v1098, %v1098
        %v1100 = vsel %vm500, %v1099, 0.0
        %1101 = vadd.xlane.f32.xlu0 %v1100
        %v1102 = vpop.xlane.xlu0 %1101
        %v1103 = vmul.f32 %v1102, %v769
        %v1104 = vadd.f32 %v1103, 1e-05
        %v1105 = vrsqrt.pop %v1104
        %v1106 = vmul.f32 %v1098, %v1105
        %s1107 = scalar_lea.vmem %s7, 1
        %v1108 = vld [vmem:[%s1107] sm:$0x1]
        %v1110 = vlaneseq
        %v1111 = vshrl.u32 %v1110, 7
        %v1112 = vsub.s32 0, %v1111
        %v1113 = vrot.slane %v1108, %v1112
        %v1115 = vmul.f32 %v1106, %v1113
        %s1116 = scalar_lea.vmem %s8, 1
        %v1117 = vld [vmem:[%s1116] sm:$0x1]
        %v1119 = vlaneseq
        %v1120 = vshrl.u32 %v1119, 7
        %v1121 = vsub.s32 0, %v1120
        %v1122 = vrot.slane %v1117, %v1121
        %v1124 = vadd.f32 %v1115, %v1122
        %v1125 = vmax.f32 %v1124, 0.0
        %v1126 = vadd.f32 %v797, %v1125
        %1127 = vst.msk [vmem:[%s458] sm:$0xff] %vm500, %v1126
        %s1128 = sand.u32 %s242, 1
        %s1129 = scalar_lea.sflag [#allocation4], %s1128
        %s1130 = sand.u32 %s242, 1
        %s1131 = smul.addr %s1130, 8
        %s1132 = scalar_lea.vmem [#allocation11], %s1131
        %s1133 = sand.u32 %s268, 1
        %s1134 = scalar_lea.sflag [#allocation13], %s1133
        %s1135 = sand.u32 %s268, 1
        %s1136 = smul.addr %s1135, 8
        %s1137 = scalar_lea.vmem [#allocation12], %s1136
        // Predicated region
        $region77: #{tpu_custom_call.1} parent=55 // pred_check
          %p1138 = pneg %p252
        $region78: #{tpu_custom_call.1} parent=55 // pred_check_branch
          %1140 = sbr.rel (%p1138) target = $region80
        $region79: #{tpu_custom_call.1} parent=55 // pred_region
          %s1142 = ssub.s32 128, 128
          %1143 = vsyncadd %s1129, %s1142
          %s1144 = smul.addr %s35, 128
          %s1145 = scalar_lea.hbm %s9, %s1144
          %s1147 = sshll.u32 %s1132, 4
          %s1148 = int_to_ptr.vmem [resolvable:$true] %s1147
          %1150 = dma.vmem_to_hbm [thread:$0]  %s1148, 128, %s1145, %s1129
        $region80: #{tpu_custom_call.1} parent=55 // pred_fallthru
          _
        // Predicated region
        $region81: #{tpu_custom_call.1} parent=55 // pred_check
          %p1151 = pneg %p278
        $region82: #{tpu_custom_call.1} parent=55 // pred_check_branch
          %1153 = sbr.rel (%p1151) target = $region84
        $region83: #{tpu_custom_call.1} parent=55 // pred_region
          %s1155 = ssub.s32 128, 128
          %1156 = vsyncadd %s1134, %s1155
          %s1157 = smul.addr %s35, 128
          %s1158 = scalar_lea.hbm %s10, %s1157
          %s1160 = sshll.u32 %s1137, 4
          %s1161 = int_to_ptr.vmem [resolvable:$true] %s1160
          %1163 = dma.vmem_to_hbm [thread:$0]  %s1161, 128, %s1158, %s1134
        $region84: #{tpu_custom_call.1} parent=55 // pred_fallthru
          _
      $region56: #{tpu_custom_call.1} parent=5 // pred_fallthru
        _
      %p1164 = scmp.le.s32.totalorder 2, %s30
      // Predicated region
      $region85: #{tpu_custom_call.1} parent=5 // pred_check
        %p1165 = pneg %p1164
      $region86: #{tpu_custom_call.1} parent=5 // pred_check_branch
        %1167 = sbr.rel (%p1165) target = $region88
      $region87: #{tpu_custom_call.1} parent=5 // pred_region
        %s1168 = ssub.s32 %s30, 2
        // Predicated region
        $region89: #{tpu_custom_call.1} parent=87 // pred_check
          %p1169 = pneg %p258
        $region90: #{tpu_custom_call.1} parent=87 // pred_check_branch
          %1171 = sbr.rel (%p1169) target = $region92
        $region91: #{tpu_custom_call.1} parent=87 // pred_region
          %s1172 = sand.u32 %s243, 1
          %s1173 = scalar_lea.sflag [#allocation4], %s1172
          %s1174 = sand.u32 %s243, 1
          %s1175 = smul.addr %s1174, 8
          %s1176 = scalar_lea.vmem [#allocation11], %s1175
          %1177 = dma.done %s1173, 128
        $region92: #{tpu_custom_call.1} parent=87 // pred_fallthru
          _
        // Predicated region
        $region93: #{tpu_custom_call.1} parent=87 // pred_check
          %p1178 = pneg %p284
        $region94: #{tpu_custom_call.1} parent=87 // pred_check_branch
          %1180 = sbr.rel (%p1178) target = $region96
        $region95: #{tpu_custom_call.1} parent=87 // pred_region
          %s1181 = sand.u32 %s269, 1
          %s1182 = scalar_lea.sflag [#allocation13], %s1181
          %s1183 = sand.u32 %s269, 1
          %s1184 = smul.addr %s1183, 8
          %s1185 = scalar_lea.vmem [#allocation12], %s1184
          %1186 = dma.done %s1182, 128
        $region96: #{tpu_custom_call.1} parent=87 // pred_fallthru
          _
      $region88: #{tpu_custom_call.1} parent=5 // pred_fallthru
        _
    $region6: #{tpu_custom_call.1} parent=1 // loop_footer
      %s34 = sadd.s32 1, %s30
    $region7: #{tpu_custom_call.1} parent=1 // loop_footer_branch
      %29 = sbr.rel target = $region3
    $region8: #{tpu_custom_call.1} parent=1 // loop_exit
      _
    %1187 = vsyncpa [#allocation3], 1
    %s1188 = scalar_lea.sflag [#allocation3], 1
    %1189 = vsyncpa %s1188, 1
    %1190 = vsyncpa [#allocation6], 1
    %s1191 = scalar_lea.sflag [#allocation6], 1
    %1192 = vsyncpa %s1191, 1
    %1193 = vsyncpa [#allocation9], 1
    %1194 = vsyncpa [#allocation4], 1
    %s1195 = scalar_lea.sflag [#allocation4], 1
    %1196 = vsyncpa %s1195, 1
    %1197 = vsyncpa [#allocation13], 1
    %s1198 = scalar_lea.sflag [#allocation13], 1
    %1199 = vsyncpa %s1198, 1

// kernel: tpu_custom_call.1
$region0: #{tpu_custom_call.1}
  #allocation0 [shape = 'u32[]', space=smem, size = 0x4, offset = 0x4, fixed_abs, tag = 'smem constant byte address 0x4 - core index']
  #allocation1 [shape = 'u32[144,128]{1,0:T(1,128)}', space=vmem, size = 0x12000, scoped, tag = 'internal scratch']
  %s0 = inlined_call_operand.hbm [shape: bf16[16,32], index: 0, kind: input, shape index: {}]
  %s1 = inlined_call_operand.hbm [shape: f32[2,8,8], index: 1, kind: input, shape index: {}]
  %s2 = inlined_call_operand.hbm [shape: bf16[2,32,32], index: 2, kind: input, shape index: {}]
  %s3 = inlined_call_operand.vmem [shape: f32[2,1,32], index: 3, kind: input, shape index: {}]
  %s4 = inlined_call_operand.hbm [shape: bf16[2,32,32], index: 4, kind: input, shape index: {}]
  %s5 = inlined_call_operand.vmem [shape: f32[2,1,32], index: 5, kind: input, shape index: {}]
  %s6 = inlined_call_operand.hbm [shape: bf16[2,32,32], index: 6, kind: input, shape index: {}]
  %s7 = inlined_call_operand.vmem [shape: f32[2,1,32], index: 7, kind: input, shape index: {}]
  %s8 = inlined_call_operand.vmem [shape: f32[2,1,32], index: 8, kind: input, shape index: {}]
  %s9 = inlined_call_operand.hbm [shape: f32[16,32], index: 9, kind: output, shape index: {0}]
  %s10 = inlined_call_operand.hbm [shape: f32[2,8,128], index: 10, kind: output, shape index: {1}]
  %11 = xla_tuple %s9, %s10
  %s12 = sld [smem:[#allocation0]]
  $region97: #{tpu_custom_call.1} parent=0
    _
  %s14 = ssub.s32 1, %s12
  %s15 = scalar_select 0, %s14, %s12
  $region1: #{tpu_custom_call.1} parent=0
    #allocation2 [shape = 'u8[4096]{0}', space=vmem, size = 0x1000, scoped, tag = 'input window, operand 0']
    #allocation3 [shape = 's32[2]{0}', space=sflag, size = 0x8, scoped, tag = 'scoped memory for tpu_custom_call.1']
    #allocation4 [shape = 's32[2]{0}', space=sflag, size = 0x8, scoped, tag = 'scoped memory for tpu_custom_call.1']
    #allocation5 [shape = 'u8[8192]{0}', space=vmem, size = 0x2000, scoped, tag = 'input window, operand 1']
    #allocation6 [shape = 's32[2]{0}', space=sflag, size = 0x8, scoped, tag = 'scoped memory for tpu_custom_call.1']
    #allocation7 [shape = 'u8[16384]{0}', space=vmem, size = 0x4000, scoped, tag = 'input window, operand 2, single buffered']
    #allocation8 [shape = 'u8[16384]{0}', space=vmem, size = 0x4000, scoped, tag = 'input window, operand 4, single buffered']
    #allocation9 [shape = 's32[1]{0}', space=sflag, size = 0x4, scoped, tag = 'scoped memory for tpu_custom_call.1']
    #allocation10 [shape = 'u8[16384]{0}', space=vmem, size = 0x4000, scoped, tag = 'input window, operand 6, single buffered']
    #allocation11 [shape = 'u8[8192]{0}', space=vmem, size = 0x2000, scoped, tag = 'output window, operand 0']
    #allocation12 [shape = 'u8[8192]{0}', space=vmem, size = 0x2000, scoped, tag = 'output window, operand 1']
    #allocation13 [shape = 's32[2]{0}', space=sflag, size = 0x8, scoped, tag = 'scoped memory for tpu_custom_call.1']
    %16 = vsyncpa [#allocation3], 0
    %s17 = scalar_lea.sflag [#allocation3], 1
    %18 = vsyncpa %s17, 0
    %19 = vsyncpa [#allocation6], 0
    %s20 = scalar_lea.sflag [#allocation6], 1
    %21 = vsyncpa %s20, 0
    %22 = vsyncpa [#allocation9], 0
    %23 = vsyncpa [#allocation4], 0
    %s24 = scalar_lea.sflag [#allocation4], 1
    %25 = vsyncpa %s24, 0
    %26 = vsyncpa [#allocation13], 0
    %s27 = scalar_lea.sflag [#allocation13], 1
    %28 = vsyncpa %s27, 0
    loop: start=0, step=1, limit=4
    $region2: #{tpu_custom_call.1} parent=1 // loop_pre_header
      _
    $region3: #{tpu_custom_call.1} parent=1 // loop_header
      %s30 = sphi 0, %s34
      %p31 = scmp.ge.s32.totalorder %s30, 4
      %s40 = sphi 0, %s42
      %s43 = sphi 0, %s40
      %s44 = sphi 0, %s43
      %s60 = sphi 0, %s44
      %s66 = sphi 0, %s68
      %s69 = sphi 0, %s66
      %s70 = sphi 0, %s69
      %s86 = sphi 0, %s70
      %s90 = sphi 0, %s90
      %s92 = sphi 0, %s90
      %s93 = sphi 0, %s92
      %s107 = sphi 0, %s93
      %s111 = sphi 0, %s111
      %s113 = sphi 0, %s111
      %s114 = sphi 0, %s113
      %s128 = sphi 0, %s114
      %s132 = sphi 0, %s132
      %s134 = sphi 0, %s132
      %s135 = sphi 0, %s134
      %s149 = sphi 0, %s135
      %s153 = sphi 0, %s153
      %s155 = sphi 0, %s153
      %s156 = sphi 0, %s155
      %s170 = sphi 0, %s156
      %s174 = sphi 0, %s174
      %s176 = sphi 0, %s174
      %s177 = sphi 0, %s176
      %s191 = sphi 0, %s177
      %s195 = sphi 0, %s195
      %s197 = sphi 0, %s195
      %s198 = sphi 0, %s197
      %s212 = sphi 0, %s198
      %s216 = sphi 0, %s216
      %s218 = sphi 0, %s216
      %s219 = sphi 0, %s218
      %s233 = sphi 0, %s219
      %s239 = sphi 0, %s241
      %s242 = sphi 0, %s239
      %s243 = sphi 0, %s242
      %s259 = sphi 0, %s243
      %s265 = sphi 0, %s267
      %s268 = sphi 0, %s265
      %s269 = sphi 0, %s268
      %s285 = sphi 0, %s269
    $region4: #{tpu_custom_call.1} parent=1 // loop_header_branch
      %33 = sbr.rel (%p31) target = $region8
    $region5: #{tpu_custom_call.1} parent=1 // loop_body
      %s35 = ssub.s32 %s30, 1
      %s36 = ssub.s32 %s30, 2
      %s37 = sadd.s32 %s30, 1
      %s38 = ssub.s32 %s30, %s37
      %p39 = scmp.eq.s32.totalorder %s38, 0
      %s41 = sadd.s32 %s40, 1
      %s42 = scalar_select %p39, %s40, %s41
      %p45 = pneg %p39
      %p46 = scmp.eq.s32.totalorder %s30, 1
      %p47 = por %p45, %p46
      %p48 = scmp.ne.s32.totalorder %s40, %s43
      %p49 = scmp.eq.s32.totalorder %s30, 0
      %p50 = por %p48, %p49
      %p51 = scmp.ne.s32.totalorder %s40, %s43
      %p52 = scmp.eq.s32.totalorder %s35, 1
      %p53 = por %p51, %p52
      %p54 = scmp.ne.s32.totalorder %s43, %s44
      %p55 = scmp.eq.s32.totalorder %s35, 0
      %p56 = por %p54, %p55
      %p57 = scmp.ne.s32.totalorder %s43, %s44
      %p58 = scmp.eq.s32.totalorder %s36, 1
      %p59 = por %p57, %p58
      %p61 = scmp.ne.s32.totalorder %s44, %s60
      %p62 = scmp.eq.s32.totalorder %s36, 0
      %p63 = por %p61, %p62
      %s64 = ssub.s32 %s30, %s37
      %p65 = scmp.eq.s32.totalorder %s64, 0
      %s67 = sadd.s32 %s66, 1
      %s68 = scalar_select %p65, %s66, %s67
      %p71 = pneg %p65
      %p72 = scmp.eq.s32.totalorder %s30, 1
      %p73 = por %p71, %p72
      %p74 = scmp.ne.s32.totalorder %s66, %s69
      %p75 = scmp.eq.s32.totalorder %s30, 0
      %p76 = por %p74, %p75
      %p77 = scmp.ne.s32.totalorder %s66, %s69
      %p78 = scmp.eq.s32.totalorder %s35, 1
      %p79 = por %p77, %p78
      %p80 = scmp.ne.s32.totalorder %s69, %s70
      %p81 = scmp.eq.s32.totalorder %s35, 0
      %p82 = por %p80, %p81
      %p83 = scmp.ne.s32.totalorder %s69, %s70
      %p84 = scmp.eq.s32.totalorder %s36, 1
      %p85 = por %p83, %p84
      %p87 = scmp.ne.s32.totalorder %s70, %s86
      %p88 = scmp.eq.s32.totalorder %s36, 0
      %p89 = por %p87, %p88
      %s91 = sadd.s32 %s90, 1
      %p94 = scmp.eq.s32.totalorder %s30, 1
      %p95 = scmp.ne.s32.totalorder %s90, %s92
      %p96 = scmp.eq.s32.totalorder %s30, 0
      %p97 = por %p95, %p96
      %p98 = scmp.ne.s32.totalorder %s90, %s92
      %p99 = scmp.eq.s32.totalorder %s35, 1
      %p100 = por %p98, %p99
      %p101 = scmp.ne.s32.totalorder %s92, %s93
      %p102 = scmp.eq.s32.totalorder %s35, 0
      %p103 = por %p101, %p102
      %p104 = scmp.ne.s32.totalorder %s92, %s93
      %p105 = scmp.eq.s32.totalorder %s36, 1
      %p106 = por %p104, %p105
      %p108 = scmp.ne.s32.totalorder %s93, %s107
      %p109 = scmp.eq.s32.totalorder %s36, 0
      %p110 = por %p108, %p109
      %s112 = sadd.s32 %s111, 1
      %p115 = scmp.eq.s32.totalorder %s30, 1
      %p116 = scmp.ne.s32.totalorder %s111, %s113
      %p117 = scmp.eq.s32.totalorder %s30, 0
      %p118 = por %p116, %p117
      %p119 = scmp.ne.s32.totalorder %s111, %s113
      %p120 = scmp.eq.s32.totalorder %s35, 1
      %p121 = por %p119, %p120
      %p122 = scmp.ne.s32.totalorder %s113, %s114
      %p123 = scmp.eq.s32.totalorder %s35, 0
      %p124 = por %p122, %p123
      %p125 = scmp.ne.s32.totalorder %s113, %s114
      %p126 = scmp.eq.s32.totalorder %s36, 1
      %p127 = por %p125, %p126
      %p129 = scmp.ne.s32.totalorder %s114, %s128
      %p130 = scmp.eq.s32.totalorder %s36, 0
      %p131 = por %p129, %p130
      %s133 = sadd.s32 %s132, 1
      %p136 = scmp.eq.s32.totalorder %s30, 1
      %p137 = scmp.ne.s32.totalorder %s132, %s134
      %p138 = scmp.eq.s32.totalorder %s30, 0
      %p139 = por %p137, %p138
      %p140 = scmp.ne.s32.totalorder %s132, %s134
      %p141 = scmp.eq.s32.totalorder %s35, 1
      %p142 = por %p140, %p141
      %p143 = scmp.ne.s32.totalorder %s134, %s135
      %p144 = scmp.eq.s32.totalorder %s35, 0
      %p145 = por %p143, %p144
      %p146 = scmp.ne.s32.totalorder %s134, %s135
      %p147 = scmp.eq.s32.totalorder %s36, 1
      %p148 = por %p146, %p147
      %p150 = scmp.ne.s32.totalorder %s135, %s149
      %p151 = scmp.eq.s32.totalorder %s36, 0
      %p152 = por %p150, %p151
      %s154 = sadd.s32 %s153, 1
      %p157 = scmp.eq.s32.totalorder %s30, 1
      %p158 = scmp.ne.s32.totalorder %s153, %s155
      %p159 = scmp.eq.s32.totalorder %s30, 0
      %p160 = por %p158, %p159
      %p161 = scmp.ne.s32.totalorder %s153, %s155
      %p162 = scmp.eq.s32.totalorder %s35, 1
      %p163 = por %p161, %p162
      %p164 = scmp.ne.s32.totalorder %s155, %s156
      %p165 = scmp.eq.s32.totalorder %s35, 0
      %p166 = por %p164, %p165
      %p167 = scmp.ne.s32.totalorder %s155, %s156
      %p168 = scmp.eq.s32.totalorder %s36, 1
      %p169 = por %p167, %p168
      %p171 = scmp.ne.s32.totalorder %s156, %s170
      %p172 = scmp.eq.s32.totalorder %s36, 0
      %p173 = por %p171, %p172
      %s175 = sadd.s32 %s174, 1
      %p178 = scmp.eq.s32.totalorder %s30, 1
      %p179 = scmp.ne.s32.totalorder %s174, %s176
      %p180 = scmp.eq.s32.totalorder %s30, 0
      %p181 = por %p179, %p180
      %p182 = scmp.ne.s32.totalorder %s174, %s176
      %p183 = scmp.eq.s32.totalorder %s35, 1
      %p184 = por %p182, %p183
      %p185 = scmp.ne.s32.totalorder %s176, %s177
      %p186 = scmp.eq.s32.totalorder %s35, 0
      %p187 = por %p185, %p186
      %p188 = scmp.ne.s32.totalorder %s176, %s177
      %p189 = scmp.eq.s32.totalorder %s36, 1
      %p190 = por %p188, %p189
      %p192 = scmp.ne.s32.totalorder %s177, %s191
      %p193 = scmp.eq.s32.totalorder %s36, 0
      %p194 = por %p192, %p193
      %s196 = sadd.s32 %s195, 1
      %p199 = scmp.eq.s32.totalorder %s30, 1
      %p200 = scmp.ne.s32.totalorder %s195, %s197
      %p201 = scmp.eq.s32.totalorder %s30, 0
      %p202 = por %p200, %p201
      %p203 = scmp.ne.s32.totalorder %s195, %s197
      %p204 = scmp.eq.s32.totalorder %s35, 1
      %p205 = por %p203, %p204
      %p206 = scmp.ne.s32.totalorder %s197, %s198
      %p207 = scmp.eq.s32.totalorder %s35, 0
      %p208 = por %p206, %p207
      %p209 = scmp.ne.s32.totalorder %s197, %s198
      %p210 = scmp.eq.s32.totalorder %s36, 1
      %p211 = por %p209, %p210
      %p213 = scmp.ne.s32.totalorder %s198, %s212
      %p214 = scmp.eq.s32.totalorder %s36, 0
      %p215 = por %p213, %p214
      %s217 = sadd.s32 %s216, 1
      %p220 = scmp.eq.s32.totalorder %s30, 1
      %p221 = scmp.ne.s32.totalorder %s216, %s218
      %p222 = scmp.eq.s32.totalorder %s30, 0
      %p223 = por %p221, %p222
      %p224 = scmp.ne.s32.totalorder %s216, %s218
      %p225 = scmp.eq.s32.totalorder %s35, 1
      %p226 = por %p224, %p225
      %p227 = scmp.ne.s32.totalorder %s218, %s219
      %p228 = scmp.eq.s32.totalorder %s35, 0
      %p229 = por %p227, %p228
      %p230 = scmp.ne.s32.totalorder %s218, %s219
      %p231 = scmp.eq.s32.totalorder %s36, 1
      %p232 = por %p230, %p231
      %p234 = scmp.ne.s32.totalorder %s219, %s233
      %p235 = scmp.eq.s32.totalorder %s36, 0
      %p236 = por %p234, %p235
      %s237 = ssub.s32 %s30, %s37
      %p238 = scmp.eq.s32.totalorder %s237, 0
      %s240 = sadd.s32 %s239, 1
      %s241 = scalar_select %p238, %s239, %s240
      %p244 = pneg %p238
      %p245 = scmp.eq.s32.totalorder %s30, 1
      %p246 = por %p244, %p245
      %p247 = scmp.ne.s32.totalorder %s239, %s242
      %p248 = scmp.eq.s32.totalorder %s30, 0
      %p249 = por %p247, %p248
      %p250 = scmp.ne.s32.totalorder %s239, %s242
      %p251 = scmp.eq.s32.totalorder %s35, 1
      %p252 = por %p250, %p251
      %p253 = scmp.ne.s32.totalorder %s242, %s243
      %p254 = scmp.eq.s32.totalorder %s35, 0
      %p255 = por %p253, %p254
      %p256 = scmp.ne.s32.totalorder %s242, %s243
      %p257 = scmp.eq.s32.totalorder %s36, 1
      %p258 = por %p256, %p257
      %p260 = scmp.ne.s32.totalorder %s243, %s259
      %p261 = scmp.eq.s32.totalorder %s36, 0
      %p262 = por %p260, %p261
      %s263 = ssub.s32 %s30, %s37
      %p264 = scmp.eq.s32.totalorder %s263, 0
      %s266 = sadd.s32 %s265, 1
      %s267 = scalar_select %p264, %s265, %s266
      %p270 = pneg %p264
      %p271 = scmp.eq.s32.totalorder %s30, 1
      %p272 = por %p270, %p271
      %p273 = scmp.ne.s32.totalorder %s265, %s268
      %p274 = scmp.eq.s32.totalorder %s30, 0
      %p275 = por %p273, %p274
      %p276 = scmp.ne.s32.totalorder %s265, %s268
      %p277 = scmp.eq.s32.totalorder %s35, 1
      %p278 = por %p276, %p277
      %p279 = scmp.ne.s32.totalorder %s268, %s269
      %p280 = scmp.eq.s32.totalorder %s35, 0
      %p281 = por %p279, %p280
      %p282 = scmp.ne.s32.totalorder %s268, %s269
      %p283 = scmp.eq.s32.totalorder %s36, 1
      %p284 = por %p282, %p283
      %p286 = scmp.ne.s32.totalorder %s269, %s285
      %p287 = scmp.eq.s32.totalorder %s36, 0
      %p288 = por %p286, %p287
      %p289 = scmp.le.s32.totalorder 1, %s30
      %p290 = scmp.lt.s32.totalorder %s30, 3
      %p291 = pnand %p289, %p290
      %p292 = pneg %p291
      // Predicated region
      $region9: #{tpu_custom_call.1} parent=5 // pred_check
        _
      $region10: #{tpu_custom_call.1} parent=5 // pred_check_branch
        %294 = sbr.rel (%p291) target = $region12
      $region11: #{tpu_custom_call.1} parent=5 // pred_region
        %s295 = ssub.s32 %s30, 1
        // Predicated region
        $region13: #{tpu_custom_call.1} parent=11 // pred_check
          %p296 = pneg %p103
        $region14: #{tpu_custom_call.1} parent=11 // pred_check_branch
          %298 = sbr.rel (%p296) target = $region16
        $region15: #{tpu_custom_call.1} parent=11 // pred_region
          %s300 = ssub.s32 512, 512
          %301 = vsyncadd [#allocation6], %s300
          %s302 = sshll.u32 [#allocation7], 4
          %s303 = int_to_ptr.vmem [resolvable:$true] %s302
          %308 = dma.hbm_to_vmem [thread:$0]  %s2, 512, %s303, [#allocation6], 64, 64, 4
        $region16: #{tpu_custom_call.1} parent=11 // pred_fallthru
          _
        // Predicated region
        $region17: #{tpu_custom_call.1} parent=11 // pred_check
          %p309 = pneg %p124
        $region18: #{tpu_custom_call.1} parent=11 // pred_check_branch
          %311 = sbr.rel (%p309) target = $region20
        $region19: #{tpu_custom_call.1} parent=11 // pred_region
          _
        $region20: #{tpu_custom_call.1} parent=11 // pred_fallthru
          _
        // Predicated region
        $region21: #{tpu_custom_call.1} parent=11 // pred_check
          %p312 = pneg %p145
        $region22: #{tpu_custom_call.1} parent=11 // pred_check_branch
          %314 = sbr.rel (%p312) target = $region24
        $region23: #{tpu_custom_call.1} parent=11 // pred_region
          %s316 = ssub.s32 512, 512
          %317 = vsyncadd [#allocation9], %s316
          %s318 = sshll.u32 [#allocation8], 4
          %s319 = int_to_ptr.vmem [resolvable:$true] %s318
          %324 = dma.hbm_to_vmem [thread:$0]  %s4, 512, %s319, [#allocation9], 64, 64, 4
        $region24: #{tpu_custom_call.1} parent=11 // pred_fallthru
          _
        // Predicated region
        $region25: #{tpu_custom_call.1} parent=11 // pred_check
          %p325 = pneg %p166
        $region26: #{tpu_custom_call.1} parent=11 // pred_check_branch
          %327 = sbr.rel (%p325) target = $region28
        $region27: #{tpu_custom_call.1} parent=11 // pred_region
          _
        $region28: #{tpu_custom_call.1} parent=11 // pred_fallthru
          _
        // Predicated region
        $region29: #{tpu_custom_call.1} parent=11 // pred_check
          %p328 = pneg %p187
        $region30: #{tpu_custom_call.1} parent=11 // pred_check_branch
          %330 = sbr.rel (%p328) target = $region32
        $region31: #{tpu_custom_call.1} parent=11 // pred_region
          %s332 = ssub.s32 512, 512
          %333 = vsyncadd [#allocation9], %s332
          %s334 = sshll.u32 [#allocation10], 4
          %s335 = int_to_ptr.vmem [resolvable:$true] %s334
          %340 = dma.hbm_to_vmem [thread:$0]  %s6, 512, %s335, [#allocation9], 64, 64, 4
        $region32: #{tpu_custom_call.1} parent=11 // pred_fallthru
          _
        // Predicated region
        $region33: #{tpu_custom_call.1} parent=11 // pred_check
          %p341 = pneg %p208
        $region34: #{tpu_custom_call.1} parent=11 // pred_check_branch
          %343 = sbr.rel (%p341) target = $region36
        $region35: #{tpu_custom_call.1} parent=11 // pred_region
          _
        $region36: #{tpu_custom_call.1} parent=11 // pred_fallthru
          _
        // Predicated region
        $region37: #{tpu_custom_call.1} parent=11 // pred_check
          %p344 = pneg %p229
        $region38: #{tpu_custom_call.1} parent=11 // pred_check_branch
          %346 = sbr.rel (%p344) target = $region40
        $region39: #{tpu_custom_call.1} parent=11 // pred_region
          _
        $region40: #{tpu_custom_call.1} parent=11 // pred_fallthru
          _
      $region12: #{tpu_custom_call.1} parent=5 // pred_fallthru
        _
      %p347 = scmp.lt.s32.totalorder %s30, 2
      // Predicated region
      $region41: #{tpu_custom_call.1} parent=5 // pred_check
        %p348 = pneg %p347
      $region42: #{tpu_custom_call.1} parent=5 // pred_check_branch
        %350 = sbr.rel (%p348) target = $region44
      $region43: #{tpu_custom_call.1} parent=5 // pred_region
        // Predicated region
        $region45: #{tpu_custom_call.1} parent=43 // pred_check
          %p351 = pneg %p50
        $region46: #{tpu_custom_call.1} parent=43 // pred_check_branch
          %353 = sbr.rel (%p351) target = $region48
        $region47: #{tpu_custom_call.1} parent=43 // pred_region
          %s354 = sand.u32 %s40, 1
          %s355 = scalar_lea.sflag [#allocation3], %s354
          %s356 = sand.u32 %s40, 1
          %s357 = smul.addr %s356, 4
          %s358 = scalar_lea.vmem [#allocation2], %s357
          %s360 = ssub.s32 64, 64
          %361 = vsyncadd %s355, %s360
          %s362 = smul.addr %s30, 64
          %s363 = scalar_lea.hbm %s0, %s362
          %s365 = sshll.u32 %s358, 4
          %s366 = int_to_ptr.vmem [resolvable:$true] %s365
          %368 = dma.hbm_to_vmem [thread:$0]  %s363, 64, %s366, %s355
        $region48: #{tpu_custom_call.1} parent=43 // pred_fallthru
          _
        // Predicated region
        $region49: #{tpu_custom_call.1} parent=43 // pred_check
          %p369 = pneg %p76
        $region50: #{tpu_custom_call.1} parent=43 // pred_check_branch
          %371 = sbr.rel (%p369) target = $region52
        $region51: #{tpu_custom_call.1} parent=43 // pred_region
          %s372 = sand.u32 %s30, 1
          %s373 = scalar_lea.sflag [#allocation6], %s372
          %s374 = sand.u32 %s66, 1
          %s375 = smul.addr %s374, 8
          %s376 = scalar_lea.vmem [#allocation5], %s375
          %s378 = ssub.s32 128, 128
          %379 = vsyncadd %s373, %s378
          %s380 = smul.addr %s30, 128
          %s381 = scalar_lea.hbm %s1, %s380
          %s383 = sshll.u32 %s376, 4
          %s384 = int_to_ptr.vmem [resolvable:$true] %s383
          %386 = dma.hbm_to_vmem [thread:$0]  %s381, 128, %s384, %s373
        $region52: #{tpu_custom_call.1} parent=43 // pred_fallthru
          _
      $region44: #{tpu_custom_call.1} parent=5 // pred_fallthru
        _
      %p387 = scmp.le.s32.totalorder 1, %s30
      %p388 = scmp.lt.s32.totalorder %s30, 3
      %p389 = pnand %p387, %p388
      %p390 = pneg %p389
      // Predicated region
      $region53: #{tpu_custom_call.1} parent=5 // pred_check
        _
      $region54: #{tpu_custom_call.1} parent=5 // pred_check_branch
        %392 = sbr.rel (%p389) target = $region56
      $region55: #{tpu_custom_call.1} parent=5 // pred_region
        %s393 = ssub.s32 %s30, 1
        %s394 = sand.u32 %s43, 1
        %s395 = scalar_lea.sflag [#allocation3], %s394
        %s396 = sand.u32 %s43, 1
        %s397 = smul.addr %s396, 4
        %s398 = scalar_lea.vmem [#allocation2], %s397
        // Predicated region
        $region57: #{tpu_custom_call.1} parent=55 // pred_check
          %p399 = pneg %p56
        $region58: #{tpu_custom_call.1} parent=55 // pred_check_branch
          %401 = sbr.rel (%p399) target = $region60
        $region59: #{tpu_custom_call.1} parent=55 // pred_region
          %402 = dma.done %s395, 64
        $region60: #{tpu_custom_call.1} parent=55 // pred_fallthru
          _
        %s403 = sand.u32 %s35, 1
        %s404 = scalar_lea.sflag [#allocation6], %s403
        %s405 = sand.u32 %s69, 1
        %s406 = smul.addr %s405, 8
        %s407 = scalar_lea.vmem [#allocation5], %s406
        // Predicated region
        $region61: #{tpu_custom_call.1} parent=55 // pred_check
          %p408 = pneg %p82
        $region62: #{tpu_custom_call.1} parent=55 // pred_check_branch
          %410 = sbr.rel (%p408) target = $region64
        $region63: #{tpu_custom_call.1} parent=55 // pred_region
          %411 = dma.done %s404, 128
        $region64: #{tpu_custom_call.1} parent=55 // pred_fallthru
          _
        // Predicated region
        $region65: #{tpu_custom_call.1} parent=55 // pred_check
          %p412 = pneg %p103
        $region66: #{tpu_custom_call.1} parent=55 // pred_check_branch
          %414 = sbr.rel (%p412) target = $region68
        $region67: #{tpu_custom_call.1} parent=55 // pred_region
          %415 = dma.done [#allocation6], 512
        $region68: #{tpu_custom_call.1} parent=55 // pred_fallthru
          _
        // Predicated region
        $region69: #{tpu_custom_call.1} parent=55 // pred_check
          %p416 = pneg %p145
        $region70: #{tpu_custom_call.1} parent=55 // pred_check_branch
          %418 = sbr.rel (%p416) target = $region72
        $region71: #{tpu_custom_call.1} parent=55 // pred_region
          %419 = dma.done [#allocation9], 512
        $region72: #{tpu_custom_call.1} parent=55 // pred_fallthru
          _
        // Predicated region
        $region73: #{tpu_custom_call.1} parent=55 // pred_check
          %p420 = pneg %p187
        $region74: #{tpu_custom_call.1} parent=55 // pred_check_branch
          %422 = sbr.rel (%p420) target = $region76
        $region75: #{tpu_custom_call.1} parent=55 // pred_region
          %423 = dma.done [#allocation9], 512
        $region76: #{tpu_custom_call.1} parent=55 // pred_fallthru
          _
        %s424 = sand.u32 %s43, 1
        %s425 = scalar_lea.sflag [#allocation3], %s424
        %s426 = sand.u32 %s43, 1
        %s427 = smul.addr %s426, 4
        %s428 = scalar_lea.vmem [#allocation2], %s427
        %p429 = pneg %p56
        %p430 = pneg %p53
        %s431 = sand.u32 %s35, 1
        %s432 = scalar_lea.sflag [#allocation6], %s431
        %s433 = sand.u32 %s69, 1
        %s434 = smul.addr %s433, 8
        %s435 = scalar_lea.vmem [#allocation5], %s434
        %p436 = pneg %p82
        %p437 = pneg %p79
        %p438 = pneg %p103
        %p439 = pneg %p100
        %p440 = pneg %p124
        %p441 = pneg %p121
        %p442 = pneg %p145
        %p443 = pneg %p142
        %p444 = pneg %p166
        %p445 = pneg %p163
        %p446 = pneg %p187
        %p447 = pneg %p184
        %p448 = pneg %p208
        %p449 = pneg %p205
        %p450 = pneg %p229
        %p451 = pneg %p226
        %p452 = pneg %p255
        %p453 = pneg %p252
        %s454 = sand.u32 %s242, 1
        %s455 = scalar_lea.sflag [#allocation4], %s454
        %s456 = sand.u32 %s242, 1
        %s457 = smul.addr %s456, 8
        %s458 = scalar_lea.vmem [#allocation11], %s457
        %p459 = pneg %p281
        %p460 = pneg %p278
        %s461 = sand.u32 %s268, 1
        %s462 = scalar_lea.sflag [#allocation13], %s461
        %s463 = sand.u32 %s268, 1
        %s464 = smul.addr %s463, 8
        %s465 = scalar_lea.vmem [#allocation12], %s464
        %v467 = vld [vmem:[%s398] sm:$0xf]
        %v468 = vld [vmem:[%s407] sm:$0xff]
        %v469 = vld [vmem:[#allocation7] sm:$0xf]
        %v470 = vld [vmem:[#allocation7 + $0x4] sm:$0xf]
        %v471 = vld [vmem:[#allocation7 + $0x8] sm:$0xf]
        %v472 = vld [vmem:[#allocation7 + $0xc] sm:$0xf]
        %v473 = vld [vmem:[#allocation8] sm:$0xf]
        %v474 = vld [vmem:[#allocation8 + $0x4] sm:$0xf]
        %v475 = vld [vmem:[#allocation8 + $0x8] sm:$0xf]
        %v476 = vld [vmem:[#allocation8 + $0xc] sm:$0xf]
        %v477 = vld [vmem:[#allocation10] sm:$0xf]
        %v478 = vld [vmem:[#allocation10 + $0x4] sm:$0xf]
        %v479 = vld [vmem:[#allocation10 + $0x8] sm:$0xf]
        %v480 = vld [vmem:[#allocation10 + $0xc] sm:$0xf]
        %v481 = vld [vmem:[%s3] sm:$0x1]
        %v483 = vlaneseq
        %v484 = vshrl.u32 %v483, 7
        %v485 = vsub.s32 0, %v484
        %v486 = vrot.slane %v481, %v485
        %v492 = vunpack.c.l.b16 %v469
        %v493 = vunpack.c.l.b16 %v470
        %v494 = vunpack.c.l.b16 %v471
        %v495 = vunpack.c.l.b16 %v472
        %v496 = vpack.c.b16 %v493, %v492
        %v497 = vpack.c.b16 %v495, %v494
        %vm500 = vcmask 261120
        %v502 = vsel %vm500, %v467, 0
        %504 = vmatprep.subr.bf16.mxu0 0
        %505 = vmatpush1.bf16.msra.mxu0 0
        %506 = vmatprep.subr.bf16.mxu0 0
        %507 = vmatpush1.bf16.msra.mxu0 0
        %508 = vmatprep.subr.bf16.mxu0 0
        %509 = vmatpush1.bf16.msra.mxu0 0
        %510 = vmatprep.subr.bf16.mxu0 0
        %511 = vmatpush1.bf16.msra.mxu0 0
        %512 = vmatprep.subr.bf16.mxu0 0
        %513 = vmatpush1.bf16.msra.mxu0 0
        %514 = vmatprep.subr.bf16.mxu0 0
        %515 = vmatpush1.bf16.msra.mxu0 0
        %516 = vmatprep.subr.bf16.mxu0 0
        %517 = vmatpush1.bf16.msra.mxu0 %v497
        %518 = vmatprep.subr.bf16.mxu0 0
        %519 = vmatpush1.bf16.msra.mxu0 %v496
        %520 = vmatprep.subr.bf16.mxu0 0
        %521 = vmatpush2.bf16.msra.mxu0 0
        %522 = vmatprep.subr.bf16.mxu0 0
        %523 = vmatpush2.bf16.msra.mxu0 0
        %524 = vmatprep.subr.bf16.mxu0 0
        %525 = vmatpush2.bf16.msra.mxu0 0
        %526 = vmatprep.subr.bf16.mxu0 0
        %527 = vmatpush2.bf16.msra.mxu0 0
        %528 = vmatprep.subr.bf16.mxu0 0
        %529 = vmatpush2.bf16.msra.mxu0 0
        %530 = vmatprep.subr.bf16.mxu0 0
        %531 = vmatpush2.bf16.msra.mxu0 0
        %532 = vmatprep.subr.bf16.mxu0 0
        %533 = vmatpush2.bf16.msra.mxu0 0
        %534 = vmatprep.subr.bf16.mxu0 0
        %535 = vmatpush2.bf16.msra.mxu0 0
        %536 = vmatprep.mubr.bf16.mxu0 0
        %537 = vmatmul.mubr.bf16.gmra.mxu0 %v502
        %v538 = vpop.f32.mrf.mxu0
        %v539 = vadd.f32 %v486, %v538
        %v540 = vpop.f32.mrf.mxu0
        %v541 = vpop.f32.mrf.mxu0
        %v542 = vpop.f32.mrf.mxu0
        %543 = vdwg.mxu0
        %v544 = vld [vmem:[%s5] sm:$0x1]
        %v546 = vlaneseq
        %v547 = vshrl.u32 %v546, 7
        %v548 = vsub.s32 0, %v547
        %v549 = vrot.slane %v544, %v548
        %v555 = vunpack.c.l.b16 %v473
        %v556 = vunpack.c.l.b16 %v474
        %v557 = vunpack.c.l.b16 %v475
        %v558 = vunpack.c.l.b16 %v476
        %v559 = vpack.c.b16 %v556, %v555
        %v560 = vpack.c.b16 %v558, %v557
        %563 = vmatprep.subr.bf16.mxu0 0
        %564 = vmatpush1.bf16.msra.mxu0 0
        %565 = vmatprep.subr.bf16.mxu0 0
        %566 = vmatpush1.bf16.msra.mxu0 0
        %567 = vmatprep.subr.bf16.mxu0 0
        %568 = vmatpush1.bf16.msra.mxu0 0
        %569 = vmatprep.subr.bf16.mxu0 0
        %570 = vmatpush1.bf16.msra.mxu0 0
        %571 = vmatprep.subr.bf16.mxu0 0
        %572 = vmatpush1.bf16.msra.mxu0 0
        %573 = vmatprep.subr.bf16.mxu0 0
        %574 = vmatpush1.bf16.msra.mxu0 0
        %575 = vmatprep.subr.bf16.mxu0 0
        %576 = vmatpush1.bf16.msra.mxu0 %v560
        %577 = vmatprep.subr.bf16.mxu0 0
        %578 = vmatpush1.bf16.msra.mxu0 %v559
        %579 = vmatprep.subr.bf16.mxu0 0
        %580 = vmatpush2.bf16.msra.mxu0 0
        %581 = vmatprep.subr.bf16.mxu0 0
        %582 = vmatpush2.bf16.msra.mxu0 0
        %583 = vmatprep.subr.bf16.mxu0 0
        %584 = vmatpush2.bf16.msra.mxu0 0
        %585 = vmatprep.subr.bf16.mxu0 0
        %586 = vmatpush2.bf16.msra.mxu0 0
        %587 = vmatprep.subr.bf16.mxu0 0
        %588 = vmatpush2.bf16.msra.mxu0 0
        %589 = vmatprep.subr.bf16.mxu0 0
        %590 = vmatpush2.bf16.msra.mxu0 0
        %591 = vmatprep.subr.bf16.mxu0 0
        %592 = vmatpush2.bf16.msra.mxu0 0
        %593 = vmatprep.subr.bf16.mxu0 0
        %594 = vmatpush2.bf16.msra.mxu0 0
        %595 = vmatprep.mubr.bf16.mxu0 0
        %596 = vmatmul.mubr.bf16.gmra.mxu0 %v502
        %v597 = vpop.f32.mrf.mxu0
        %v598 = vadd.f32 %v549, %v597
        %v599 = vpop.f32.mrf.mxu0
        %v600 = vpop.f32.mrf.mxu0
        %v601 = vpop.f32.mrf.mxu0
        %602 = vdwg.mxu0
        %v603 = vpack.c.bf16 %v539, %v539
        %v604 = vpack.c.bf16 %v598, %v598
        %v606 = vsel %vm500, %v603, 0
        %v609 = vsel %vm500, %v604, 0
        %611 = vmatprep.subr.bf16.mxu0 0
        %612 = vmatpush1.bf16.xpose.msra.mxu0 0
        %613 = vmatprep.subr.bf16.mxu0 0
        %614 = vmatpush1.bf16.xpose.msra.mxu0 0
        %615 = vmatprep.subr.bf16.mxu0 0
        %616 = vmatpush1.bf16.xpose.msra.mxu0 0
        %617 = vmatprep.subr.bf16.mxu0 0
        %618 = vmatpush1.bf16.xpose.msra.mxu0 0
        %619 = vmatprep.subr.bf16.mxu0 0
        %620 = vmatpush1.bf16.xpose.msra.mxu0 0
        %621 = vmatprep.subr.bf16.mxu0 0
        %622 = vmatpush1.bf16.xpose.msra.mxu0 0
        %623 = vmatprep.subr.bf16.mxu0 0
        %624 = vmatpush1.bf16.xpose.msra.mxu0 0
        %625 = vmatprep.subr.bf16.mxu0 0
        %626 = vmatpush1.bf16.xpose.msra.mxu0 %v609
        %627 = vmatprep.subr.bf16.mxu0 0
        %628 = vmatpush2.bf16.xpose.msra.mxu0 0
        %629 = vmatprep.subr.bf16.mxu0 0
        %630 = vmatpush2.bf16.xpose.msra.mxu0 0
        %631 = vmatprep.subr.bf16.mxu0 0
        %632 = vmatpush2.bf16.xpose.msra.mxu0 0
        %633 = vmatprep.subr.bf16.mxu0 0
        %634 = vmatpush2.bf16.xpose.msra.mxu0 0
        %635 = vmatprep.subr.bf16.mxu0 0
        %636 = vmatpush2.bf16.xpose.msra.mxu0 0
        %637 = vmatprep.subr.bf16.mxu0 0
        %638 = vmatpush2.bf16.xpose.msra.mxu0 0
        %639 = vmatprep.subr.bf16.mxu0 0
        %640 = vmatpush2.bf16.xpose.msra.mxu0 0
        %641 = vmatprep.subr.bf16.mxu0 0
        %642 = vmatpush2.bf16.xpose.msra.mxu0 0
        %643 = vmatprep.mubr.bf16.mxu0 0
        %644 = vmatmul.mubr.bf16.gmra.mxu0 %v606
        %v645 = vpop.f32.mrf.mxu0
        %v646 = vadd.f32 %v468, %v645
        %v647 = vpop.f32.mrf.mxu0
        %v648 = vpop.f32.mrf.mxu0
        %v649 = vpop.f32.mrf.mxu0
        %650 = vdwg.mxu0
        %vm651 = vcmask 64512
        %v652 = vsel %vm651, %v646, -inf
        %653 = vmax.xlane.f32.xlu0 %v652
        %v654 = vpop.xlane.xlu0 %653
        %v655 = vsub.f32 %v646, %v654
        %v656 = vmul.f32 %v655, 1.442695
        %v657 = vpow.pop %v656
        %v658 = vsel %vm651, %v657, 0.0
        %659 = vadd.xlane.f32.xlu0 %v658
        %v660 = vpop.xlane.xlu0 %659
        %v661 = vrcp.pop %v660
        %v662 = vmul.f32 %v657, %v661
        %v663 = vpack.c.bf16 %v662, %v662
        %v665 = vsel %vm651, %v663, 0
        %vm667 = vcmask 1043456
        %v668 = vsel %vm667, %v467, 0
        %670 = vmatprep.subr.bf16.mxu0 0
        %671 = vmatpush1.bf16.msra.mxu0 0
        %672 = vmatprep.subr.bf16.mxu0 0
        %673 = vmatpush1.bf16.msra.mxu0 0
        %674 = vmatprep.subr.bf16.mxu0 0
        %675 = vmatpush1.bf16.msra.mxu0 0
        %676 = vmatprep.subr.bf16.mxu0 0
        %677 = vmatpush1.bf16.msra.mxu0 0
        %678 = vmatprep.subr.bf16.mxu0 0
        %679 = vmatpush1.bf16.msra.mxu0 0
        %680 = vmatprep.subr.bf16.mxu0 0
        %681 = vmatpush1.bf16.msra.mxu0 0
        %682 = vmatprep.subr.bf16.mxu0 0
        %683 = vmatpush1.bf16.msra.mxu0 0
        %684 = vmatprep.subr.bf16.mxu0 0
        %685 = vmatpush1.bf16.msra.mxu0 %v668
        %686 = vmatprep.subr.bf16.mxu0 0
        %687 = vmatpush2.bf16.msra.mxu0 0
        %688 = vmatprep.subr.bf16.mxu0 0
        %689 = vmatpush2.bf16.msra.mxu0 0
        %690 = vmatprep.subr.bf16.mxu0 0
        %691 = vmatpush2.bf16.msra.mxu0 0
        %692 = vmatprep.subr.bf16.mxu0 0
        %693 = vmatpush2.bf16.msra.mxu0 0
        %694 = vmatprep.subr.bf16.mxu0 0
        %695 = vmatpush2.bf16.msra.mxu0 0
        %696 = vmatprep.subr.bf16.mxu0 0
        %697 = vmatpush2.bf16.msra.mxu0 0
        %698 = vmatprep.subr.bf16.mxu0 0
        %699 = vmatpush2.bf16.msra.mxu0 0
        %700 = vmatprep.subr.bf16.mxu0 0
        %701 = vmatpush2.bf16.msra.mxu0 0
        %702 = vmatprep.mubr.bf16.mxu0 0
        %703 = vmatmul.mubr.bf16.gmra.mxu0 %v665
        %v704 = vpop.f32.mrf.mxu0
        %v705 = vadd.f32 0.0, %v704
        %v706 = vpop.f32.mrf.mxu0
        %v707 = vpop.f32.mrf.mxu0
        %v708 = vpop.f32.mrf.mxu0
        %709 = vdwg.mxu0
        %v710 = vpack.c.bf16 %v705, %v705
        %v715 = vunpack.c.l.b16 %v477
        %v716 = vunpack.c.l.b16 %v478
        %v717 = vunpack.c.l.b16 %v479
        %v718 = vunpack.c.l.b16 %v480
        %v719 = vpack.c.b16 %v716, %v715
        %v720 = vpack.c.b16 %v718, %v717
        %v724 = vsel %vm500, %v710, 0
        %726 = vmatprep.subr.bf16.mxu0 0
        %727 = vmatpush1.bf16.msra.mxu0 0
        %728 = vmatprep.subr.bf16.mxu0 0
        %729 = vmatpush1.bf16.msra.mxu0 0
        %730 = vmatprep.subr.bf16.mxu0 0
        %731 = vmatpush1.bf16.msra.mxu0 0
        %732 = vmatprep.subr.bf16.mxu0 0
        %733 = vmatpush1.bf16.msra.mxu0 0
        %734 = vmatprep.subr.bf16.mxu0 0
        %735 = vmatpush1.bf16.msra.mxu0 0
        %736 = vmatprep.subr.bf16.mxu0 0
        %737 = vmatpush1.bf16.msra.mxu0 0
        %738 = vmatprep.subr.bf16.mxu0 0
        %739 = vmatpush1.bf16.msra.mxu0 %v720
        %740 = vmatprep.subr.bf16.mxu0 0
        %741 = vmatpush1.bf16.msra.mxu0 %v719
        %742 = vmatprep.subr.bf16.mxu0 0
        %743 = vmatpush2.bf16.msra.mxu0 0
        %744 = vmatprep.subr.bf16.mxu0 0
        %745 = vmatpush2.bf16.msra.mxu0 0
        %746 = vmatprep.subr.bf16.mxu0 0
        %747 = vmatpush2.bf16.msra.mxu0 0
        %748 = vmatprep.subr.bf16.mxu0 0
        %749 = vmatpush2.bf16.msra.mxu0 0
        %750 = vmatprep.subr.bf16.mxu0 0
        %751 = vmatpush2.bf16.msra.mxu0 0
        %752 = vmatprep.subr.bf16.mxu0 0
        %753 = vmatpush2.bf16.msra.mxu0 0
        %754 = vmatprep.subr.bf16.mxu0 0
        %755 = vmatpush2.bf16.msra.mxu0 0
        %756 = vmatprep.subr.bf16.mxu0 0
        %757 = vmatpush2.bf16.msra.mxu0 0
        %758 = vmatprep.mubr.bf16.mxu0 0
        %759 = vmatmul.mubr.bf16.gmra.mxu0 %v724
        %v760 = vpop.f32.mrf.mxu0
        %v761 = vadd.f32 0.0, %v760
        %v762 = vpop.f32.mrf.mxu0
        %v763 = vpop.f32.mrf.mxu0
        %v764 = vpop.f32.mrf.mxu0
        %765 = vdwg.mxu0
        %v766 = vsel %vm500, %v761, 0.0
        %767 = vadd.xlane.f32.xlu0 %v766
        %v768 = vpop.xlane.xlu0 %767
        %v769 = vrcp.pop 32.0
        %v770 = vmul.f32 %v768, %v769
        %v771 = vsub.f32 %v761, %v770
        %v772 = vmul.f32 %v771, %v771
        %v773 = vsel %vm500, %v772, 0.0
        %774 = vadd.xlane.f32.xlu0 %v773
        %v775 = vpop.xlane.xlu0 %774
        %v776 = vmul.f32 %v775, %v769
        %v777 = vadd.f32 %v776, 1e-05
        %v778 = vrsqrt.pop %v777
        %v779 = vmul.f32 %v771, %v778
        %v780 = vld [vmem:[%s7] sm:$0x1]
        %v782 = vlaneseq
        %v783 = vshrl.u32 %v782, 7
        %v784 = vsub.s32 0, %v783
        %v785 = vrot.slane %v780, %v784
        %v787 = vmul.f32 %v779, %v785
        %v788 = vld [vmem:[%s8] sm:$0x1]
        %v790 = vlaneseq
        %v791 = vshrl.u32 %v790, 7
        %v792 = vsub.s32 0, %v791
        %v793 = vrot.slane %v788, %v792
        %v795 = vadd.f32 %v787, %v793
        %v796 = vmax.f32 %v795, 0.0
        %v797 = vadd.f32 %v796, 0.0
        %s798 = scalar_lea.vmem [#allocation7], 16
        %v799 = vld [vmem:[%s798] sm:$0xf]
        %v800 = vld [vmem:[%s798 + $0x4] sm:$0xf]
        %v801 = vld [vmem:[%s798 + $0x8] sm:$0xf]
        %v802 = vld [vmem:[%s798 + $0xc] sm:$0xf]
        %s803 = scalar_lea.vmem [#allocation8], 16
        %v804 = vld [vmem:[%s803] sm:$0xf]
        %v805 = vld [vmem:[%s803 + $0x4] sm:$0xf]
        %v806 = vld [vmem:[%s803 + $0x8] sm:$0xf]
        %v807 = vld [vmem:[%s803 + $0xc] sm:$0xf]
        %s808 = scalar_lea.vmem [#allocation10], 16
        %v809 = vld [vmem:[%s808] sm:$0xf]
        %v810 = vld [vmem:[%s808 + $0x4] sm:$0xf]
        %v811 = vld [vmem:[%s808 + $0x8] sm:$0xf]
        %v812 = vld [vmem:[%s808 + $0xc] sm:$0xf]
        %s813 = scalar_lea.vmem %s3, 1
        %v814 = vld [vmem:[%s813] sm:$0x1]
        %v816 = vlaneseq
        %v817 = vshrl.u32 %v816, 7
        %v818 = vsub.s32 0, %v817
        %v819 = vrot.slane %v814, %v818
        %v825 = vunpack.c.l.b16 %v799
        %v826 = vunpack.c.l.b16 %v800
        %v827 = vunpack.c.l.b16 %v801
        %v828 = vunpack.c.l.b16 %v802
        %v829 = vpack.c.b16 %v826, %v825
        %v830 = vpack.c.b16 %v828, %v827
        %833 = vmatprep.subr.bf16.mxu0 0
        %834 = vmatpush1.bf16.msra.mxu0 0
        %835 = vmatprep.subr.bf16.mxu0 0
        %836 = vmatpush1.bf16.msra.mxu0 0
        %837 = vmatprep.subr.bf16.mxu0 0
        %838 = vmatpush1.bf16.msra.mxu0 0
        %839 = vmatprep.subr.bf16.mxu0 0
        %840 = vmatpush1.bf16.msra.mxu0 0
        %841 = vmatprep.subr.bf16.mxu0 0
        %842 = vmatpush1.bf16.msra.mxu0 0
        %843 = vmatprep.subr.bf16.mxu0 0
        %844 = vmatpush1.bf16.msra.mxu0 0
        %845 = vmatprep.subr.bf16.mxu0 0
        %846 = vmatpush1.bf16.msra.mxu0 %v830
        %847 = vmatprep.subr.bf16.mxu0 0
        %848 = vmatpush1.bf16.msra.mxu0 %v829
        %849 = vmatprep.subr.bf16.mxu0 0
        %850 = vmatpush2.bf16.msra.mxu0 0
        %851 = vmatprep.subr.bf16.mxu0 0
        %852 = vmatpush2.bf16.msra.mxu0 0
        %853 = vmatprep.subr.bf16.mxu0 0
        %854 = vmatpush2.bf16.msra.mxu0 0
        %855 = vmatprep.subr.bf16.mxu0 0
        %856 = vmatpush2.bf16.msra.mxu0 0
        %857 = vmatprep.subr.bf16.mxu0 0
        %858 = vmatpush2.bf16.msra.mxu0 0
        %859 = vmatprep.subr.bf16.mxu0 0
        %860 = vmatpush2.bf16.msra.mxu0 0
        %861 = vmatprep.subr.bf16.mxu0 0
        %862 = vmatpush2.bf16.msra.mxu0 0
        %863 = vmatprep.subr.bf16.mxu0 0
        %864 = vmatpush2.bf16.msra.mxu0 0
        %865 = vmatprep.mubr.bf16.mxu0 0
        %866 = vmatmul.mubr.bf16.gmra.mxu0 %v502
        %v867 = vpop.f32.mrf.mxu0
        %v868 = vadd.f32 %v819, %v867
        %v869 = vpop.f32.mrf.mxu0
        %v870 = vpop.f32.mrf.mxu0
        %v871 = vpop.f32.mrf.mxu0
        %872 = vdwg.mxu0
        %s873 = scalar_lea.vmem %s5, 1
        %v874 = vld [vmem:[%s873] sm:$0x1]
        %v876 = vlaneseq
        %v877 = vshrl.u32 %v876, 7
        %v878 = vsub.s32 0, %v877
        %v879 = vrot.slane %v874, %v878
        %v885 = vunpack.c.l.b16 %v804
        %v886 = vunpack.c.l.b16 %v805
        %v887 = vunpack.c.l.b16 %v806
        %v888 = vunpack.c.l.b16 %v807
        %v889 = vpack.c.b16 %v886, %v885
        %v890 = vpack.c.b16 %v888, %v887
        %893 = vmatprep.subr.bf16.mxu0 0
        %894 = vmatpush1.bf16.msra.mxu0 0
        %895 = vmatprep.subr.bf16.mxu0 0
        %896 = vmatpush1.bf16.msra.mxu0 0
        %897 = vmatprep.subr.bf16.mxu0 0
        %898 = vmatpush1.bf16.msra.mxu0 0
        %899 = vmatprep.subr.bf16.mxu0 0
        %900 = vmatpush1.bf16.msra.mxu0 0
        %901 = vmatprep.subr.bf16.mxu0 0
        %902 = vmatpush1.bf16.msra.mxu0 0
        %903 = vmatprep.subr.bf16.mxu0 0
        %904 = vmatpush1.bf16.msra.mxu0 0
        %905 = vmatprep.subr.bf16.mxu0 0
        %906 = vmatpush1.bf16.msra.mxu0 %v890
        %907 = vmatprep.subr.bf16.mxu0 0
        %908 = vmatpush1.bf16.msra.mxu0 %v889
        %909 = vmatprep.subr.bf16.mxu0 0
        %910 = vmatpush2.bf16.msra.mxu0 0
        %911 = vmatprep.subr.bf16.mxu0 0
        %912 = vmatpush2.bf16.msra.mxu0 0
        %913 = vmatprep.subr.bf16.mxu0 0
        %914 = vmatpush2.bf16.msra.mxu0 0
        %915 = vmatprep.subr.bf16.mxu0 0
        %916 = vmatpush2.bf16.msra.mxu0 0
        %917 = vmatprep.subr.bf16.mxu0 0
        %918 = vmatpush2.bf16.msra.mxu0 0
        %919 = vmatprep.subr.bf16.mxu0 0
        %920 = vmatpush2.bf16.msra.mxu0 0
        %921 = vmatprep.subr.bf16.mxu0 0
        %922 = vmatpush2.bf16.msra.mxu0 0
        %923 = vmatprep.subr.bf16.mxu0 0
        %924 = vmatpush2.bf16.msra.mxu0 0
        %925 = vmatprep.mubr.bf16.mxu0 0
        %926 = vmatmul.mubr.bf16.gmra.mxu0 %v502
        %v927 = vpop.f32.mrf.mxu0
        %v928 = vadd.f32 %v879, %v927
        %v929 = vpop.f32.mrf.mxu0
        %v930 = vpop.f32.mrf.mxu0
        %v931 = vpop.f32.mrf.mxu0
        %932 = vdwg.mxu0
        %v933 = vpack.c.bf16 %v868, %v868
        %v934 = vpack.c.bf16 %v928, %v928
        %v936 = vsel %vm500, %v933, 0
        %v939 = vsel %vm500, %v934, 0
        %941 = vmatprep.subr.bf16.mxu0 0
        %942 = vmatpush1.bf16.xpose.msra.mxu0 0
        %943 = vmatprep.subr.bf16.mxu0 0
        %944 = vmatpush1.bf16.xpose.msra.mxu0 0
        %945 = vmatprep.subr.bf16.mxu0 0
        %946 = vmatpush1.bf16.xpose.msra.mxu0 0
        %947 = vmatprep.subr.bf16.mxu0 0
        %948 = vmatpush1.bf16.xpose.msra.mxu0 0
        %949 = vmatprep.subr.bf16.mxu0 0
        %950 = vmatpush1.bf16.xpose.msra.mxu0 0
        %951 = vmatprep.subr.bf16.mxu0 0
        %952 = vmatpush1.bf16.xpose.msra.mxu0 0
        %953 = vmatprep.subr.bf16.mxu0 0
        %954 = vmatpush1.bf16.xpose.msra.mxu0 0
        %955 = vmatprep.subr.bf16.mxu0 0
        %956 = vmatpush1.bf16.xpose.msra.mxu0 %v939
        %957 = vmatprep.subr.bf16.mxu0 0
        %958 = vmatpush2.bf16.xpose.msra.mxu0 0
        %959 = vmatprep.subr.bf16.mxu0 0
        %960 = vmatpush2.bf16.xpose.msra.mxu0 0
        %961 = vmatprep.subr.bf16.mxu0 0
        %962 = vmatpush2.bf16.xpose.msra.mxu0 0
        %963 = vmatprep.subr.bf16.mxu0 0
        %964 = vmatpush2.bf16.xpose.msra.mxu0 0
        %965 = vmatprep.subr.bf16.mxu0 0
        %966 = vmatpush2.bf16.xpose.msra.mxu0 0
        %967 = vmatprep.subr.bf16.mxu0 0
        %968 = vmatpush2.bf16.xpose.msra.mxu0 0
        %969 = vmatprep.subr.bf16.mxu0 0
        %970 = vmatpush2.bf16.xpose.msra.mxu0 0
        %971 = vmatprep.subr.bf16.mxu0 0
        %972 = vmatpush2.bf16.xpose.msra.mxu0 0
        %973 = vmatprep.mubr.bf16.mxu0 0
        %974 = vmatmul.mubr.bf16.gmra.mxu0 %v936
        %v975 = vpop.f32.mrf.mxu0
        %v976 = vadd.f32 %v468, %v975
        %v977 = vpop.f32.mrf.mxu0
        %v978 = vpop.f32.mrf.mxu0
        %v979 = vpop.f32.mrf.mxu0
        %980 = vdwg.mxu0
        %v981 = vsel %vm651, %v976, -inf
        %982 = vmax.xlane.f32.xlu0 %v981
        %v983 = vpop.xlane.xlu0 %982
        %v984 = vsub.f32 %v976, %v983
        %v985 = vmul.f32 %v984, 1.442695
        %v986 = vpow.pop %v985
        %v987 = vsel %vm651, %v986, 0.0
        %988 = vadd.xlane.f32.xlu0 %v987
        %v989 = vpop.xlane.xlu0 %988
        %v990 = vrcp.pop %v989
        %v991 = vmul.f32 %v986, %v990
        %v992 = vsel %vm651, %v991, 0.0
        %993 = vst [vmem:[%s465] sm:$0xff] %v992
        %v994 = vpack.c.bf16 %v991, %v991
        %v996 = vsel %vm651, %v994, 0
        %998 = vmatprep.subr.bf16.mxu0 0
        %999 = vmatpush1.bf16.msra.mxu0 0
        %1000 = vmatprep.subr.bf16.mxu0 0
        %1001 = vmatpush1.bf16.msra.mxu0 0
        %1002 = vmatprep.subr.bf16.mxu0 0
        %1003 = vmatpush1.bf16.msra.mxu0 0
        %1004 = vmatprep.subr.bf16.mxu0 0
        %1005 = vmatpush1.bf16.msra.mxu0 0
        %1006 = vmatprep.subr.bf16.mxu0 0
        %1007 = vmatpush1.bf16.msra.mxu0 0
        %1008 = vmatprep.subr.bf16.mxu0 0
        %1009 = vmatpush1.bf16.msra.mxu0 0
        %1010 = vmatprep.subr.bf16.mxu0 0
        %1011 = vmatpush1.bf16.msra.mxu0 0
        %1012 = vmatprep.subr.bf16.mxu0 0
        %1013 = vmatpush1.bf16.msra.mxu0 %v668
        %1014 = vmatprep.subr.bf16.mxu0 0
        %1015 = vmatpush2.bf16.msra.mxu0 0
        %1016 = vmatprep.subr.bf16.mxu0 0
        %1017 = vmatpush2.bf16.msra.mxu0 0
        %1018 = vmatprep.subr.bf16.mxu0 0
        %1019 = vmatpush2.bf16.msra.mxu0 0
        %1020 = vmatprep.subr.bf16.mxu0 0
        %1021 = vmatpush2.bf16.msra.mxu0 0
        %1022 = vmatprep.subr.bf16.mxu0 0
        %1023 = vmatpush2.bf16.msra.mxu0 0
        %1024 = vmatprep.subr.bf16.mxu0 0
        %1025 = vmatpush2.bf16.msra.mxu0 0
        %1026 = vmatprep.subr.bf16.mxu0 0
        %1027 = vmatpush2.bf16.msra.mxu0 0
        %1028 = vmatprep.subr.bf16.mxu0 0
        %1029 = vmatpush2.bf16.msra.mxu0 0
        %1030 = vmatprep.mubr.bf16.mxu0 0
        %1031 = vmatmul.mubr.bf16.gmra.mxu0 %v996
        %v1032 = vpop.f32.mrf.mxu0
        %v1033 = vadd.f32 0.0, %v1032
        %v1034 = vpop.f32.mrf.mxu0
        %v1035 = vpop.f32.mrf.mxu0
        %v1036 = vpop.f32.mrf.mxu0
        %1037 = vdwg.mxu0
        %v1038 = vpack.c.bf16 %v1033, %v1033
        %v1043 = vunpack.c.l.b16 %v809
        %v1044 = vunpack.c.l.b16 %v810
        %v1045 = vunpack.c.l.b16 %v811
        %v1046 = vunpack.c.l.b16 %v812
        %v1047 = vpack.c.b16 %v1044, %v1043
        %v1048 = vpack.c.b16 %v1046, %v1045
        %v1052 = vsel %vm500, %v1038, 0
        %1054 = vmatprep.subr.bf16.mxu0 0
        %1055 = vmatpush1.bf16.msra.mxu0 0
        %1056 = vmatprep.subr.bf16.mxu0 0
        %1057 = vmatpush1.bf16.msra.mxu0 0
        %1058 = vmatprep.subr.bf16.mxu0 0
        %1059 = vmatpush1.bf16.msra.mxu0 0
        %1060 = vmatprep.subr.bf16.mxu0 0
        %1061 = vmatpush1.bf16.msra.mxu0 0
        %1062 = vmatprep.subr.bf16.mxu0 0
        %1063 = vmatpush1.bf16.msra.mxu0 0
        %1064 = vmatprep.subr.bf16.mxu0 0
        %1065 = vmatpush1.bf16.msra.mxu0 0
        %1066 = vmatprep.subr.bf16.mxu0 0
        %1067 = vmatpush1.bf16.msra.mxu0 %v1048
        %1068 = vmatprep.subr.bf16.mxu0 0
        %1069 = vmatpush1.bf16.msra.mxu0 %v1047
        %1070 = vmatprep.subr.bf16.mxu0 0
        %1071 = vmatpush2.bf16.msra.mxu0 0
        %1072 = vmatprep.subr.bf16.mxu0 0
        %1073 = vmatpush2.bf16.msra.mxu0 0
        %1074 = vmatprep.subr.bf16.mxu0 0
        %1075 = vmatpush2.bf16.msra.mxu0 0
        %1076 = vmatprep.subr.bf16.mxu0 0
        %1077 = vmatpush2.bf16.msra.mxu0 0
        %1078 = vmatprep.subr.bf16.mxu0 0
        %1079 = vmatpush2.bf16.msra.mxu0 0
        %1080 = vmatprep.subr.bf16.mxu0 0
        %1081 = vmatpush2.bf16.msra.mxu0 0
        %1082 = vmatprep.subr.bf16.mxu0 0
        %1083 = vmatpush2.bf16.msra.mxu0 0
        %1084 = vmatprep.subr.bf16.mxu0 0
        %1085 = vmatpush2.bf16.msra.mxu0 0
        %1086 = vmatprep.mubr.bf16.mxu0 0
        %1087 = vmatmul.mubr.bf16.gmra.mxu0 %v1052
        %v1088 = vpop.f32.mrf.mxu0
        %v1089 = vadd.f32 0.0, %v1088
        %v1090 = vpop.f32.mrf.mxu0
        %v1091 = vpop.f32.mrf.mxu0
        %v1092 = vpop.f32.mrf.mxu0
        %1093 = vdwg.mxu0
        %v1094 = vsel %vm500, %v1089, 0.0
        %1095 = vadd.xlane.f32.xlu0 %v1094
        %v1096 = vpop.xlane.xlu0 %1095
        %v1097 = vmul.f32 %v1096, %v769
        %v1098 = vsub.f32 %v1089, %v1097
        %v1099 = vmul.f32 %v1098, %v1098
        %v1100 = vsel %vm500, %v1099, 0.0
        %1101 = vadd.xlane.f32.xlu0 %v1100
        %v1102 = vpop.xlane.xlu0 %1101
        %v1103 = vmul.f32 %v1102, %v769
        %v1104 = vadd.f32 %v1103, 1e-05
        %v1105 = vrsqrt.pop %v1104
        %v1106 = vmul.f32 %v1098, %v1105
        %s1107 = scalar_lea.vmem %s7, 1
        %v1108 = vld [vmem:[%s1107] sm:$0x1]
        %v1110 = vlaneseq
        %v1111 = vshrl.u32 %v1110, 7
        %v1112 = vsub.s32 0, %v1111
        %v1113 = vrot.slane %v1108, %v1112
        %v1115 = vmul.f32 %v1106, %v1113
        %s1116 = scalar_lea.vmem %s8, 1
        %v1117 = vld [vmem:[%s1116] sm:$0x1]
        %v1119 = vlaneseq
        %v1120 = vshrl.u32 %v1119, 7
        %v1121 = vsub.s32 0, %v1120
        %v1122 = vrot.slane %v1117, %v1121
        %v1124 = vadd.f32 %v1115, %v1122
        %v1125 = vmax.f32 %v1124, 0.0
        %v1126 = vadd.f32 %v797, %v1125
        %1127 = vst.msk [vmem:[%s458] sm:$0xff] %vm500, %v1126
        %s1128 = sand.u32 %s242, 1
        %s1129 = scalar_lea.sflag [#allocation4], %s1128
        %s1130 = sand.u32 %s242, 1
        %s1131 = smul.addr %s1130, 8
        %s1132 = scalar_lea.vmem [#allocation11], %s1131
        %s1133 = sand.u32 %s268, 1
        %s1134 = scalar_lea.sflag [#allocation13], %s1133
        %s1135 = sand.u32 %s268, 1
        %s1136 = smul.addr %s1135, 8
        %s1137 = scalar_lea.vmem [#allocation12], %s1136
        // Predicated region
        $region77: #{tpu_custom_call.1} parent=55 // pred_check
          %p1138 = pneg %p252
        $region78: #{tpu_custom_call.1} parent=55 // pred_check_branch
          %1140 = sbr.rel (%p1138) target = $region80
        $region79: #{tpu_custom_call.1} parent=55 // pred_region
          %s1142 = ssub.s32 128, 128
          %1143 = vsyncadd %s1129, %s1142
          %s1144 = smul.addr %s35, 128
          %s1145 = scalar_lea.hbm %s9, %s1144
          %s1147 = sshll.u32 %s1132, 4
          %s1148 = int_to_ptr.vmem [resolvable:$true] %s1147
          %1150 = dma.vmem_to_hbm [thread:$0]  %s1148, 128, %s1145, %s1129
        $region80: #{tpu_custom_call.1} parent=55 // pred_fallthru
          _
        // Predicated region
        $region81: #{tpu_custom_call.1} parent=55 // pred_check
          %p1151 = pneg %p278
        $region82: #{tpu_custom_call.1} parent=55 // pred_check_branch
          %1153 = sbr.rel (%p1151) target = $region84
        $region83: #{tpu_custom_call.1} parent=55 // pred_region
          %s1155 = ssub.s32 128, 128
          %1156 = vsyncadd %s1134, %s1155
          %s1157 = smul.addr %s35, 128
          %s1158 = scalar_lea.hbm %s10, %s1157
          %s1160 = sshll.u32 %s1137, 4
          %s1161 = int_to_ptr.vmem [resolvable:$true] %s1160
          %1163 = dma.vmem_to_hbm [thread:$0]  %s1161, 128, %s1158, %s1134
        $region84: #{tpu_custom_call.1} parent=55 // pred_fallthru
          _
      $region56: #{tpu_custom_call.1} parent=5 // pred_fallthru
        _
      %p1164 = scmp.le.s32.totalorder 2, %s30
      // Predicated region
      $region85: #{tpu_custom_call.1} parent=5 // pred_check
        %p1165 = pneg %p1164
      $region86: #{tpu_custom_call.1} parent=5 // pred_check_branch
        %1167 = sbr.rel (%p1165) target = $region88
      $region87: #{tpu_custom_call.1} parent=5 // pred_region
        %s1168 = ssub.s32 %s30, 2
        // Predicated region
        $region89: #{tpu_custom_call.1} parent=87 // pred_check
          %p1169 = pneg %p258
        $region90: #{tpu_custom_call.1} parent=87 // pred_check_branch
          %1171 = sbr.rel (%p1169) target = $region92
        $region91: #{tpu_custom_call.1} parent=87 // pred_region
          %s1172 = sand.u32 %s243, 1
          %s1173 = scalar_lea.sflag [#allocation4], %s1172
          %s1174 = sand.u32 %s243, 1
          %s1175 = smul.addr %s1174, 8
          %s1176 = scalar_lea.vmem [#allocation11], %s1175
          %1177 = dma.done %s1173, 128
        $region92: #{tpu_custom_call.1} parent=87 // pred_fallthru
          _
        // Predicated region
        $region93: #{tpu_custom_call.1} parent=87 // pred_check
          %p1178 = pneg %p284
        $region94: #{tpu_custom_call.1} parent=87 // pred_check_branch
          %1180 = sbr.rel (%p1178) target = $region96
        $region95: #{tpu_custom_call.1} parent=87 // pred_region
          %s1181 = sand.u32 %s269, 1
          %s1182 = scalar_lea.sflag [#allocation13], %s1181
          %s1183 = sand.u32 %s269, 1
          %s1184 = smul.addr %s1183, 8
          %s1185 = scalar_lea.vmem [#allocation12], %s1184
          %1186 = dma.done %s1182, 128
        $region96: #{tpu_custom_call.1} parent=87 // pred_fallthru
          _
      $region88: #{tpu_custom_call.1} parent=5 // pred_fallthru
        _
    $region6: #{tpu_custom_call.1} parent=1 // loop_footer
      %s34 = sadd.s32 1, %s30
    $region7: #{tpu_custom_call.1} parent=1 // loop_footer_branch
      %29 = sbr.rel target = $region3
    $region8: #{tpu_custom_call.1} parent=1 // loop_exit
      _
    %1187 = vsyncpa [#allocation3], 1
    %s1188 = scalar_lea.sflag [#allocation3], 1
    %1189 = vsyncpa %s1188, 1
    %1190 = vsyncpa [#allocation6], 1
    %s1191 = scalar_lea.sflag [#allocation6], 1
    %1192 = vsyncpa %s1191, 1
    %1193 = vsyncpa [#allocation9], 1
    %1194 = vsyncpa [#allocation4], 1
    %s1195 = scalar_lea.sflag [#allocation4], 1
    %1196 = vsyncpa %s1195, 1
    %1197 = vsyncpa [#allocation13], 1
    %s1198 = scalar_lea.sflag [#allocation13], 1
    %1199 = vsyncpa %s1198, 1

</llo_original>
